<compile_context>
chip_gen: v7x
topology: tpu7x:2x2x1
jax: 0.10.0
libtpu: 0.0.40
codegen_flags: <defaults>
</compile_context>

<pallas_src>
import functools

import jax
import jax.numpy as jnp
from jax.experimental import pallas as pl
from jax.experimental.pallas import tpu as pltpu
from jax.scipy.special import erf

MIN_DIM_HEAD = 32
_VMEM_LIMIT = 64 * 1024 * 1024   # explicit scoped-VMEM budget (ok on v5e/v6e/v7x)


# ---------------------------------------------------------------------------
# Tiling helpers
# ---------------------------------------------------------------------------
def _ceil_to(x, m):
    return (x + m - 1) // m * m


def _tile_and_pad(d, pref):
    """Pick a tile size and the zero-padded extent for a dimension `d`."""
    if d <= pref:
        return d, d
    return pref, _ceil_to(d, pref)


def _pad2d(x, rows, cols):
    pr, pc = rows - x.shape[0], cols - x.shape[1]
    if pr == 0 and pc == 0:
        return x
    return jnp.pad(x, ((0, pr), (0, pc)))


# ---------------------------------------------------------------------------
# Kernel: RMSNorm fused with a (bias-free) projection
# ---------------------------------------------------------------------------
def _norm_linear_kernel(x_ref, g_ref, w_ref, o_ref, *, scale2, eps2):
    x = x_ref[...]
    ss = jnp.sum(x * x, axis=-1, keepdims=True)
    inv = jax.lax.rsqrt(jnp.maximum(ss * scale2, eps2))        # EUP rsqrt
    xn = (x * inv * g_ref[...]).astype(jnp.bfloat16)
    acc = jnp.dot(xn, w_ref[...], preferred_element_type=jnp.float32)
    o_ref[...] = acc.astype(o_ref.dtype)


def norm_linear(x2d, gamma, w_bf16, *, out_dtype, eps=1e-8,
                tm_pref=256, tn_pref=256):
    M, D = x2d.shape
    Nout = w_bf16.shape[1]
    tm, Mp = _tile_and_pad(M, tm_pref)
    tn, Np = _tile_and_pad(Nout, tn_pref)
    xp = _pad2d(x2d, Mp, D)
    wp = _pad2d(w_bf16, D, Np)
    kernel = functools.partial(_norm_linear_kernel, scale2=1.0 / D, eps2=eps * eps)
    out = pl.pallas_call(
        kernel,
        out_shape=jax.ShapeDtypeStruct((Mp, Np), out_dtype),
        grid=(Mp // tm, Np // tn),
        in_specs=[pl.BlockSpec((tm, D), lambda i, j: (i, 0)),
                  pl.BlockSpec((1, D), lambda i, j: (0, 0)),
                  pl.BlockSpec((D, tn), lambda i, j: (0, j))],
        out_specs=pl.BlockSpec((tm, tn), lambda i, j: (i, j)),
        compiler_params=pltpu.CompilerParams(
            dimension_semantics=("parallel", "parallel"),
            vmem_limit_bytes=_VMEM_LIMIT),
    )(xp, gamma.reshape(1, D), wp)
    return out[:M, :Nout]


# ---------------------------------------------------------------------------
# Kernel: tiled matmul + bias with K-reduction accumulator
# ---------------------------------------------------------------------------
def _linear_kernel(x_ref, w_ref, b_ref, o_ref, acc_ref):
    @pl.when(pl.program_id(2) == 0)
    def _init():
        acc_ref[...] = jnp.zeros_like(acc_ref)

    acc_ref[...] += jnp.dot(x_ref[...], w_ref[...],
                            preferred_element_type=jnp.float32)

    @pl.when(pl.program_id(2) == pl.num_programs(2) - 1)
    def _store():
        o_ref[...] = (acc_ref[...] + b_ref[...]).astype(o_ref.dtype)


def linear(x2d, w_bf16, b=None, *, out_dtype=jnp.float32,
           tm_pref=256, tn_pref=256, tk_pref=512):
    M, K = x2d.shape
    Nout = w_bf16.shape[1]
    tm, Mp = _tile_and_pad(M, tm_pref)
    tn, Np = _tile_and_pad(Nout, tn_pref)
    tk, Kp = _tile_and_pad(K, tk_pref)
    xp = _pad2d(x2d.astype(jnp.bfloat16), Mp, Kp)
    wp = _pad2d(w_bf16, Kp, Np)
    if b is None:
        b = jnp.zeros((Nout,), jnp.float32)
    bp = _pad2d(b.reshape(1, Nout).astype(jnp.float32), 1, Np)
    out = pl.pallas_call(
        _linear_kernel,
        out_shape=jax.ShapeDtypeStruct((Mp, Np), out_dtype),
        grid=(Mp // tm, Np // tn, Kp // tk),
        in_specs=[pl.BlockSpec((tm, tk), lambda i, j, k: (i, k)),
                  pl.BlockSpec((tk, tn), lambda i, j, k: (k, j)),
                  pl.BlockSpec((1, tn), lambda i, j, k: (0, j))],
        out_specs=pl.BlockSpec((tm, tn), lambda i, j, k: (i, j)),
        scratch_shapes=[pltpu.VMEM((tm, tn), jnp.float32)],
        compiler_params=pltpu.CompilerParams(
            dimension_semantics=("parallel", "parallel", "arbitrary"),
            vmem_limit_bytes=_VMEM_LIMIT),
    )(xp, wp, bp)
    return out[:M, :Nout]


# ---------------------------------------------------------------------------
# Kernel: attention core (all heads per batch element, in-kernel rotary)
# ---------------------------------------------------------------------------
def _rope_slice(t, cos, sin, rot):
    """apply_rotary_pos_emb on one head slice. t: (n, dh); cos/sin: (n, rot)."""
    r2 = rot // 2
    tr = t[:, :rot]
    rh = jnp.concatenate([-tr[:, r2:], tr[:, :r2]], axis=-1)     # rotate_half
    tr = tr.astype(jnp.float32) * cos + rh.astype(jnp.float32) * sin
    if rot < t.shape[-1]:
        tr = jnp.concatenate([tr, t[:, rot:].astype(jnp.float32)], axis=-1)
    return tr


def _attn_compute(q, kv, cosq, sinq, cosk, sink, o_ref, *, heads, dim_head, rot):
    inner = heads * dim_head
    outs = []
    for h in range(heads):                       # static unroll over heads
        s, e = h * dim_head, (h + 1) * dim_head
        qh = _rope_slice(q[:, s:e], cosq, sinq, rot).astype(jnp.bfloat16)
        kh = _rope_slice(kv[:, s:e], cosk, sink, rot).astype(jnp.bfloat16)
        vh = kv[:, inner + s:inner + e]
        sim = jax.lax.dot_general(qh, kh, (((1,), (1,)), ((), ())),
                                  preferred_element_type=jnp.float32)
        sim = sim - jnp.max(sim, axis=-1, keepdims=True)
        p = jnp.exp(sim)
        l = jnp.sum(p, axis=-1, keepdims=True)
        oh = jnp.dot(p.astype(jnp.bfloat16), vh,
                     preferred_element_type=jnp.float32)
        outs.append(oh * pl.reciprocal(l, approx=True))          # EUP reciprocal
    # single lane-dense store of all heads
    o_ref[0] = jnp.concatenate(outs, axis=-1).astype(o_ref.dtype)


def _attn_self_kernel(qkv_ref, cq_ref, sq_ref, o_ref, *, heads, dim_head, rot):
    inner = heads * dim_head
    blk = qkv_ref[0]                                             # (N, 3*inner)
    _attn_compute(blk[:, :inner], blk[:, inner:],
                  cq_ref[...], sq_ref[...], cq_ref[...], sq_ref[...],
                  o_ref, heads=heads, dim_head=dim_head, rot=rot)


def _attn_cross_kernel(q_ref, kv_ref, cq_ref, sq_ref, ck_ref, sk_ref, o_ref,
                       *, heads, dim_head, rot):
    _attn_compute(q_ref[0], kv_ref[0],
                  cq_ref[...], sq_ref[...], ck_ref[...], sk_ref[...],
                  o_ref, heads=heads, dim_head=dim_head, rot=rot)


def attention_self(qkv, cos_q, sin_q, *, heads, dim_head):
    B, N, three_inner = qkv.shape
    inner = heads * dim_head
    rot = cos_q.shape[-1]
    kernel = functools.partial(_attn_self_kernel, heads=heads,
                               dim_head=dim_head, rot=rot)
    return pl.pallas_call(
        kernel,
        out_shape=jax.ShapeDtypeStruct((B, N, inner), jnp.bfloat16),
        grid=(B,),
        in_specs=[pl.BlockSpec((1, N, three_inner), lambda b: (b, 0, 0)),
                  pl.BlockSpec((N, rot), lambda b: (0, 0)),
                  pl.BlockSpec((N, rot), lambda b: (0, 0))],
        out_specs=pl.BlockSpec((1, N, inner), lambda b: (b, 0, 0)),
        compiler_params=pltpu.CompilerParams(dimension_semantics=("parallel",)),
    )(qkv, cos_q, sin_q)


def attention_cross(q, kv, cos_q, sin_q, cos_k, sin_k, *, heads, dim_head):
    B, N, inner = q.shape
    Nk = kv.shape[1]
    rot = cos_q.shape[-1]
    kernel = functools.partial(_attn_cross_kernel, heads=heads,
                               dim_head=dim_head, rot=rot)
    return pl.pallas_call(
        kernel,
        out_shape=jax.ShapeDtypeStruct((B, N, inner), jnp.bfloat16),
        grid=(B,),
        in_specs=[pl.BlockSpec((1, N, inner), lambda b: (b, 0, 0)),
                  pl.BlockSpec((1, Nk, 2 * inner), lambda b: (b, 0, 0)),
                  pl.BlockSpec((N, rot), lambda b: (0, 0)),
                  pl.BlockSpec((N, rot), lambda b: (0, 0)),
                  pl.BlockSpec((Nk, rot), lambda b: (0, 0)),
                  pl.BlockSpec((Nk, rot), lambda b: (0, 0))],
        out_specs=pl.BlockSpec((1, N, inner), lambda b: (b, 0, 0)),
        compiler_params=pltpu.CompilerParams(dimension_semantics=("parallel",)),
    )(q, kv, cos_q, sin_q, cos_k, sin_k)


# ---------------------------------------------------------------------------
# Kernel: fused FeedForward (RMSNorm -> Linear -> GELU -> Linear), row-tiled
# ---------------------------------------------------------------------------
def _ff_kernel(x_ref, g_ref, w1_ref, b1_ref, w2_ref, b2_ref, o_ref, *, scale2, eps2):
    x = x_ref[...]
    ss = jnp.sum(x * x, axis=-1, keepdims=True)
    inv = jax.lax.rsqrt(jnp.maximum(ss * scale2, eps2))
    xn = (x * inv * g_ref[...]).astype(jnp.bfloat16)
    h = jnp.dot(xn, w1_ref[...], preferred_element_type=jnp.float32) + b1_ref[...]
    # tanh-approx GELU (single EUP tanh); |err| vs exact erf GELU < 4e-4
    h = 0.5 * h * (1.0 + jnp.tanh(0.7978845608028654 * (h + 0.044715 * (h * h * h))))
    out = jnp.dot(h.astype(jnp.bfloat16), w2_ref[...],
                  preferred_element_type=jnp.float32) + b2_ref[...]
    o_ref[...] = out.astype(o_ref.dtype)


def feedforward(x2d, gamma, w1_bf16, b1, w2_bf16, b2, *, eps=1e-8, tm_pref=256):
    M, D = x2d.shape
    F = w1_bf16.shape[1]
    tm, Mp = _tile_and_pad(M, tm_pref)
    xp = _pad2d(x2d, Mp, D)
    kernel = functools.partial(_ff_kernel, scale2=1.0 / D, eps2=eps * eps)
    out = pl.pallas_call(
        kernel,
        out_shape=jax.ShapeDtypeStruct((Mp, D), x2d.dtype),
        grid=(Mp // tm,),
        in_specs=[pl.BlockSpec((tm, D), lambda i: (i, 0)),
                  pl.BlockSpec((1, D), lambda i: (0, 0)),
                  pl.BlockSpec((D, F), lambda i: (0, 0)),
                  pl.BlockSpec((1, F), lambda i: (0, 0)),
                  pl.BlockSpec((F, D), lambda i: (0, 0)),
                  pl.BlockSpec((1, D), lambda i: (0, 0))],
        out_specs=pl.BlockSpec((tm, D), lambda i: (i, 0)),
        compiler_params=pltpu.CompilerParams(
            dimension_semantics=("parallel",),
            vmem_limit_bytes=_VMEM_LIMIT),
    )(xp, gamma.reshape(1, D), w1_bf16, b1.reshape(1, F).astype(jnp.float32),
      w2_bf16, b2.reshape(1, D).astype(jnp.float32))
    return out[:M]


# ---------------------------------------------------------------------------
# Kernel: standalone RMSNorm (final norm)
# ---------------------------------------------------------------------------
def _rmsnorm_kernel(x_ref, g_ref, o_ref, *, scale2, eps2):
    x = x_ref[...]
    ss = jnp.sum(x * x, axis=-1, keepdims=True)
    inv = jax.lax.rsqrt(jnp.maximum(ss * scale2, eps2))
    o_ref[...] = (x * inv * g_ref[...]).astype(o_ref.dtype)


def rmsnorm(x2d, gamma, *, eps=1e-8, tm_pref=512):
    M, D = x2d.shape
    tm, Mp = _tile_and_pad(M, tm_pref)
    xp = _pad2d(x2d, Mp, D)
    kernel = functools.partial(_rmsnorm_kernel, scale2=1.0 / D, eps2=eps * eps)
    out = pl.pallas_call(
        kernel,
        out_shape=jax.ShapeDtypeStruct((Mp, D), x2d.dtype),
        grid=(Mp // tm,),
        in_specs=[pl.BlockSpec((tm, D), lambda i: (i, 0)),
                  pl.BlockSpec((1, D), lambda i: (0, 0))],
        out_specs=pl.BlockSpec((tm, D), lambda i: (i, 0)),
        compiler_params=pltpu.CompilerParams(dimension_semantics=("parallel",)),
    )(xp, gamma.reshape(1, D))
    return out[:M]


# ---------------------------------------------------------------------------
# Plain-JAX glue: rotary tables, parameter preparation, encoder loop
# ---------------------------------------------------------------------------
def rotary_freqs(n, rot_dim):
    inv_freq = 1.0 / (10000.0 ** (jnp.arange(0, rot_dim, 2, dtype=jnp.float32)
                                  / rot_dim))
    seq = jnp.arange(n, dtype=jnp.float32)
    freqs = jnp.einsum("i,j->ij", seq, inv_freq)
    return jnp.concatenate([freqs, freqs], axis=-1)              # (n, rot_dim)


def rotary_tables(n, rot_dim):
    freqs = rotary_freqs(n, rot_dim)
    return jnp.cos(freqs), jnp.sin(freqs)


def prepare_params(params, *, dim_head):
    """Fold the attention scale into wq, fuse q|kv weights, pre-cast to bf16."""
    scale = dim_head ** -0.5

    def prep_attn(p):
        wq_s = p["wq"] * scale
        return {"norm_gamma": p["norm_gamma"],
                "wq": wq_s.astype(jnp.bfloat16),
                "wqkv": jnp.concatenate([wq_s, p["wkv"]], axis=1).astype(jnp.bfloat16),
                "wkv": p["wkv"].astype(jnp.bfloat16),
                "wo": p["wo"].astype(jnp.bfloat16),
                "bo": p["bo"]}

    layers = []
    for layer in params["layers"]:
        layers.append({
            "attn": prep_attn(layer["attn"]),
            "cross": prep_attn(layer["cross"]),
            "ff_gamma": layer["ff_gamma"],
            "ff_w1": layer["ff_w1"].astype(jnp.bfloat16),
            "ff_b1": layer["ff_b1"],
            "ff_w2": layer["ff_w2"].astype(jnp.bfloat16),
            "ff_b2": layer["ff_b2"],
        })
    return {"layers": layers, "norm_out_gamma": params["norm_out_gamma"]}


def encoder_forward(x, chunked_seq, prepared, *, heads, dim_head):
    B, N, D = x.shape
    Bk, Nk, Dk = chunked_seq.shape
    inner = heads * dim_head
    rot = max(dim_head // 2, MIN_DIM_HEAD)
    cos_q, sin_q = rotary_tables(N, rot)
    cos_k, sin_k = rotary_tables(Nk, rot)
    ctx_bf16 = chunked_seq.astype(jnp.bfloat16).reshape(Bk * Nk, Dk)

    for layer in prepared["layers"]:
        # ---- self attention ------------------------------------------------
        pa = layer["attn"]
        qkv = norm_linear(x.reshape(B * N, D), pa["norm_gamma"], pa["wqkv"],
                          out_dtype=jnp.bfloat16).reshape(B, N, 3 * inner)
        o = attention_self(qkv, cos_q, sin_q, heads=heads, dim_head=dim_head)
        attn_out = linear(o.reshape(B * N, inner), pa["wo"], pa["bo"],
                          out_dtype=x.dtype).reshape(B, N, D)
        x = attn_out + x

        # ---- cross attention (context = chunked_seq, not normed) ------------
        pc = layer["cross"]
        q = norm_linear(x.reshape(B * N, D), pc["norm_gamma"], pc["wq"],
                        out_dtype=jnp.bfloat16).reshape(B, N, inner)
        kv = linear(ctx_bf16, pc["wkv"], None,
                    out_dtype=jnp.bfloat16).reshape(Bk, Nk, 2 * inner)
        o = attention_cross(q, kv, cos_q, sin_q, cos_k, sin_k,
                            heads=heads, dim_head=dim_head)
        cross_out = linear(o.reshape(B * N, inner), pc["wo"], pc["bo"],
                           out_dtype=x.dtype).reshape(B, N, D)
        x = cross_out + x

        # ---- feed forward ----------------------------------------------------
        x = feedforward(x.reshape(B * N, D), layer["ff_gamma"],
                        layer["ff_w1"], layer["ff_b1"],
                        layer["ff_w2"], layer["ff_b2"]).reshape(B, N, D) + x

    return rmsnorm(x.reshape(B * N, D), prepared["norm_out_gamma"]).reshape(B, N, D)


# ---------------------------------------------------------------------------
# Deterministic parameter init (shapes per the torch __init__)
# ---------------------------------------------------------------------------
def init_params(key, *, dim, depth, heads, dim_head, ff_mult):
    inner = heads * dim_head
    ff_inner = int(ff_mult * dim)

    def lin_w(k, din, dout):
        return jax.random.normal(k, (din, dout), jnp.float32) / jnp.sqrt(float(din))

    def attn_params(k0, k1, k2, k3):
        return {"norm_gamma": jnp.ones((dim,), jnp.float32),
                "wq": lin_w(k0, dim, inner),
                "wkv": lin_w(k1, dim, 2 * inner),
                "wo": lin_w(k2, inner, dim),
                "bo": 0.02 * jax.random.normal(k3, (dim,), jnp.float32)}

    layers = []
    for l in range(depth):
        ks = jax.random.split(jax.random.fold_in(key, l), 10)
        layers.append({
            "attn": attn_params(ks[0], ks[1], ks[2], ks[3]),
            "cross": attn_params(ks[4], ks[5], ks[6], ks[7]),
            "ff_gamma": jnp.ones((dim,), jnp.float32),
            "ff_w1": lin_w(ks[8], dim, ff_inner),
            "ff_b1": jnp.zeros((ff_inner,), jnp.float32),
            "ff_w2": lin_w(ks[9], ff_inner, dim),
            "ff_b2": jnp.zeros((dim,), jnp.float32),
        })
    return {"layers": layers, "norm_out_gamma": jnp.ones((dim,), jnp.float32)}


# ---------------------------------------------------------------------------
# Pure-JAX reference (torch math, same bf16 mixed-precision matmul policy)
# ---------------------------------------------------------------------------
def _bf16(t):
    return t.astype(jnp.bfloat16)


def _mm(a, b):
    return jnp.dot(_bf16(a), _bf16(b), preferred_element_type=jnp.float32)


def _ref_rmsnorm(x, gamma, eps=1e-8):
    norm = jnp.sqrt(jnp.sum(x * x, axis=-1, keepdims=True)) * (x.shape[-1] ** -0.5)
    return x / jnp.maximum(norm, eps) * gamma


def _ref_rotary(t, freqs):   # t: (b, h, n, d)
    rot = freqs.shape[-1]
    t_r, t_p = t[..., :rot], t[..., rot:]
    cos = jnp.cos(freqs)[None, None, :, :]
    sin = jnp.sin(freqs)[None, None, :, :]
    x1, x2 = t_r[..., :rot // 2], t_r[..., rot // 2:]
    rh = jnp.concatenate([-x2, x1], axis=-1)
    t_r = t_r * cos + rh * sin
    return jnp.concatenate([t_r, t_p], axis=-1)


def _ref_attention(x, p, heads, dim_head, freqs_q, freqs_k=None, context=None):
    B, N, D = x.shape
    inner = heads * dim_head
    scale = dim_head ** -0.5
    xn = _ref_rmsnorm(x, p["norm_gamma"])
    kv_in = xn if context is None else context
    q = _bf16(_mm(xn, p["wq"] * scale))
    kv = _bf16(_mm(kv_in, p["wkv"]))
    k, v = kv[..., :inner], kv[..., inner:]

    def split(t):
        b, n, _ = t.shape
        return t.reshape(b, n, heads, dim_head).transpose(0, 2, 1, 3)

    q, k, v = map(split, (q, k, v))
    q = _ref_rotary(q, freqs_q)
    k = _ref_rotary(k, freqs_q if freqs_k is None else freqs_k)
    sim = jnp.einsum("bhid,bhjd->bhij", _bf16(q), _bf16(k),
                     preferred_element_type=jnp.float32)
    attn = jax.nn.softmax(sim, axis=-1)
    out = jnp.einsum("bhij,bhjd->bhid", _bf16(attn), _bf16(v),
                     preferred_element_type=jnp.float32)
    out = _bf16(out.transpose(0, 2, 1, 3).reshape(B, N, inner))
    return _mm(out, p["wo"]) + p["bo"]


def _ref_ff(x, gamma, w1, b1, w2, b2):
    xn = _ref_rmsnorm(x, gamma)
    h = _mm(xn, w1) + b1
    h = 0.5 * h * (1.0 + erf(h * (2.0 ** -0.5)))       # exact-GELU reference
    return _mm(h, w2) + b2


def ref_encoder(x, chunked_seq, params, *, heads, dim_head):
    N, Nk = x.shape[-2], chunked_seq.shape[-2]
    rot = max(dim_head // 2, MIN_DIM_HEAD)
    fq = rotary_freqs(N, rot)
    fk = rotary_freqs(Nk, rot)
    for layer in params["layers"]:
        x = _ref_attention(x, layer["attn"], heads, dim_head, fq) + x
        x = _ref_attention(x, layer["cross"], heads, dim_head, fq, fk,
                           chunked_seq) + x
        x = _ref_ff(x, layer["ff_gamma"], layer["ff_w1"], layer["ff_b1"],
                    layer["ff_w2"], layer["ff_b2"]) + x
    return _ref_rmsnorm(x, params["norm_out_gamma"])


# ---------------------------------------------------------------------------
if __name__ == "__main__":
    dim, depth, heads, dim_head, ff_mult = 32, 2, 2, 32, 4
    B, chunk_size, seq_len = 2, 8, 16

    key = jax.random.PRNGKey(0)
    kx, kc, kp = jax.random.split(key, 3)
    x = jax.random.normal(kx, (B, chunk_size, dim), jnp.float32)
    chunked_seq = jax.random.normal(kc, (B, seq_len, dim), jnp.float32)
    params = init_params(kp, dim=dim, depth=depth, heads=heads,
                         dim_head=dim_head, ff_mult=ff_mult)
    prepared = prepare_params(params, dim_head=dim_head)

    fwd = jax.jit(functools.partial(encoder_forward, heads=heads, dim_head=dim_head))
    out = jax.block_until_ready(fwd(x, chunked_seq, prepared))
    assert out.shape == (B, chunk_size, dim)

    ref = jax.block_until_ready(
        ref_encoder(x, chunked_seq, params, heads=heads, dim_head=dim_head))
    if not jnp.allclose(out, ref, rtol=2e-2, atol=2e-2):
        raise AssertionError(
            f"mismatch vs reference, max abs err {float(jnp.max(jnp.abs(out - ref)))}")

    print("KERNEL_OK")
</pallas_src>

<mosaic_0001>
module attributes {stable_mosaic.version = 11 : i64} {
  func.func @_norm_linear_kernel(%arg0: i32, %arg1: i32, %arg2: memref<16x32xf32, #tpu.memory_space<vmem>>, %arg3: memref<1x32xf32, #tpu.memory_space<vmem>>, %arg4: memref<32x192xbf16, #tpu.memory_space<vmem>>, %arg5: memref<16x192xbf16, #tpu.memory_space<vmem>>) attributes {dimension_semantics = [#tpu.dimension_semantics<parallel>, #tpu.dimension_semantics<parallel>], iteration_bounds = array<i64: 1, 1>, scalar_prefetch = 0 : i64, scratch_operands = 0 : i64, tpu.core_type = #tpu.core_type<tc>, window_params = [{transform_indices = @transform_0, window_bounds = array<i64: 16, 32>}, {pipeline_mode = #tpu.pipeline_mode<synchronous>, transform_indices = @transform_1, window_bounds = array<i64: 1, 32>}, {transform_indices = @transform_2, window_bounds = array<i64: 32, 192>}, {transform_indices = @transform_3, window_bounds = array<i64: 16, 192>}]} {
    %c0 = arith.constant 0 : index
    %c0_0 = arith.constant 0 : index
    %0 = vector.load %arg2[%c0, %c0_0] : memref<16x32xf32, #tpu.memory_space<vmem>>, vector<16x32xf32>
    %1 = arith.mulf %0, %0 : vector<16x32xf32>
    %cst = arith.constant dense<0.000000e+00> : vector<16xf32>
    %2 = vector.multi_reduction <add>, %1, %cst [1] : vector<16x32xf32> to vector<16xf32>
    %3 = vector.shape_cast %2 : vector<16xf32> to vector<16x1xf32>
    %cst_1 = arith.constant 3.125000e-02 : f32
    %4 = vector.broadcast %cst_1 : f32 to vector<16x1xf32>
    %5 = arith.mulf %3, %4 : vector<16x1xf32>
    %cst_2 = arith.constant 1.000000e-16 : f32
    %6 = vector.broadcast %cst_2 : f32 to vector<16x1xf32>
    %7 = arith.maximumf %5, %6 : vector<16x1xf32>
    %8 = math.rsqrt %7 : vector<16x1xf32>
    %9 = vector.broadcast %8 : vector<16x1xf32> to vector<16x32xf32>
    %10 = arith.mulf %0, %9 : vector<16x32xf32>
    %c0_3 = arith.constant 0 : index
    %c0_4 = arith.constant 0 : index
    %11 = vector.load %arg3[%c0_3, %c0_4] : memref<1x32xf32, #tpu.memory_space<vmem>>, vector<1x32xf32>
    %12 = vector.broadcast %11 : vector<1x32xf32> to vector<16x32xf32>
    %13 = arith.mulf %10, %12 : vector<16x32xf32>
    %14 = arith.truncf %13 : vector<16x32xf32> to vector<16x32xbf16>
    %c0_5 = arith.constant 0 : index
    %c0_6 = arith.constant 0 : index
    %15 = vector.load %arg4[%c0_5, %c0_6] : memref<32x192xbf16, #tpu.memory_space<vmem>>, vector<32x192xbf16>
    %cst_7 = arith.constant dense<0.000000e+00> : vector<16x192xf32>
    %16 = tpu.matmul %14, %15, %cst_7 {dimension_numbers = #tpu.dot_dimension_numbers<[1], [0], [0], [1], [0, 0, 1, 1], [], []>} : vector<16x32xbf16>, vector<32x192xbf16>, vector<16x192xf32> -> vector<16x192xf32>
    %17 = arith.truncf %16 : vector<16x192xf32> to vector<16x192xbf16>
    %c0_8 = arith.constant 0 : index
    %c0_9 = arith.constant 0 : index
    %18 = vector.load %arg5[%c0_8, %c0_9] : memref<16x192xbf16, #tpu.memory_space<vmem>>, vector<16x192xbf16>
    tpu.vector_store %arg5[%c0_8, %c0_9], %17 {strides = array<i32>} : memref<16x192xbf16, #tpu.memory_space<vmem>>, vector<16x192xbf16>,
    return
  }
  func.func @transform_0(%arg0: i32, %arg1: i32) -> (i32, i32) {
    %c0_i32 = arith.constant 0 : i32
    %c0_i32_0 = arith.constant 0 : i32
    return %arg0, %c0_i32 : i32, i32
  }
  func.func @transform_1(%arg0: i32, %arg1: i32) -> (i32, i32) {
    %c0_i32 = arith.constant 0 : i32
    %c0_i32_0 = arith.constant 0 : i32
    %c0_i32_1 = arith.constant 0 : i32
    return %c0_i32, %c0_i32_0 : i32, i32
  }
  func.func @transform_2(%arg0: i32, %arg1: i32) -> (i32, i32) {
    %c0_i32 = arith.constant 0 : i32
    %c0_i32_0 = arith.constant 0 : i32
    return %c0_i32, %arg1 : i32, i32
  }
  func.func @transform_3(%arg0: i32, %arg1: i32) -> (i32, i32) {
    %c0_i32 = arith.constant 0 : i32
    return %arg0, %arg1 : i32, i32
  }
}

module attributes {stable_mosaic.version = 11 : i64} {
  func.func @_attn_self_kernel(%arg0: i32, %arg1: memref<1x8x192xbf16, #tpu.memory_space<vmem>>, %arg2: memref<8x32xf32, #tpu.memory_space<vmem>>, %arg3: memref<8x32xf32, #tpu.memory_space<vmem>>, %arg4: memref<1x8x64xbf16, #tpu.memory_space<vmem>>) attributes {dimension_semantics = [#tpu.dimension_semantics<parallel>], iteration_bounds = array<i64: 2>, scalar_prefetch = 0 : i64, scratch_operands = 0 : i64, tpu.core_type = #tpu.core_type<tc>, window_params = [{transform_indices = @transform_0, window_bounds = array<i64: 1, 8, 192>}, {pipeline_mode = #tpu.pipeline_mode<synchronous>, transform_indices = @transform_1, window_bounds = array<i64: 8, 32>}, {pipeline_mode = #tpu.pipeline_mode<synchronous>, transform_indices = @transform_2, window_bounds = array<i64: 8, 32>}, {transform_indices = @transform_3, window_bounds = array<i64: 1, 8, 64>}]} {
    %c0 = arith.constant 0 : index
    %c0_0 = arith.constant 0 : index
    %c0_1 = arith.constant 0 : index
    %0 = vector.load %arg1[%c0, %c0_0, %c0_1] : memref<1x8x192xbf16, #tpu.memory_space<vmem>>, vector<1x8x192xbf16>
    %1 = vector.shape_cast %0 : vector<1x8x192xbf16> to vector<8x192xbf16>
    %2 = vector.extract_strided_slice %1 {offsets = [0, 0], sizes = [8, 64], strides = [1, 1]} : vector<8x192xbf16> to vector<8x64xbf16>
    %3 = vector.extract_strided_slice %1 {offsets = [0, 64], sizes = [8, 128], strides = [1, 1]} : vector<8x192xbf16> to vector<8x128xbf16>
    %c0_2 = arith.constant 0 : index
    %c0_3 = arith.constant 0 : index
    %4 = vector.load %arg2[%c0_2, %c0_3] : memref<8x32xf32, #tpu.memory_space<vmem>>, vector<8x32xf32>
    %c0_4 = arith.constant 0 : index
    %c0_5 = arith.constant 0 : index
    %5 = vector.load %arg3[%c0_4, %c0_5] : memref<8x32xf32, #tpu.memory_space<vmem>>, vector<8x32xf32>
    %c0_6 = arith.constant 0 : index
    %c0_7 = arith.constant 0 : index
    %6 = vector.load %arg2[%c0_6, %c0_7] : memref<8x32xf32, #tpu.memory_space<vmem>>, vector<8x32xf32>
    %c0_8 = arith.constant 0 : index
    %c0_9 = arith.constant 0 : index
    %7 = vector.load %arg3[%c0_8, %c0_9] : memref<8x32xf32, #tpu.memory_space<vmem>>, vector<8x32xf32>
    %8 = vector.extract_strided_slice %2 {offsets = [0, 0], sizes = [8, 32], strides = [1, 1]} : vector<8x64xbf16> to vector<8x32xbf16>
    %9 = vector.extract_strided_slice %8 {offsets = [0, 16], sizes = [8, 16], strides = [1, 1]} : vector<8x32xbf16> to vector<8x16xbf16>
    %cst = arith.constant 0.000000e+00 : bf16
    %10 = vector.broadcast %cst : bf16 to vector<8x16xbf16>
    %11 = arith.subf %10, %9 : vector<8x16xbf16>
    %12 = vector.extract_strided_slice %8 {offsets = [0, 0], sizes = [8, 16], strides = [1, 1]} : vector<8x32xbf16> to vector<8x16xbf16>
    %13 = tpu.concatenate %11, %12 in 1 : vector<8x16xbf16>, vector<8x16xbf16> -> vector<8x32xbf16>
    %14 = arith.extf %8 : vector<8x32xbf16> to vector<8x32xf32>
    %15 = arith.mulf %14, %4 : vector<8x32xf32>
    %16 = arith.extf %13 : vector<8x32xbf16> to vector<8x32xf32>
    %17 = arith.mulf %16, %5 : vector<8x32xf32>
    %18 = arith.addf %15, %17 : vector<8x32xf32>
    %19 = arith.truncf %18 : vector<8x32xf32> to vector<8x32xbf16>
    %20 = vector.extract_strided_slice %3 {offsets = [0, 0], sizes = [8, 32], strides = [1, 1]} : vector<8x128xbf16> to vector<8x32xbf16>
    %21 = vector.extract_strided_slice %20 {offsets = [0, 16], sizes = [8, 16], strides = [1, 1]} : vector<8x32xbf16> to vector<8x16xbf16>
    %cst_10 = arith.constant 0.000000e+00 : bf16
    %22 = vector.broadcast %cst_10 : bf16 to vector<8x16xbf16>
    %23 = arith.subf %22, %21 : vector<8x16xbf16>
    %24 = vector.extract_strided_slice %20 {offsets = [0, 0], sizes = [8, 16], strides = [1, 1]} : vector<8x32xbf16> to vector<8x16xbf16>
    %25 = tpu.concatenate %23, %24 in 1 : vector<8x16xbf16>, vector<8x16xbf16> -> vector<8x32xbf16>
    %26 = arith.extf %20 : vector<8x32xbf16> to vector<8x32xf32>
    %27 = arith.mulf %26, %6 : vector<8x32xf32>
    %28 = arith.extf %25 : vector<8x32xbf16> to vector<8x32xf32>
    %29 = arith.mulf %28, %7 : vector<8x32xf32>
    %30 = arith.addf %27, %29 : vector<8x32xf32>
    %31 = arith.truncf %30 : vector<8x32xf32> to vector<8x32xbf16>
    %32 = vector.extract_strided_slice %3 {offsets = [0, 64], sizes = [8, 32], strides = [1, 1]} : vector<8x128xbf16> to vector<8x32xbf16>
    %cst_11 = arith.constant dense<0.000000e+00> : vector<8x8xf32>
    %33 = tpu.matmul %19, %31, %cst_11 {dimension_numbers = #tpu.dot_dimension_numbers<[1], [1], [0], [0], [0, 0, 1, 0], [], []>} : vector<8x32xbf16>, vector<8x32xbf16>, vector<8x8xf32> -> vector<8x8xf32>
    %cst_12 = arith.constant dense<0xFF800000> : vector<8xf32>
    %34 = vector.multi_reduction <maximumf>, %33, %cst_12 [1] : vector<8x8xf32> to vector<8xf32>
    %35 = vector.shape_cast %34 : vector<8xf32> to vector<8x1xf32>
    %36 = vector.broadcast %35 : vector<8x1xf32> to vector<8x8xf32>
    %37 = arith.subf %33, %36 : vector<8x8xf32>
    %38 = math.exp %37 : vector<8x8xf32>
    %cst_13 = arith.constant dense<0.000000e+00> : vector<8xf32>
    %39 = vector.multi_reduction <add>, %38, %cst_13 [1] : vector<8x8xf32> to vector<8xf32>
    %40 = vector.shape_cast %39 : vector<8xf32> to vector<8x1xf32>
    %41 = arith.truncf %38 : vector<8x8xf32> to vector<8x8xbf16>
    %cst_14 = arith.constant dense<0.000000e+00> : vector<8x32xf32>
    %42 = tpu.matmul %41, %32, %cst_14 {dimension_numbers = #tpu.dot_dimension_numbers<[1], [0], [0], [1], [0, 0, 1, 1], [], []>} : vector<8x8xbf16>, vector<8x32xbf16>, vector<8x32xf32> -> vector<8x32xf32>
    %43 = tpu.reciprocal %40 {approx = true} : vector<8x1xf32> -> vector<8x1xf32>
    %44 = vector.broadcast %43 : vector<8x1xf32> to vector<8x32xf32>
    %45 = arith.mulf %42, %44 : vector<8x32xf32>
    %46 = vector.extract_strided_slice %2 {offsets = [0, 32], sizes = [8, 32], strides = [1, 1]} : vector<8x64xbf16> to vector<8x32xbf16>
    %47 = vector.extract_strided_slice %46 {offsets = [0, 16], sizes = [8, 16], strides = [1, 1]} : vector<8x32xbf16> to vector<8x16xbf16>
    %cst_15 = arith.constant 0.000000e+00 : bf16
    %48 = vector.broadcast %cst_15 : bf16 to vector<8x16xbf16>
    %49 = arith.subf %48, %47 : vector<8x16xbf16>
    %50 = vector.extract_strided_slice %46 {offsets = [0, 0], sizes = [8, 16], strides = [1, 1]} : vector<8x32xbf16> to vector<8x16xbf16>
    %51 = tpu.concatenate %49, %50 in 1 : vector<8x16xbf16>, vector<8x16xbf16> -> vector<8x32xbf16>
    %52 = arith.extf %46 : vector<8x32xbf16> to vector<8x32xf32>
    %53 = arith.mulf %52, %4 : vector<8x32xf32>
    %54 = arith.extf %51 : vector<8x32xbf16> to vector<8x32xf32>
    %55 = arith.mulf %54, %5 : vector<8x32xf32>
    %56 = arith.addf %53, %55 : vector<8x32xf32>
    %57 = arith.truncf %56 : vector<8x32xf32> to vector<8x32xbf16>
    %58 = vector.extract_strided_slice %3 {offsets = [0, 32], sizes = [8, 32], strides = [1, 1]} : vector<8x128xbf16> to vector<8x32xbf16>
    %59 = vector.extract_strided_slice %58 {offsets = [0, 16], sizes = [8, 16], strides = [1, 1]} : vector<8x32xbf16> to vector<8x16xbf16>
    %cst_16 = arith.constant 0.000000e+00 : bf16
    %60 = vector.broadcast %cst_16 : bf16 to vector<8x16xbf16>
    %61 = arith.subf %60, %59 : vector<8x16xbf16>
    %62 = vector.extract_strided_slice %58 {offsets = [0, 0], sizes = [8, 16], strides = [1, 1]} : vector<8x32xbf16> to vector<8x16xbf16>
    %63 = tpu.concatenate %61, %62 in 1 : vector<8x16xbf16>, vector<8x16xbf16> -> vector<8x32xbf16>
    %64 = arith.extf %58 : vector<8x32xbf16> to vector<8x32xf32>
    %65 = arith.mulf %64, %6 : vector<8x32xf32>
    %66 = arith.extf %63 : vector<8x32xbf16> to vector<8x32xf32>
    %67 = arith.mulf %66, %7 : vector<8x32xf32>
    %68 = arith.addf %65, %67 : vector<8x32xf32>
    %69 = arith.truncf %68 : vector<8x32xf32> to vector<8x32xbf16>
    %70 = vector.extract_strided_slice %3 {offsets = [0, 96], sizes = [8, 32], strides = [1, 1]} : vector<8x128xbf16> to vector<8x32xbf16>
    %cst_17 = arith.constant dense<0.000000e+00> : vector<8x8xf32>
    %71 = tpu.matmul %57, %69, %cst_17 {dimension_numbers = #tpu.dot_dimension_numbers<[1], [1], [0], [0], [0, 0, 1, 0], [], []>} : vector<8x32xbf16>, vector<8x32xbf16>, vector<8x8xf32> -> vector<8x8xf32>
    %cst_18 = arith.constant dense<0xFF800000> : vector<8xf32>
    %72 = vector.multi_reduction <maximumf>, %71, %cst_18 [1] : vector<8x8xf32> to vector<8xf32>
    %73 = vector.shape_cast %72 : vector<8xf32> to vector<8x1xf32>
    %74 = vector.broadcast %73 : vector<8x1xf32> to vector<8x8xf32>
    %75 = arith.subf %71, %74 : vector<8x8xf32>
    %76 = math.exp %75 : vector<8x8xf32>
    %cst_19 = arith.constant dense<0.000000e+00> : vector<8xf32>
    %77 = vector.multi_reduction <add>, %76, %cst_19 [1] : vector<8x8xf32> to vector<8xf32>
    %78 = vector.shape_cast %77 : vector<8xf32> to vector<8x1xf32>
    %79 = arith.truncf %76 : vector<8x8xf32> to vector<8x8xbf16>
    %cst_20 = arith.constant dense<0.000000e+00> : vector<8x32xf32>
    %80 = tpu.matmul %79, %70, %cst_20 {dimension_numbers = #tpu.dot_dimension_numbers<[1], [0], [0], [1], [0, 0, 1, 1], [], []>} : vector<8x8xbf16>, vector<8x32xbf16>, vector<8x32xf32> -> vector<8x32xf32>
    %81 = tpu.reciprocal %78 {approx = true} : vector<8x1xf32> -> vector<8x1xf32>
    %82 = vector.broadcast %81 : vector<8x1xf32> to vector<8x32xf32>
    %83 = arith.mulf %80, %82 : vector<8x32xf32>
    %84 = tpu.concatenate %45, %83 in 1 : vector<8x32xf32>, vector<8x32xf32> -> vector<8x64xf32>
    %85 = arith.truncf %84 : vector<8x64xf32> to vector<8x64xbf16>
    %c0_21 = arith.constant 0 : index
    %c0_22 = arith.constant 0 : index
    %c0_23 = arith.constant 0 : index
    %86 = vector.load %arg4[%c0_21, %c0_22, %c0_23] : memref<1x8x64xbf16, #tpu.memory_space<vmem>>, vector<1x8x64xbf16>
    %87 = vector.shape_cast %86 : vector<1x8x64xbf16> to vector<8x64xbf16>
    %88 = vector.shape_cast %85 : vector<8x64xbf16> to vector<1x8x64xbf16>
    tpu.vector_store %arg4[%c0_21, %c0_22, %c0_23], %88 {strides = array<i32>} : memref<1x8x64xbf16, #tpu.memory_space<vmem>>, vector<1x8x64xbf16>,
    return
  }
  func.func @transform_0(%arg0: i32) -> (i32, i32, i32) {
    %c0_i32 = arith.constant 0 : i32
    %c0_i32_0 = arith.constant 0 : i32
    %c0_i32_1 = arith.constant 0 : i32
    return %arg0, %c0_i32, %c0_i32_0 : i32, i32, i32
  }
  func.func @transform_1(%arg0: i32) -> (i32, i32) {
    %c0_i32 = arith.constant 0 : i32
    %c0_i32_0 = arith.constant 0 : i32
    %c0_i32_1 = arith.constant 0 : i32
    return %c0_i32, %c0_i32_0 : i32, i32
  }
  func.func @transform_2(%arg0: i32) -> (i32, i32) {
    %c0_i32 = arith.constant 0 : i32
    %c0_i32_0 = arith.constant 0 : i32
    %c0_i32_1 = arith.constant 0 : i32
    return %c0_i32, %c0_i32_0 : i32, i32
  }
  func.func @transform_3(%arg0: i32) -> (i32, i32, i32) {
    %c0_i32 = arith.constant 0 : i32
    %c0_i32_0 = arith.constant 0 : i32
    %c0_i32_1 = arith.constant 0 : i32
    return %arg0, %c0_i32, %c0_i32_0 : i32, i32, i32
  }
}

module attributes {stable_mosaic.version = 11 : i64} {
  func.func @_linear_kernel(%arg0: i32, %arg1: i32, %arg2: i32, %arg3: memref<16x64xbf16, #tpu.memory_space<vmem>>, %arg4: memref<64x32xbf16, #tpu.memory_space<vmem>>, %arg5: memref<1x32xf32, #tpu.memory_space<vmem>>, %arg6: memref<16x32xf32, #tpu.memory_space<vmem>>, %arg7: memref<16x32xf32, #tpu.memory_space<vmem>>) attributes {dimension_semantics = [#tpu.dimension_semantics<parallel>, #tpu.dimension_semantics<parallel>, #tpu.dimension_semantics<arbitrary>], iteration_bounds = array<i64: 1, 1, 1>, scalar_prefetch = 0 : i64, scratch_operands = 1 : i64, tpu.core_type = #tpu.core_type<tc>, window_params = [{transform_indices = @transform_0, window_bounds = array<i64: 16, 64>}, {transform_indices = @transform_1, window_bounds = array<i64: 64, 32>}, {transform_indices = @transform_2, window_bounds = array<i64: 1, 32>}, {transform_indices = @transform_3, window_bounds = array<i64: 16, 32>}]} {
    %c0_i32 = arith.constant 0 : i32
    %0 = arith.cmpi eq, %arg2, %c0_i32 : i32
    %1 = arith.extui %0 : i1 to i32
    %c0_i32_0 = arith.constant 0 : i32
    %2 = arith.cmpi ne, %1, %c0_i32_0 : i32
    scf.if %2 {
      %cst_10 = arith.constant 0.000000e+00 : f32
      %12 = vector.broadcast %cst_10 : f32 to vector<16x32xf32>
      %c0_11 = arith.constant 0 : index
      %c0_12 = arith.constant 0 : index
      %13 = vector.load %arg7[%c0_11, %c0_12] : memref<16x32xf32, #tpu.memory_space<vmem>>, vector<16x32xf32>
      tpu.vector_store %arg7[%c0_11, %c0_12], %12 {strides = array<i32>} : memref<16x32xf32, #tpu.memory_space<vmem>>, vector<16x32xf32>,
    } else {
    }
    %c0 = arith.constant 0 : index
    %c0_1 = arith.constant 0 : index
    %3 = vector.load %arg7[%c0, %c0_1] : memref<16x32xf32, #tpu.memory_space<vmem>>, vector<16x32xf32>
    %c0_2 = arith.constant 0 : index
    %c0_3 = arith.constant 0 : index
    %4 = vector.load %arg3[%c0_2, %c0_3] : memref<16x64xbf16, #tpu.memory_space<vmem>>, vector<16x64xbf16>
    %c0_4 = arith.constant 0 : index
    %c0_5 = arith.constant 0 : index
    %5 = vector.load %arg4[%c0_4, %c0_5] : memref<64x32xbf16, #tpu.memory_space<vmem>>, vector<64x32xbf16>
    %cst = arith.constant dense<0.000000e+00> : vector<16x32xf32>
    %6 = tpu.matmul %4, %5, %cst {dimension_numbers = #tpu.dot_dimension_numbers<[1], [0], [0], [1], [0, 0, 1, 1], [], []>} : vector<16x64xbf16>, vector<64x32xbf16>, vector<16x32xf32> -> vector<16x32xf32>
    %7 = arith.addf %3, %6 : vector<16x32xf32>
    %c0_6 = arith.constant 0 : index
    %c0_7 = arith.constant 0 : index
    %8 = vector.load %arg7[%c0_6, %c0_7] : memref<16x32xf32, #tpu.memory_space<vmem>>, vector<16x32xf32>
    tpu.vector_store %arg7[%c0_6, %c0_7], %7 {strides = array<i32>} : memref<16x32xf32, #tpu.memory_space<vmem>>, vector<16x32xf32>,
    %c0_i32_8 = arith.constant 0 : i32
    %9 = arith.cmpi eq, %arg2, %c0_i32_8 : i32
    %10 = arith.extui %9 : i1 to i32
    %c0_i32_9 = arith.constant 0 : i32
    %11 = arith.cmpi ne, %10, %c0_i32_9 : i32
    scf.if %11 {
      %c0_10 = arith.constant 0 : index
      %c0_11 = arith.constant 0 : index
      %12 = vector.load %arg7[%c0_10, %c0_11] : memref<16x32xf32, #tpu.memory_space<vmem>>, vector<16x32xf32>
      %c0_12 = arith.constant 0 : index
      %c0_13 = arith.constant 0 : index
      %13 = vector.load %arg5[%c0_12, %c0_13] : memref<1x32xf32, #tpu.memory_space<vmem>>, vector<1x32xf32>
      %14 = vector.broadcast %13 : vector<1x32xf32> to vector<16x32xf32>
      %15 = arith.addf %12, %14 : vector<16x32xf32>
      %c0_14 = arith.constant 0 : index
      %c0_15 = arith.constant 0 : index
      %16 = vector.load %arg6[%c0_14, %c0_15] : memref<16x32xf32, #tpu.memory_space<vmem>>, vector<16x32xf32>
      tpu.vector_store %arg6[%c0_14, %c0_15], %15 {strides = array<i32>} : memref<16x32xf32, #tpu.memory_space<vmem>>, vector<16x32xf32>,
    } else {
    }
    return
  }
  func.func @transform_0(%arg0: i32, %arg1: i32, %arg2: i32) -> (i32, i32) {
    %c0_i32 = arith.constant 0 : i32
    return %arg0, %arg2 : i32, i32
  }
  func.func @transform_1(%arg0: i32, %arg1: i32, %arg2: i32) -> (i32, i32) {
    %c0_i32 = arith.constant 0 : i32
    return %arg2, %arg1 : i32, i32
  }
  func.func @transform_2(%arg0: i32, %arg1: i32, %arg2: i32) -> (i32, i32) {
    %c0_i32 = arith.constant 0 : i32
    %c0_i32_0 = arith.constant 0 : i32
    return %c0_i32, %arg1 : i32, i32
  }
  func.func @transform_3(%arg0: i32, %arg1: i32, %arg2: i32) -> (i32, i32) {
    %c0_i32 = arith.constant 0 : i32
    return %arg0, %arg1 : i32, i32
  }
}

module attributes {stable_mosaic.version = 11 : i64} {
  func.func @_norm_linear_kernel(%arg0: i32, %arg1: i32, %arg2: memref<16x32xf32, #tpu.memory_space<vmem>>, %arg3: memref<1x32xf32, #tpu.memory_space<vmem>>, %arg4: memref<32x64xbf16, #tpu.memory_space<vmem>>, %arg5: memref<16x64xbf16, #tpu.memory_space<vmem>>) attributes {dimension_semantics = [#tpu.dimension_semantics<parallel>, #tpu.dimension_semantics<parallel>], iteration_bounds = array<i64: 1, 1>, scalar_prefetch = 0 : i64, scratch_operands = 0 : i64, tpu.core_type = #tpu.core_type<tc>, window_params = [{transform_indices = @transform_0, window_bounds = array<i64: 16, 32>}, {pipeline_mode = #tpu.pipeline_mode<synchronous>, transform_indices = @transform_1, window_bounds = array<i64: 1, 32>}, {transform_indices = @transform_2, window_bounds = array<i64: 32, 64>}, {transform_indices = @transform_3, window_bounds = array<i64: 16, 64>}]} {
    %c0 = arith.constant 0 : index
    %c0_0 = arith.constant 0 : index
    %0 = vector.load %arg2[%c0, %c0_0] : memref<16x32xf32, #tpu.memory_space<vmem>>, vector<16x32xf32>
    %1 = arith.mulf %0, %0 : vector<16x32xf32>
    %cst = arith.constant dense<0.000000e+00> : vector<16xf32>
    %2 = vector.multi_reduction <add>, %1, %cst [1] : vector<16x32xf32> to vector<16xf32>
    %3 = vector.shape_cast %2 : vector<16xf32> to vector<16x1xf32>
    %cst_1 = arith.constant 3.125000e-02 : f32
    %4 = vector.broadcast %cst_1 : f32 to vector<16x1xf32>
    %5 = arith.mulf %3, %4 : vector<16x1xf32>
    %cst_2 = arith.constant 1.000000e-16 : f32
    %6 = vector.broadcast %cst_2 : f32 to vector<16x1xf32>
    %7 = arith.maximumf %5, %6 : vector<16x1xf32>
    %8 = math.rsqrt %7 : vector<16x1xf32>
    %9 = vector.broadcast %8 : vector<16x1xf32> to vector<16x32xf32>
    %10 = arith.mulf %0, %9 : vector<16x32xf32>
    %c0_3 = arith.constant 0 : index
    %c0_4 = arith.constant 0 : index
    %11 = vector.load %arg3[%c0_3, %c0_4] : memref<1x32xf32, #tpu.memory_space<vmem>>, vector<1x32xf32>
    %12 = vector.broadcast %11 : vector<1x32xf32> to vector<16x32xf32>
    %13 = arith.mulf %10, %12 : vector<16x32xf32>
    %14 = arith.truncf %13 : vector<16x32xf32> to vector<16x32xbf16>
    %c0_5 = arith.constant 0 : index
    %c0_6 = arith.constant 0 : index
    %15 = vector.load %arg4[%c0_5, %c0_6] : memref<32x64xbf16, #tpu.memory_space<vmem>>, vector<32x64xbf16>
    %cst_7 = arith.constant dense<0.000000e+00> : vector<16x64xf32>
    %16 = tpu.matmul %14, %15, %cst_7 {dimension_numbers = #tpu.dot_dimension_numbers<[1], [0], [0], [1], [0, 0, 1, 1], [], []>} : vector<16x32xbf16>, vector<32x64xbf16>, vector<16x64xf32> -> vector<16x64xf32>
    %17 = arith.truncf %16 : vector<16x64xf32> to vector<16x64xbf16>
    %c0_8 = arith.constant 0 : index
    %c0_9 = arith.constant 0 : index
    %18 = vector.load %arg5[%c0_8, %c0_9] : memref<16x64xbf16, #tpu.memory_space<vmem>>, vector<16x64xbf16>
    tpu.vector_store %arg5[%c0_8, %c0_9], %17 {strides = array<i32>} : memref<16x64xbf16, #tpu.memory_space<vmem>>, vector<16x64xbf16>,
    return
  }
  func.func @transform_0(%arg0: i32, %arg1: i32) -> (i32, i32) {
    %c0_i32 = arith.constant 0 : i32
    %c0_i32_0 = arith.constant 0 : i32
    return %arg0, %c0_i32 : i32, i32
  }
  func.func @transform_1(%arg0: i32, %arg1: i32) -> (i32, i32) {
    %c0_i32 = arith.constant 0 : i32
    %c0_i32_0 = arith.constant 0 : i32
    %c0_i32_1 = arith.constant 0 : i32
    return %c0_i32, %c0_i32_0 : i32, i32
  }
  func.func @transform_2(%arg0: i32, %arg1: i32) -> (i32, i32) {
    %c0_i32 = arith.constant 0 : i32
    %c0_i32_0 = arith.constant 0 : i32
    return %c0_i32, %arg1 : i32, i32
  }
  func.func @transform_3(%arg0: i32, %arg1: i32) -> (i32, i32) {
    %c0_i32 = arith.constant 0 : i32
    return %arg0, %arg1 : i32, i32
  }
}

module attributes {stable_mosaic.version = 11 : i64} {
  func.func @_linear_kernel(%arg0: i32, %arg1: i32, %arg2: i32, %arg3: memref<32x32xbf16, #tpu.memory_space<vmem>>, %arg4: memref<32x128xbf16, #tpu.memory_space<vmem>>, %arg5: memref<1x128xf32, #tpu.memory_space<vmem>>, %arg6: memref<32x128xbf16, #tpu.memory_space<vmem>>, %arg7: memref<32x128xf32, #tpu.memory_space<vmem>>) attributes {dimension_semantics = [#tpu.dimension_semantics<parallel>, #tpu.dimension_semantics<parallel>, #tpu.dimension_semantics<arbitrary>], iteration_bounds = array<i64: 1, 1, 1>, scalar_prefetch = 0 : i64, scratch_operands = 1 : i64, tpu.core_type = #tpu.core_type<tc>, window_params = [{transform_indices = @transform_0, window_bounds = array<i64: 32, 32>}, {transform_indices = @transform_1, window_bounds = array<i64: 32, 128>}, {transform_indices = @transform_2, window_bounds = array<i64: 1, 128>}, {transform_indices = @transform_3, window_bounds = array<i64: 32, 128>}]} {
    %c0_i32 = arith.constant 0 : i32
    %0 = arith.cmpi eq, %arg2, %c0_i32 : i32
    %1 = arith.extui %0 : i1 to i32
    %c0_i32_0 = arith.constant 0 : i32
    %2 = arith.cmpi ne, %1, %c0_i32_0 : i32
    scf.if %2 {
      %cst_10 = arith.constant 0.000000e+00 : f32
      %12 = vector.broadcast %cst_10 : f32 to vector<32x128xf32>
      %c0_11 = arith.constant 0 : index
      %c0_12 = arith.constant 0 : index
      %13 = vector.load %arg7[%c0_11, %c0_12] : memref<32x128xf32, #tpu.memory_space<vmem>>, vector<32x128xf32>
      tpu.vector_store %arg7[%c0_11, %c0_12], %12 {strides = array<i32>} : memref<32x128xf32, #tpu.memory_space<vmem>>, vector<32x128xf32>,
    } else {
    }
    %c0 = arith.constant 0 : index
    %c0_1 = arith.constant 0 : index
    %3 = vector.load %arg7[%c0, %c0_1] : memref<32x128xf32, #tpu.memory_space<vmem>>, vector<32x128xf32>
    %c0_2 = arith.constant 0 : index
    %c0_3 = arith.constant 0 : index
    %4 = vector.load %arg3[%c0_2, %c0_3] : memref<32x32xbf16, #tpu.memory_space<vmem>>, vector<32x32xbf16>
    %c0_4 = arith.constant 0 : index
    %c0_5 = arith.constant 0 : index
    %5 = vector.load %arg4[%c0_4, %c0_5] : memref<32x128xbf16, #tpu.memory_space<vmem>>, vector<32x128xbf16>
    %cst = arith.constant dense<0.000000e+00> : vector<32x128xf32>
    %6 = tpu.matmul %4, %5, %cst {dimension_numbers = #tpu.dot_dimension_numbers<[1], [0], [0], [1], [0, 0, 1, 1], [], []>} : vector<32x32xbf16>, vector<32x128xbf16>, vector<32x128xf32> -> vector<32x128xf32>
    %7 = arith.addf %3, %6 : vector<32x128xf32>
    %c0_6 = arith.constant 0 : index
    %c0_7 = arith.constant 0 : index
    %8 = vector.load %arg7[%c0_6, %c0_7] : memref<32x128xf32, #tpu.memory_space<vmem>>, vector<32x128xf32>
    tpu.vector_store %arg7[%c0_6, %c0_7], %7 {strides = array<i32>} : memref<32x128xf32, #tpu.memory_space<vmem>>, vector<32x128xf32>,
    %c0_i32_8 = arith.constant 0 : i32
    %9 = arith.cmpi eq, %arg2, %c0_i32_8 : i32
    %10 = arith.extui %9 : i1 to i32
    %c0_i32_9 = arith.constant 0 : i32
    %11 = arith.cmpi ne, %10, %c0_i32_9 : i32
    scf.if %11 {
      %c0_10 = arith.constant 0 : index
      %c0_11 = arith.constant 0 : index
      %12 = vector.load %arg7[%c0_10, %c0_11] : memref<32x128xf32, #tpu.memory_space<vmem>>, vector<32x128xf32>
      %c0_12 = arith.constant 0 : index
      %c0_13 = arith.constant 0 : index
      %13 = vector.load %arg5[%c0_12, %c0_13] : memref<1x128xf32, #tpu.memory_space<vmem>>, vector<1x128xf32>
      %14 = vector.broadcast %13 : vector<1x128xf32> to vector<32x128xf32>
      %15 = arith.addf %12, %14 : vector<32x128xf32>
      %16 = arith.truncf %15 : vector<32x128xf32> to vector<32x128xbf16>
      %c0_14 = arith.constant 0 : index
      %c0_15 = arith.constant 0 : index
      %17 = vector.load %arg6[%c0_14, %c0_15] : memref<32x128xbf16, #tpu.memory_space<vmem>>, vector<32x128xbf16>
      tpu.vector_store %arg6[%c0_14, %c0_15], %16 {strides = array<i32>} : memref<32x128xbf16, #tpu.memory_space<vmem>>, vector<32x128xbf16>,
    } else {
    }
    return
  }
  func.func @transform_0(%arg0: i32, %arg1: i32, %arg2: i32) -> (i32, i32) {
    %c0_i32 = arith.constant 0 : i32
    return %arg0, %arg2 : i32, i32
  }
  func.func @transform_1(%arg0: i32, %arg1: i32, %arg2: i32) -> (i32, i32) {
    %c0_i32 = arith.constant 0 : i32
    return %arg2, %arg1 : i32, i32
  }
  func.func @transform_2(%arg0: i32, %arg1: i32, %arg2: i32) -> (i32, i32) {
    %c0_i32 = arith.constant 0 : i32
    %c0_i32_0 = arith.constant 0 : i32
    return %c0_i32, %arg1 : i32, i32
  }
  func.func @transform_3(%arg0: i32, %arg1: i32, %arg2: i32) -> (i32, i32) {
    %c0_i32 = arith.constant 0 : i32
    return %arg0, %arg1 : i32, i32
  }
}

module attributes {stable_mosaic.version = 11 : i64} {
  func.func @_ff_kernel(%arg0: i32, %arg1: memref<16x32xf32, #tpu.memory_space<vmem>>, %arg2: memref<1x32xf32, #tpu.memory_space<vmem>>, %arg3: memref<32x128xbf16, #tpu.memory_space<vmem>>, %arg4: memref<1x128xf32, #tpu.memory_space<vmem>>, %arg5: memref<128x32xbf16, #tpu.memory_space<vmem>>, %arg6: memref<1x32xf32, #tpu.memory_space<vmem>>, %arg7: memref<16x32xf32, #tpu.memory_space<vmem>>) attributes {dimension_semantics = [#tpu.dimension_semantics<parallel>], iteration_bounds = array<i64: 1>, scalar_prefetch = 0 : i64, scratch_operands = 0 : i64, tpu.core_type = #tpu.core_type<tc>, window_params = [{transform_indices = @transform_0, window_bounds = array<i64: 16, 32>}, {pipeline_mode = #tpu.pipeline_mode<synchronous>, transform_indices = @transform_1, window_bounds = array<i64: 1, 32>}, {pipeline_mode = #tpu.pipeline_mode<synchronous>, transform_indices = @transform_2, window_bounds = array<i64: 32, 128>}, {pipeline_mode = #tpu.pipeline_mode<synchronous>, transform_indices = @transform_3, window_bounds = array<i64: 1, 128>}, {pipeline_mode = #tpu.pipeline_mode<synchronous>, transform_indices = @transform_4, window_bounds = array<i64: 128, 32>}, {pipeline_mode = #tpu.pipeline_mode<synchronous>, transform_indices = @transform_5, window_bounds = array<i64: 1, 32>}, {transform_indices = @transform_6, window_bounds = array<i64: 16, 32>}]} {
    %c0 = arith.constant 0 : index
    %c0_0 = arith.constant 0 : index
    %0 = vector.load %arg1[%c0, %c0_0] : memref<16x32xf32, #tpu.memory_space<vmem>>, vector<16x32xf32>
    %1 = arith.mulf %0, %0 : vector<16x32xf32>
    %cst = arith.constant dense<0.000000e+00> : vector<16xf32>
    %2 = vector.multi_reduction <add>, %1, %cst [1] : vector<16x32xf32> to vector<16xf32>
    %3 = vector.shape_cast %2 : vector<16xf32> to vector<16x1xf32>
    %cst_1 = arith.constant 3.125000e-02 : f32
    %4 = vector.broadcast %cst_1 : f32 to vector<16x1xf32>
    %5 = arith.mulf %3, %4 : vector<16x1xf32>
    %cst_2 = arith.constant 1.000000e-16 : f32
    %6 = vector.broadcast %cst_2 : f32 to vector<16x1xf32>
    %7 = arith.maximumf %5, %6 : vector<16x1xf32>
    %8 = math.rsqrt %7 : vector<16x1xf32>
    %9 = vector.broadcast %8 : vector<16x1xf32> to vector<16x32xf32>
    %10 = arith.mulf %0, %9 : vector<16x32xf32>
    %c0_3 = arith.constant 0 : index
    %c0_4 = arith.constant 0 : index
    %11 = vector.load %arg2[%c0_3, %c0_4] : memref<1x32xf32, #tpu.memory_space<vmem>>, vector<1x32xf32>
    %12 = vector.broadcast %11 : vector<1x32xf32> to vector<16x32xf32>
    %13 = arith.mulf %10, %12 : vector<16x32xf32>
    %14 = arith.truncf %13 : vector<16x32xf32> to vector<16x32xbf16>
    %c0_5 = arith.constant 0 : index
    %c0_6 = arith.constant 0 : index
    %15 = vector.load %arg3[%c0_5, %c0_6] : memref<32x128xbf16, #tpu.memory_space<vmem>>, vector<32x128xbf16>
    %cst_7 = arith.constant dense<0.000000e+00> : vector<16x128xf32>
    %16 = tpu.matmul %14, %15, %cst_7 {dimension_numbers = #tpu.dot_dimension_numbers<[1], [0], [0], [1], [0, 0, 1, 1], [], []>} : vector<16x32xbf16>, vector<32x128xbf16>, vector<16x128xf32> -> vector<16x128xf32>
    %c0_8 = arith.constant 0 : index
    %c0_9 = arith.constant 0 : index
    %17 = vector.load %arg4[%c0_8, %c0_9] : memref<1x128xf32, #tpu.memory_space<vmem>>, vector<1x128xf32>
    %18 = vector.broadcast %17 : vector<1x128xf32> to vector<16x128xf32>
    %19 = arith.addf %16, %18 : vector<16x128xf32>
    %cst_10 = arith.constant 5.000000e-01 : f32
    %20 = vector.broadcast %cst_10 : f32 to vector<16x128xf32>
    %21 = arith.mulf %20, %19 : vector<16x128xf32>
    %22 = arith.mulf %19, %19 : vector<16x128xf32>
    %23 = arith.mulf %22, %19 : vector<16x128xf32>
    %cst_11 = arith.constant 4.471500e-02 : f32
    %24 = vector.broadcast %cst_11 : f32 to vector<16x128xf32>
    %25 = arith.mulf %24, %23 : vector<16x128xf32>
    %26 = arith.addf %19, %25 : vector<16x128xf32>
    %cst_12 = arith.constant 0.797884583 : f32
    %27 = vector.broadcast %cst_12 : f32 to vector<16x128xf32>
    %28 = arith.mulf %27, %26 : vector<16x128xf32>
    %29 = math.tanh %28 : vector<16x128xf32>
    %cst_13 = arith.constant 1.000000e+00 : f32
    %30 = vector.broadcast %cst_13 : f32 to vector<16x128xf32>
    %31 = arith.addf %30, %29 : vector<16x128xf32>
    %32 = arith.mulf %21, %31 : vector<16x128xf32>
    %33 = arith.truncf %32 : vector<16x128xf32> to vector<16x128xbf16>
    %c0_14 = arith.constant 0 : index
    %c0_15 = arith.constant 0 : index
    %34 = vector.load %arg5[%c0_14, %c0_15] : memref<128x32xbf16, #tpu.memory_space<vmem>>, vector<128x32xbf16>
    %cst_16 = arith.constant dense<0.000000e+00> : vector<16x32xf32>
    %35 = tpu.matmul %33, %34, %cst_16 {dimension_numbers = #tpu.dot_dimension_numbers<[1], [0], [0], [1], [0, 0, 1, 1], [], []>} : vector<16x128xbf16>, vector<128x32xbf16>, vector<16x32xf32> -> vector<16x32xf32>
    %c0_17 = arith.constant 0 : index
    %c0_18 = arith.constant 0 : index
    %36 = vector.load %arg6[%c0_17, %c0_18] : memref<1x32xf32, #tpu.memory_space<vmem>>, vector<1x32xf32>
    %37 = vector.broadcast %36 : vector<1x32xf32> to vector<16x32xf32>
    %38 = arith.addf %35, %37 : vector<16x32xf32>
    %c0_19 = arith.constant 0 : index
    %c0_20 = arith.constant 0 : index
    %39 = vector.load %arg7[%c0_19, %c0_20] : memref<16x32xf32, #tpu.memory_space<vmem>>, vector<16x32xf32>
    tpu.vector_store %arg7[%c0_19, %c0_20], %38 {strides = array<i32>} : memref<16x32xf32, #tpu.memory_space<vmem>>, vector<16x32xf32>,
    return
  }
  func.func @transform_0(%arg0: i32) -> (i32, i32) {
    %c0_i32 = arith.constant 0 : i32
    %c0_i32_0 = arith.constant 0 : i32
    return %arg0, %c0_i32 : i32, i32
  }
  func.func @transform_1(%arg0: i32) -> (i32, i32) {
    %c0_i32 = arith.constant 0 : i32
    %c0_i32_0 = arith.constant 0 : i32
    %c0_i32_1 = arith.constant 0 : i32
    return %c0_i32, %c0_i32_0 : i32, i32
  }
  func.func @transform_2(%arg0: i32) -> (i32, i32) {
    %c0_i32 = arith.constant 0 : i32
    %c0_i32_0 = arith.constant 0 : i32
    %c0_i32_1 = arith.constant 0 : i32
    return %c0_i32, %c0_i32_0 : i32, i32
  }
  func.func @transform_3(%arg0: i32) -> (i32, i32) {
    %c0_i32 = arith.constant 0 : i32
    %c0_i32_0 = arith.constant 0 : i32
    %c0_i32_1 = arith.constant 0 : i32
    return %c0_i32, %c0_i32_0 : i32, i32
  }
  func.func @transform_4(%arg0: i32) -> (i32, i32) {
    %c0_i32 = arith.constant 0 : i32
    %c0_i32_0 = arith.constant 0 : i32
    %c0_i32_1 = arith.constant 0 : i32
    return %c0_i32, %c0_i32_0 : i32, i32
  }
  func.func @transform_5(%arg0: i32) -> (i32, i32) {
    %c0_i32 = arith.constant 0 : i32
    %c0_i32_0 = arith.constant 0 : i32
    %c0_i32_1 = arith.constant 0 : i32
    return %c0_i32, %c0_i32_0 : i32, i32
  }
  func.func @transform_6(%arg0: i32) -> (i32, i32) {
    %c0_i32 = arith.constant 0 : i32
    %c0_i32_0 = arith.constant 0 : i32
    return %arg0, %c0_i32 : i32, i32
  }
}

module attributes {stable_mosaic.version = 11 : i64} {
  func.func @_attn_cross_kernel(%arg0: i32, %arg1: memref<1x8x64xbf16, #tpu.memory_space<vmem>>, %arg2: memref<1x16x128xbf16, #tpu.memory_space<vmem>>, %arg3: memref<8x32xf32, #tpu.memory_space<vmem>>, %arg4: memref<8x32xf32, #tpu.memory_space<vmem>>, %arg5: memref<16x32xf32, #tpu.memory_space<vmem>>, %arg6: memref<16x32xf32, #tpu.memory_space<vmem>>, %arg7: memref<1x8x64xbf16, #tpu.memory_space<vmem>>) attributes {dimension_semantics = [#tpu.dimension_semantics<parallel>], iteration_bounds = array<i64: 2>, scalar_prefetch = 0 : i64, scratch_operands = 0 : i64, tpu.core_type = #tpu.core_type<tc>, window_params = [{transform_indices = @transform_0, window_bounds = array<i64: 1, 8, 64>}, {transform_indices = @transform_1, window_bounds = array<i64: 1, 16, 128>}, {pipeline_mode = #tpu.pipeline_mode<synchronous>, transform_indices = @transform_2, window_bounds = array<i64: 8, 32>}, {pipeline_mode = #tpu.pipeline_mode<synchronous>, transform_indices = @transform_3, window_bounds = array<i64: 8, 32>}, {pipeline_mode = #tpu.pipeline_mode<synchronous>, transform_indices = @transform_4, window_bounds = array<i64: 16, 32>}, {pipeline_mode = #tpu.pipeline_mode<synchronous>, transform_indices = @transform_5, window_bounds = array<i64: 16, 32>}, {transform_indices = @transform_6, window_bounds = array<i64: 1, 8, 64>}]} {
    %c0 = arith.constant 0 : index
    %c0_0 = arith.constant 0 : index
    %c0_1 = arith.constant 0 : index
    %0 = vector.load %arg1[%c0, %c0_0, %c0_1] : memref<1x8x64xbf16, #tpu.memory_space<vmem>>, vector<1x8x64xbf16>
    %1 = vector.shape_cast %0 : vector<1x8x64xbf16> to vector<8x64xbf16>
    %c0_2 = arith.constant 0 : index
    %c0_3 = arith.constant 0 : index
    %c0_4 = arith.constant 0 : index
    %2 = vector.load %arg2[%c0_2, %c0_3, %c0_4] : memref<1x16x128xbf16, #tpu.memory_space<vmem>>, vector<1x16x128xbf16>
    %3 = vector.shape_cast %2 : vector<1x16x128xbf16> to vector<16x128xbf16>
    %c0_5 = arith.constant 0 : index
    %c0_6 = arith.constant 0 : index
    %4 = vector.load %arg3[%c0_5, %c0_6] : memref<8x32xf32, #tpu.memory_space<vmem>>, vector<8x32xf32>
    %c0_7 = arith.constant 0 : index
    %c0_8 = arith.constant 0 : index
    %5 = vector.load %arg4[%c0_7, %c0_8] : memref<8x32xf32, #tpu.memory_space<vmem>>, vector<8x32xf32>
    %c0_9 = arith.constant 0 : index
    %c0_10 = arith.constant 0 : index
    %6 = vector.load %arg5[%c0_9, %c0_10] : memref<16x32xf32, #tpu.memory_space<vmem>>, vector<16x32xf32>
    %c0_11 = arith.constant 0 : index
    %c0_12 = arith.constant 0 : index
    %7 = vector.load %arg6[%c0_11, %c0_12] : memref<16x32xf32, #tpu.memory_space<vmem>>, vector<16x32xf32>
    %8 = vector.extract_strided_slice %1 {offsets = [0, 0], sizes = [8, 32], strides = [1, 1]} : vector<8x64xbf16> to vector<8x32xbf16>
    %9 = vector.extract_strided_slice %8 {offsets = [0, 16], sizes = [8, 16], strides = [1, 1]} : vector<8x32xbf16> to vector<8x16xbf16>
    %cst = arith.constant 0.000000e+00 : bf16
    %10 = vector.broadcast %cst : bf16 to vector<8x16xbf16>
    %11 = arith.subf %10, %9 : vector<8x16xbf16>
    %12 = vector.extract_strided_slice %8 {offsets = [0, 0], sizes = [8, 16], strides = [1, 1]} : vector<8x32xbf16> to vector<8x16xbf16>
    %13 = tpu.concatenate %11, %12 in 1 : vector<8x16xbf16>, vector<8x16xbf16> -> vector<8x32xbf16>
    %14 = arith.extf %8 : vector<8x32xbf16> to vector<8x32xf32>
    %15 = arith.mulf %14, %4 : vector<8x32xf32>
    %16 = arith.extf %13 : vector<8x32xbf16> to vector<8x32xf32>
    %17 = arith.mulf %16, %5 : vector<8x32xf32>
    %18 = arith.addf %15, %17 : vector<8x32xf32>
    %19 = arith.truncf %18 : vector<8x32xf32> to vector<8x32xbf16>
    %20 = vector.extract_strided_slice %3 {offsets = [0, 0], sizes = [16, 32], strides = [1, 1]} : vector<16x128xbf16> to vector<16x32xbf16>
    %21 = vector.extract_strided_slice %20 {offsets = [0, 16], sizes = [16, 16], strides = [1, 1]} : vector<16x32xbf16> to vector<16x16xbf16>
    %cst_13 = arith.constant 0.000000e+00 : bf16
    %22 = vector.broadcast %cst_13 : bf16 to vector<16x16xbf16>
    %23 = arith.subf %22, %21 : vector<16x16xbf16>
    %24 = vector.extract_strided_slice %20 {offsets = [0, 0], sizes = [16, 16], strides = [1, 1]} : vector<16x32xbf16> to vector<16x16xbf16>
    %25 = tpu.concatenate %23, %24 in 1 : vector<16x16xbf16>, vector<16x16xbf16> -> vector<16x32xbf16>
    %26 = arith.extf %20 : vector<16x32xbf16> to vector<16x32xf32>
    %27 = arith.mulf %26, %6 : vector<16x32xf32>
    %28 = arith.extf %25 : vector<16x32xbf16> to vector<16x32xf32>
    %29 = arith.mulf %28, %7 : vector<16x32xf32>
    %30 = arith.addf %27, %29 : vector<16x32xf32>
    %31 = arith.truncf %30 : vector<16x32xf32> to vector<16x32xbf16>
    %32 = vector.extract_strided_slice %3 {offsets = [0, 64], sizes = [16, 32], strides = [1, 1]} : vector<16x128xbf16> to vector<16x32xbf16>
    %cst_14 = arith.constant dense<0.000000e+00> : vector<8x16xf32>
    %33 = tpu.matmul %19, %31, %cst_14 {dimension_numbers = #tpu.dot_dimension_numbers<[1], [1], [0], [0], [0, 0, 1, 0], [], []>} : vector<8x32xbf16>, vector<16x32xbf16>, vector<8x16xf32> -> vector<8x16xf32>
    %cst_15 = arith.constant dense<0xFF800000> : vector<8xf32>
    %34 = vector.multi_reduction <maximumf>, %33, %cst_15 [1] : vector<8x16xf32> to vector<8xf32>
    %35 = vector.shape_cast %34 : vector<8xf32> to vector<8x1xf32>
    %36 = vector.broadcast %35 : vector<8x1xf32> to vector<8x16xf32>
    %37 = arith.subf %33, %36 : vector<8x16xf32>
    %38 = math.exp %37 : vector<8x16xf32>
    %cst_16 = arith.constant dense<0.000000e+00> : vector<8xf32>
    %39 = vector.multi_reduction <add>, %38, %cst_16 [1] : vector<8x16xf32> to vector<8xf32>
    %40 = vector.shape_cast %39 : vector<8xf32> to vector<8x1xf32>
    %41 = arith.truncf %38 : vector<8x16xf32> to vector<8x16xbf16>
    %cst_17 = arith.constant dense<0.000000e+00> : vector<8x32xf32>
    %42 = tpu.matmul %41, %32, %cst_17 {dimension_numbers = #tpu.dot_dimension_numbers<[1], [0], [0], [1], [0, 0, 1, 1], [], []>} : vector<8x16xbf16>, vector<16x32xbf16>, vector<8x32xf32> -> vector<8x32xf32>
    %43 = tpu.reciprocal %40 {approx = true} : vector<8x1xf32> -> vector<8x1xf32>
    %44 = vector.broadcast %43 : vector<8x1xf32> to vector<8x32xf32>
    %45 = arith.mulf %42, %44 : vector<8x32xf32>
    %46 = vector.extract_strided_slice %1 {offsets = [0, 32], sizes = [8, 32], strides = [1, 1]} : vector<8x64xbf16> to vector<8x32xbf16>
    %47 = vector.extract_strided_slice %46 {offsets = [0, 16], sizes = [8, 16], strides = [1, 1]} : vector<8x32xbf16> to vector<8x16xbf16>
    %cst_18 = arith.constant 0.000000e+00 : bf16
    %48 = vector.broadcast %cst_18 : bf16 to vector<8x16xbf16>
    %49 = arith.subf %48, %47 : vector<8x16xbf16>
    %50 = vector.extract_strided_slice %46 {offsets = [0, 0], sizes = [8, 16], strides = [1, 1]} : vector<8x32xbf16> to vector<8x16xbf16>
    %51 = tpu.concatenate %49, %50 in 1 : vector<8x16xbf16>, vector<8x16xbf16> -> vector<8x32xbf16>
    %52 = arith.extf %46 : vector<8x32xbf16> to vector<8x32xf32>
    %53 = arith.mulf %52, %4 : vector<8x32xf32>
    %54 = arith.extf %51 : vector<8x32xbf16> to vector<8x32xf32>
    %55 = arith.mulf %54, %5 : vector<8x32xf32>
    %56 = arith.addf %53, %55 : vector<8x32xf32>
    %57 = arith.truncf %56 : vector<8x32xf32> to vector<8x32xbf16>
    %58 = vector.extract_strided_slice %3 {offsets = [0, 32], sizes = [16, 32], strides = [1, 1]} : vector<16x128xbf16> to vector<16x32xbf16>
    %59 = vector.extract_strided_slice %58 {offsets = [0, 16], sizes = [16, 16], strides = [1, 1]} : vector<16x32xbf16> to vector<16x16xbf16>
    %cst_19 = arith.constant 0.000000e+00 : bf16
    %60 = vector.broadcast %cst_19 : bf16 to vector<16x16xbf16>
    %61 = arith.subf %60, %59 : vector<16x16xbf16>
    %62 = vector.extract_strided_slice %58 {offsets = [0, 0], sizes = [16, 16], strides = [1, 1]} : vector<16x32xbf16> to vector<16x16xbf16>
    %63 = tpu.concatenate %61, %62 in 1 : vector<16x16xbf16>, vector<16x16xbf16> -> vector<16x32xbf16>
    %64 = arith.extf %58 : vector<16x32xbf16> to vector<16x32xf32>
    %65 = arith.mulf %64, %6 : vector<16x32xf32>
    %66 = arith.extf %63 : vector<16x32xbf16> to vector<16x32xf32>
    %67 = arith.mulf %66, %7 : vector<16x32xf32>
    %68 = arith.addf %65, %67 : vector<16x32xf32>
    %69 = arith.truncf %68 : vector<16x32xf32> to vector<16x32xbf16>
    %70 = vector.extract_strided_slice %3 {offsets = [0, 96], sizes = [16, 32], strides = [1, 1]} : vector<16x128xbf16> to vector<16x32xbf16>
    %cst_20 = arith.constant dense<0.000000e+00> : vector<8x16xf32>
    %71 = tpu.matmul %57, %69, %cst_20 {dimension_numbers = #tpu.dot_dimension_numbers<[1], [1], [0], [0], [0, 0, 1, 0], [], []>} : vector<8x32xbf16>, vector<16x32xbf16>, vector<8x16xf32> -> vector<8x16xf32>
    %cst_21 = arith.constant dense<0xFF800000> : vector<8xf32>
    %72 = vector.multi_reduction <maximumf>, %71, %cst_21 [1] : vector<8x16xf32> to vector<8xf32>
    %73 = vector.shape_cast %72 : vector<8xf32> to vector<8x1xf32>
    %74 = vector.broadcast %73 : vector<8x1xf32> to vector<8x16xf32>
    %75 = arith.subf %71, %74 : vector<8x16xf32>
    %76 = math.exp %75 : vector<8x16xf32>
    %cst_22 = arith.constant dense<0.000000e+00> : vector<8xf32>
    %77 = vector.multi_reduction <add>, %76, %cst_22 [1] : vector<8x16xf32> to vector<8xf32>
    %78 = vector.shape_cast %77 : vector<8xf32> to vector<8x1xf32>
    %79 = arith.truncf %76 : vector<8x16xf32> to vector<8x16xbf16>
    %cst_23 = arith.constant dense<0.000000e+00> : vector<8x32xf32>
    %80 = tpu.matmul %79, %70, %cst_23 {dimension_numbers = #tpu.dot_dimension_numbers<[1], [0], [0], [1], [0, 0, 1, 1], [], []>} : vector<8x16xbf16>, vector<16x32xbf16>, vector<8x32xf32> -> vector<8x32xf32>
    %81 = tpu.reciprocal %78 {approx = true} : vector<8x1xf32> -> vector<8x1xf32>
    %82 = vector.broadcast %81 : vector<8x1xf32> to vector<8x32xf32>
    %83 = arith.mulf %80, %82 : vector<8x32xf32>
    %84 = tpu.concatenate %45, %83 in 1 : vector<8x32xf32>, vector<8x32xf32> -> vector<8x64xf32>
    %85 = arith.truncf %84 : vector<8x64xf32> to vector<8x64xbf16>
    %c0_24 = arith.constant 0 : index
    %c0_25 = arith.constant 0 : index
    %c0_26 = arith.constant 0 : index
    %86 = vector.load %arg7[%c0_24, %c0_25, %c0_26] : memref<1x8x64xbf16, #tpu.memory_space<vmem>>, vector<1x8x64xbf16>
    %87 = vector.shape_cast %86 : vector<1x8x64xbf16> to vector<8x64xbf16>
    %88 = vector.shape_cast %85 : vector<8x64xbf16> to vector<1x8x64xbf16>
    tpu.vector_store %arg7[%c0_24, %c0_25, %c0_26], %88 {strides = array<i32>} : memref<1x8x64xbf16, #tpu.memory_space<vmem>>, vector<1x8x64xbf16>,
    return
  }
  func.func @transform_0(%arg0: i32) -> (i32, i32, i32) {
    %c0_i32 = arith.constant 0 : i32
    %c0_i32_0 = arith.constant 0 : i32
    %c0_i32_1 = arith.constant 0 : i32
    return %arg0, %c0_i32, %c0_i32_0 : i32, i32, i32
  }
  func.func @transform_1(%arg0: i32) -> (i32, i32, i32) {
    %c0_i32 = arith.constant 0 : i32
    %c0_i32_0 = arith.constant 0 : i32
    %c0_i32_1 = arith.constant 0 : i32
    return %arg0, %c0_i32, %c0_i32_0 : i32, i32, i32
  }
  func.func @transform_2(%arg0: i32) -> (i32, i32) {
    %c0_i32 = arith.constant 0 : i32
    %c0_i32_0 = arith.constant 0 : i32
    %c0_i32_1 = arith.constant 0 : i32
    return %c0_i32, %c0_i32_0 : i32, i32
  }
  func.func @transform_3(%arg0: i32) -> (i32, i32) {
    %c0_i32 = arith.constant 0 : i32
    %c0_i32_0 = arith.constant 0 : i32
    %c0_i32_1 = arith.constant 0 : i32
    return %c0_i32, %c0_i32_0 : i32, i32
  }
  func.func @transform_4(%arg0: i32) -> (i32, i32) {
    %c0_i32 = arith.constant 0 : i32
    %c0_i32_0 = arith.constant 0 : i32
    %c0_i32_1 = arith.constant 0 : i32
    return %c0_i32, %c0_i32_0 : i32, i32
  }
  func.func @transform_5(%arg0: i32) -> (i32, i32) {
    %c0_i32 = arith.constant 0 : i32
    %c0_i32_0 = arith.constant 0 : i32
    %c0_i32_1 = arith.constant 0 : i32
    return %c0_i32, %c0_i32_0 : i32, i32
  }
  func.func @transform_6(%arg0: i32) -> (i32, i32, i32) {
    %c0_i32 = arith.constant 0 : i32
    %c0_i32_0 = arith.constant 0 : i32
    %c0_i32_1 = arith.constant 0 : i32
    return %arg0, %c0_i32, %c0_i32_0 : i32, i32, i32
  }
}

module attributes {stable_mosaic.version = 11 : i64} {
  func.func @_rmsnorm_kernel(%arg0: i32, %arg1: memref<16x32xf32, #tpu.memory_space<vmem>>, %arg2: memref<1x32xf32, #tpu.memory_space<vmem>>, %arg3: memref<16x32xf32, #tpu.memory_space<vmem>>) attributes {dimension_semantics = [#tpu.dimension_semantics<parallel>], iteration_bounds = array<i64: 1>, scalar_prefetch = 0 : i64, scratch_operands = 0 : i64, tpu.core_type = #tpu.core_type<tc>, window_params = [{transform_indices = @transform_0, window_bounds = array<i64: 16, 32>}, {pipeline_mode = #tpu.pipeline_mode<synchronous>, transform_indices = @transform_1, window_bounds = array<i64: 1, 32>}, {transform_indices = @transform_2, window_bounds = array<i64: 16, 32>}]} {
    %c0 = arith.constant 0 : index
    %c0_0 = arith.constant 0 : index
    %0 = vector.load %arg1[%c0, %c0_0] : memref<16x32xf32, #tpu.memory_space<vmem>>, vector<16x32xf32>
    %1 = arith.mulf %0, %0 : vector<16x32xf32>
    %cst = arith.constant dense<0.000000e+00> : vector<16xf32>
    %2 = vector.multi_reduction <add>, %1, %cst [1] : vector<16x32xf32> to vector<16xf32>
    %3 = vector.shape_cast %2 : vector<16xf32> to vector<16x1xf32>
    %cst_1 = arith.constant 3.125000e-02 : f32
    %4 = vector.broadcast %cst_1 : f32 to vector<16x1xf32>
    %5 = arith.mulf %3, %4 : vector<16x1xf32>
    %cst_2 = arith.constant 1.000000e-16 : f32
    %6 = vector.broadcast %cst_2 : f32 to vector<16x1xf32>
    %7 = arith.maximumf %5, %6 : vector<16x1xf32>
    %8 = math.rsqrt %7 : vector<16x1xf32>
    %9 = vector.broadcast %8 : vector<16x1xf32> to vector<16x32xf32>
    %10 = arith.mulf %0, %9 : vector<16x32xf32>
    %c0_3 = arith.constant 0 : index
    %c0_4 = arith.constant 0 : index
    %11 = vector.load %arg2[%c0_3, %c0_4] : memref<1x32xf32, #tpu.memory_space<vmem>>, vector<1x32xf32>
    %12 = vector.broadcast %11 : vector<1x32xf32> to vector<16x32xf32>
    %13 = arith.mulf %10, %12 : vector<16x32xf32>
    %c0_5 = arith.constant 0 : index
    %c0_6 = arith.constant 0 : index
    %14 = vector.load %arg3[%c0_5, %c0_6] : memref<16x32xf32, #tpu.memory_space<vmem>>, vector<16x32xf32>
    tpu.vector_store %arg3[%c0_5, %c0_6], %13 {strides = array<i32>} : memref<16x32xf32, #tpu.memory_space<vmem>>, vector<16x32xf32>,
    return
  }
  func.func @transform_0(%arg0: i32) -> (i32, i32) {
    %c0_i32 = arith.constant 0 : i32
    %c0_i32_0 = arith.constant 0 : i32
    return %arg0, %c0_i32 : i32, i32
  }
  func.func @transform_1(%arg0: i32) -> (i32, i32) {
    %c0_i32 = arith.constant 0 : i32
    %c0_i32_0 = arith.constant 0 : i32
    %c0_i32_1 = arith.constant 0 : i32
    return %c0_i32, %c0_i32_0 : i32, i32
  }
  func.func @transform_2(%arg0: i32) -> (i32, i32) {
    %c0_i32 = arith.constant 0 : i32
    %c0_i32_0 = arith.constant 0 : i32
    return %arg0, %c0_i32 : i32, i32
  }
}

</mosaic_0001>

<llo_original>
// kernel: encoder_forward.20
$region0: #{encoder_forward.20}
  #allocation0 [shape = 'u32[]', space=smem, size = 0x4, offset = 0x4, fixed_abs, tag = 'smem constant byte address 0x4 - core index']
  #allocation1 [shape = 'u32[144,128]{1,0:T(1,128)}', space=vmem, size = 0x12000, scoped, tag = 'internal scratch']
  %s0 = inlined_call_operand.hbm [shape: f32[16,32], index: 0, kind: input, shape index: {}]
  %s1 = inlined_call_operand.hbm [shape: f32[1,32], index: 1, kind: input, shape index: {}]
  %s2 = inlined_call_operand.hbm [shape: bf16[32,64], index: 2, kind: input, shape index: {}]
  %s3 = inlined_call_operand.hbm [shape: bf16[16,64], index: 3, kind: output, shape index: {}]
  %s4 = sld [smem:[#allocation0]]
  $region34: #{encoder_forward.20} parent=0
    _
  %s6 = ssub.s32 1, %s4
  %s7 = scalar_select 0, %s6, %s4
  $region1: #{encoder_forward.20} parent=0
    #allocation2 [shape = 'u8[8192]{0}', space=vmem, size = 0x2000, scoped, tag = 'input window, operand 0, single buffered']
    #allocation3 [shape = 's32[1]{0}', space=sflag, size = 0x4, scoped, tag = 'scoped memory for encoder_forward.20']
    #allocation4 [shape = 's32[1]{0}', space=sflag, size = 0x4, scoped, tag = 'scoped memory for encoder_forward.20']
    #allocation5 [shape = 'u8[512]{0}', space=vmem, size = 0x400, scoped, tag = 'input window, operand 1, single buffered']
    #allocation6 [shape = 's32[1]{0}', space=sflag, size = 0x4, scoped, tag = 'scoped memory for encoder_forward.20']
    #allocation7 [shape = 'u8[8192]{0}', space=vmem, size = 0x2000, scoped, tag = 'input window, operand 2, single buffered']
    #allocation8 [shape = 'u8[4096]{0}', space=vmem, size = 0x1000, scoped, tag = 'output window, operand 0, single buffered']
    %8 = vsyncpa [#allocation3], 0
    %9 = vsyncpa [#allocation6], 0
    %10 = vsyncpa [#allocation4], 0
    // Predicated region
    $region2: #{encoder_forward.20} parent=1 // pred_check
      _
    $region3: #{encoder_forward.20} parent=1 // pred_check_branch
      %12 = sbr.rel (0) target = $region5
    $region4: #{encoder_forward.20} parent=1 // pred_region
      %s14 = ssub.s32 256, 256
      %15 = vsyncadd [#allocation3], %s14
      %s16 = sshll.u32 [#allocation2], 4
      %s17 = int_to_ptr.vmem [resolvable:$true] %s16
      %22 = dma.hbm_to_vmem [thread:$0]  %s0, 256, %s17, [#allocation3], 128, 128, 8
    $region5: #{encoder_forward.20} parent=1 // pred_fallthru
      _
    // Predicated region
    $region6: #{encoder_forward.20} parent=1 // pred_check
      _
    $region7: #{encoder_forward.20} parent=1 // pred_check_branch
      %24 = sbr.rel (0) target = $region9
    $region8: #{encoder_forward.20} parent=1 // pred_region
      %s26 = ssub.s32 16, 16
      %27 = vsyncadd [#allocation6], %s26
      %s29 = sshll.u32 [#allocation5], 4
      %s30 = int_to_ptr.vmem [resolvable:$true] %s29
      %32 = dma.hbm_to_vmem [thread:$0]  %s1, 16, %s30, [#allocation6]
    $region9: #{encoder_forward.20} parent=1 // pred_fallthru
      _
    // Predicated region
    $region10: #{encoder_forward.20} parent=1 // pred_check
      _
    $region11: #{encoder_forward.20} parent=1 // pred_check_branch
      %34 = sbr.rel (0) target = $region13
    $region12: #{encoder_forward.20} parent=1 // pred_region
      %s36 = ssub.s32 256, 256
      %37 = vsyncadd [#allocation6], %s36
      %s38 = sshll.u32 [#allocation7], 4
      %s39 = int_to_ptr.vmem [resolvable:$true] %s38
      %44 = dma.hbm_to_vmem [thread:$0]  %s2, 256, %s39, [#allocation6], 64, 64, 4
    $region13: #{encoder_forward.20} parent=1 // pred_fallthru
      _
    // Predicated region
    $region14: #{encoder_forward.20} parent=1 // pred_check
      _
    $region15: #{encoder_forward.20} parent=1 // pred_check_branch
      %46 = sbr.rel (0) target = $region17
    $region16: #{encoder_forward.20} parent=1 // pred_region
      %47 = dma.done [#allocation3], 256
    $region17: #{encoder_forward.20} parent=1 // pred_fallthru
      _
    // Predicated region
    $region18: #{encoder_forward.20} parent=1 // pred_check
      _
    $region19: #{encoder_forward.20} parent=1 // pred_check_branch
      %49 = sbr.rel (0) target = $region21
    $region20: #{encoder_forward.20} parent=1 // pred_region
      %50 = dma.done [#allocation6], 16
    $region21: #{encoder_forward.20} parent=1 // pred_fallthru
      _
    // Predicated region
    $region22: #{encoder_forward.20} parent=1 // pred_check
      _
    $region23: #{encoder_forward.20} parent=1 // pred_check_branch
      %52 = sbr.rel (0) target = $region25
    $region24: #{encoder_forward.20} parent=1 // pred_region
      %53 = dma.done [#allocation6], 256
    $region25: #{encoder_forward.20} parent=1 // pred_fallthru
      _
    %v55 = vld [vmem:[#allocation2] sm:$0xff]
    %v56 = vld [vmem:[#allocation2 + $0x8] sm:$0xff]
    %v57 = vmul.f32 %v55, %v55
    %v58 = vmul.f32 %v56, %v56
    %vm59 = vcmask 261120
    %v60 = vsel %vm59, %v57, 0.0
    %61 = vadd.xlane.f32.xlu0 %v60
    %v62 = vpop.xlane.xlu0 %61
    %v63 = vsel %vm59, %v58, 0.0
    %64 = vadd.xlane.f32.xlu0 %v63
    %v65 = vpop.xlane.xlu0 %64
    %v66 = vmul.f32 %v62, 0.03125
    %v67 = vmul.f32 %v65, 0.03125
    %v68 = vmax.f32 %v66, 1e-16
    %v69 = vmax.f32 %v67, 1e-16
    %v70 = vrsqrt.pop %v68
    %v71 = vrsqrt.pop %v69
    %v72 = vmul.f32 %v55, %v70
    %v73 = vmul.f32 %v56, %v71
    %v74 = vld [vmem:[#allocation5] sm:$0x1]
    %v76 = vlaneseq
    %v77 = vshrl.u32 %v76, 7
    %v78 = vsub.s32 0, %v77
    %v79 = vrot.slane %v74, %v78
    %v81 = vmul.f32 %v72, %v79
    %v82 = vmul.f32 %v73, %v79
    %v83 = vpack.c.bf16 %v82, %v81
    %v84 = vld [vmem:[#allocation7] sm:$0xf]
    %v85 = vld [vmem:[#allocation7 + $0x4] sm:$0xf]
    %v86 = vld [vmem:[#allocation7 + $0x8] sm:$0xf]
    %v87 = vld [vmem:[#allocation7 + $0xc] sm:$0xf]
    %v92 = vunpack.c.l.b16 %v84
    %v93 = vunpack.c.l.b16 %v85
    %v94 = vunpack.c.l.b16 %v86
    %v95 = vunpack.c.l.b16 %v87
    %v96 = vpack.c.b16 %v93, %v92
    %v97 = vpack.c.b16 %v95, %v94
    %v101 = vsel %vm59, %v83, 0
    %103 = vmatprep.subr.bf16.mxu0 0
    %104 = vmatpush1.bf16.msra.mxu0 %v96
    %105 = vmatprep.subr.bf16.mxu0 0
    %106 = vmatpush1.bf16.msra.mxu0 %v97
    %107 = vmatprep.subr.bf16.mxu0 0
    %108 = vmatpush1.bf16.msra.mxu0 0
    %109 = vmatprep.subr.bf16.mxu0 0
    %110 = vmatpush1.bf16.msra.mxu0 0
    %111 = vmatprep.subr.bf16.mxu0 0
    %112 = vmatpush1.bf16.msra.mxu0 0
    %113 = vmatprep.subr.bf16.mxu0 0
    %114 = vmatpush1.bf16.msra.mxu0 0
    %115 = vmatprep.subr.bf16.mxu0 0
    %116 = vmatpush1.bf16.msra.mxu0 0
    %117 = vmatprep.subr.bf16.mxu0 0
    %118 = vmatpush1.bf16.msra.mxu0 0
    %119 = vmatprep.subr.bf16.mxu0 0
    %120 = vmatpush1.bf16.msra.mxu0 0
    %121 = vmatprep.subr.bf16.mxu0 0
    %122 = vmatpush1.bf16.msra.mxu0 0
    %123 = vmatprep.subr.bf16.mxu0 0
    %124 = vmatpush1.bf16.msra.mxu0 0
    %125 = vmatprep.subr.bf16.mxu0 0
    %126 = vmatpush1.bf16.msra.mxu0 0
    %127 = vmatprep.subr.bf16.mxu0 0
    %128 = vmatpush1.bf16.msra.mxu0 0
    %129 = vmatprep.subr.bf16.mxu0 0
    %130 = vmatpush1.bf16.msra.mxu0 0
    %131 = vmatprep.subr.bf16.mxu0 0
    %132 = vmatpush1.bf16.msra.mxu0 0
    %133 = vmatprep.subr.bf16.mxu0 0
    %134 = vmatpush1.bf16.msra.mxu0 0
    %135 = vmatprep.mubr.bf16.mxu0 0
    %136 = vmatmul.mubr.bf16.gmra.mrb[0].mxu0 %v101
    %v137 = vpop.f32.mrb[0].mxu0
    %v138 = vadd.f32 0.0, %v137
    %v139 = vpop.f32.mrb[0].mxu0
    %v140 = vpop.f32.mrb[0].mxu0
    %v141 = vadd.f32 0.0, %v140
    %v142 = vpop.f32.mrb[0].mxu0
    %143 = vdwg.mxu0
    %v144 = vpack.c.bf16 %v141, %v138
    %v146 = vunpack.c.l.b16 %v144
    %v147 = vunpack.c.h.b16 %v144
    %v148 = vpack.c.b16 %v146, %v146
    %v149 = vpack.c.b16 %v147, %v147
    %vm152 = vcmask 519168
    %153 = vst.msk [vmem:[#allocation8] sm:$0xf] %vm152, %v148
    %154 = vst.msk [vmem:[#allocation8 + $0x4] sm:$0xf] %vm152, %v149
    // Predicated region
    $region26: #{encoder_forward.20} parent=1 // pred_check
      _
    $region27: #{encoder_forward.20} parent=1 // pred_check_branch
      %156 = sbr.rel (0) target = $region29
    $region28: #{encoder_forward.20} parent=1 // pred_region
      %s158 = ssub.s32 128, 128
      %159 = vsyncadd [#allocation4], %s158
      %s160 = sshll.u32 [#allocation8], 4
      %s161 = int_to_ptr.vmem [resolvable:$true] %s160
      %166 = dma.vmem_to_hbm [thread:$0]  %s161, 128, %s3, [#allocation4], 64, 64, 4
    $region29: #{encoder_forward.20} parent=1 // pred_fallthru
      _
    // Predicated region
    $region30: #{encoder_forward.20} parent=1 // pred_check
      _
    $region31: #{encoder_forward.20} parent=1 // pred_check_branch
      %168 = sbr.rel (0) target = $region33
    $region32: #{encoder_forward.20} parent=1 // pred_region
      %169 = dma.done [#allocation4], 128
    $region33: #{encoder_forward.20} parent=1 // pred_fallthru
      _
    %170 = vsyncpa [#allocation3], 1
    %171 = vsyncpa [#allocation6], 1
    %172 = vsyncpa [#allocation4], 1

// kernel: encoder_forward.17
$region0: #{encoder_forward.17}
  #allocation0 [shape = 'u32[]', space=smem, size = 0x4, offset = 0x4, fixed_abs, tag = 'smem constant byte address 0x4 - core index']
  #allocation1 [shape = 'u32[144,128]{1,0:T(1,128)}', space=vmem, size = 0x12000, scoped, tag = 'internal scratch']
  %s0 = inlined_call_operand.hbm [shape: f32[16,32], index: 0, kind: input, shape index: {}]
  %s1 = inlined_call_operand.hbm [shape: f32[1,32], index: 1, kind: input, shape index: {}]
  %s2 = inlined_call_operand.hbm [shape: bf16[32,192], index: 2, kind: input, shape index: {}]
  %s3 = inlined_call_operand.hbm [shape: bf16[16,192], index: 3, kind: output, shape index: {}]
  %s4 = sld [smem:[#allocation0]]
  $region34: #{encoder_forward.17} parent=0
    _
  %s6 = ssub.s32 1, %s4
  %s7 = scalar_select 0, %s6, %s4
  $region1: #{encoder_forward.17} parent=0
    #allocation2 [shape = 'u8[8192]{0}', space=vmem, size = 0x2000, scoped, tag = 'input window, operand 0, single buffered']
    #allocation3 [shape = 's32[1]{0}', space=sflag, size = 0x4, scoped, tag = 'scoped memory for encoder_forward.17']
    #allocation4 [shape = 's32[1]{0}', space=sflag, size = 0x4, scoped, tag = 'scoped memory for encoder_forward.17']
    #allocation5 [shape = 'u8[512]{0}', space=vmem, size = 0x400, scoped, tag = 'input window, operand 1, single buffered']
    #allocation6 [shape = 's32[1]{0}', space=sflag, size = 0x4, scoped, tag = 'scoped memory for encoder_forward.17']
    #allocation7 [shape = 'u8[16384]{0}', space=vmem, size = 0x4000, scoped, tag = 'input window, operand 2, single buffered']
    #allocation8 [shape = 'u8[8192]{0}', space=vmem, size = 0x2000, scoped, tag = 'output window, operand 0, single buffered']
    %8 = vsyncpa [#allocation3], 0
    %9 = vsyncpa [#allocation6], 0
    %10 = vsyncpa [#allocation4], 0
    // Predicated region
    $region2: #{encoder_forward.17} parent=1 // pred_check
      _
    $region3: #{encoder_forward.17} parent=1 // pred_check_branch
      %12 = sbr.rel (0) target = $region5
    $region4: #{encoder_forward.17} parent=1 // pred_region
      %s14 = ssub.s32 256, 256
      %15 = vsyncadd [#allocation3], %s14
      %s16 = sshll.u32 [#allocation2], 4
      %s17 = int_to_ptr.vmem [resolvable:$true] %s16
      %22 = dma.hbm_to_vmem [thread:$0]  %s0, 256, %s17, [#allocation3], 128, 128, 8
    $region5: #{encoder_forward.17} parent=1 // pred_fallthru
      _
    // Predicated region
    $region6: #{encoder_forward.17} parent=1 // pred_check
      _
    $region7: #{encoder_forward.17} parent=1 // pred_check_branch
      %24 = sbr.rel (0) target = $region9
    $region8: #{encoder_forward.17} parent=1 // pred_region
      %s26 = ssub.s32 16, 16
      %27 = vsyncadd [#allocation6], %s26
      %s29 = sshll.u32 [#allocation5], 4
      %s30 = int_to_ptr.vmem [resolvable:$true] %s29
      %32 = dma.hbm_to_vmem [thread:$0]  %s1, 16, %s30, [#allocation6]
    $region9: #{encoder_forward.17} parent=1 // pred_fallthru
      _
    // Predicated region
    $region10: #{encoder_forward.17} parent=1 // pred_check
      _
    $region11: #{encoder_forward.17} parent=1 // pred_check_branch
      %34 = sbr.rel (0) target = $region13
    $region12: #{encoder_forward.17} parent=1 // pred_region
      %s36 = ssub.s32 512, 512
      %37 = vsyncadd [#allocation6], %s36
      %s38 = sshll.u32 [#allocation7], 4
      %s39 = int_to_ptr.vmem [resolvable:$true] %s38
      %44 = dma.hbm_to_vmem [thread:$0]  %s2, 512, %s39, [#allocation6], 128, 128, 8
    $region13: #{encoder_forward.17} parent=1 // pred_fallthru
      _
    // Predicated region
    $region14: #{encoder_forward.17} parent=1 // pred_check
      _
    $region15: #{encoder_forward.17} parent=1 // pred_check_branch
      %46 = sbr.rel (0) target = $region17
    $region16: #{encoder_forward.17} parent=1 // pred_region
      %47 = dma.done [#allocation3], 256
    $region17: #{encoder_forward.17} parent=1 // pred_fallthru
      _
    // Predicated region
    $region18: #{encoder_forward.17} parent=1 // pred_check
      _
    $region19: #{encoder_forward.17} parent=1 // pred_check_branch
      %49 = sbr.rel (0) target = $region21
    $region20: #{encoder_forward.17} parent=1 // pred_region
      %50 = dma.done [#allocation6], 16
    $region21: #{encoder_forward.17} parent=1 // pred_fallthru
      _
    // Predicated region
    $region22: #{encoder_forward.17} parent=1 // pred_check
      _
    $region23: #{encoder_forward.17} parent=1 // pred_check_branch
      %52 = sbr.rel (0) target = $region25
    $region24: #{encoder_forward.17} parent=1 // pred_region
      %53 = dma.done [#allocation6], 512
    $region25: #{encoder_forward.17} parent=1 // pred_fallthru
      _
    %v55 = vld [vmem:[#allocation2] sm:$0xff]
    %v56 = vld [vmem:[#allocation2 + $0x8] sm:$0xff]
    %v57 = vmul.f32 %v55, %v55
    %v58 = vmul.f32 %v56, %v56
    %vm59 = vcmask 261120
    %v60 = vsel %vm59, %v57, 0.0
    %61 = vadd.xlane.f32.xlu0 %v60
    %v62 = vpop.xlane.xlu0 %61
    %v63 = vsel %vm59, %v58, 0.0
    %64 = vadd.xlane.f32.xlu0 %v63
    %v65 = vpop.xlane.xlu0 %64
    %v66 = vmul.f32 %v62, 0.03125
    %v67 = vmul.f32 %v65, 0.03125
    %v68 = vmax.f32 %v66, 1e-16
    %v69 = vmax.f32 %v67, 1e-16
    %v70 = vrsqrt.pop %v68
    %v71 = vrsqrt.pop %v69
    %v72 = vmul.f32 %v55, %v70
    %v73 = vmul.f32 %v56, %v71
    %v74 = vld [vmem:[#allocation5] sm:$0x1]
    %v76 = vlaneseq
    %v77 = vshrl.u32 %v76, 7
    %v78 = vsub.s32 0, %v77
    %v79 = vrot.slane %v74, %v78
    %v81 = vmul.f32 %v72, %v79
    %v82 = vmul.f32 %v73, %v79
    %v83 = vpack.c.bf16 %v82, %v81
    %v84 = vld [vmem:[#allocation7] sm:$0xff]
    %v85 = vld [vmem:[#allocation7 + $0x8] sm:$0xff]
    %v86 = vld [vmem:[#allocation7 + $0x10] sm:$0xff]
    %v87 = vld [vmem:[#allocation7 + $0x18] sm:$0xff]
    %v92 = vunpack.c.l.b16 %v84
    %v93 = vunpack.c.h.b16 %v84
    %v94 = vunpack.c.l.b16 %v85
    %v95 = vunpack.c.h.b16 %v85
    %v96 = vunpack.c.l.b16 %v86
    %v97 = vunpack.c.h.b16 %v86
    %v98 = vunpack.c.l.b16 %v87
    %v99 = vunpack.c.h.b16 %v87
    %v100 = vpack.c.b16 %v94, %v92
    %v101 = vpack.c.b16 %v95, %v93
    %v102 = vpack.c.b16 %v98, %v96
    %v103 = vpack.c.b16 %v99, %v97
    %v109 = vsel %vm59, %v83, 0
    %111 = vmatprep.subr.bf16.mxu0 %v101
    %112 = vmatpush1.bf16.msra.mxu0 %v100
    %113 = vmatprep.subr.bf16.mxu0 %v103
    %114 = vmatpush1.bf16.msra.mxu0 %v102
    %115 = vmatprep.subr.bf16.mxu0 0
    %116 = vmatpush1.bf16.msra.mxu0 0
    %117 = vmatprep.subr.bf16.mxu0 0
    %118 = vmatpush1.bf16.msra.mxu0 0
    %119 = vmatprep.subr.bf16.mxu0 0
    %120 = vmatpush1.bf16.msra.mxu0 0
    %121 = vmatprep.subr.bf16.mxu0 0
    %122 = vmatpush1.bf16.msra.mxu0 0
    %123 = vmatprep.subr.bf16.mxu0 0
    %124 = vmatpush1.bf16.msra.mxu0 0
    %125 = vmatprep.subr.bf16.mxu0 0
    %126 = vmatpush1.bf16.msra.mxu0 0
    %127 = vmatprep.subr.bf16.mxu0 0
    %128 = vmatpush1.bf16.msra.mxu0 0
    %129 = vmatprep.subr.bf16.mxu0 0
    %130 = vmatpush1.bf16.msra.mxu0 0
    %131 = vmatprep.subr.bf16.mxu0 0
    %132 = vmatpush1.bf16.msra.mxu0 0
    %133 = vmatprep.subr.bf16.mxu0 0
    %134 = vmatpush1.bf16.msra.mxu0 0
    %135 = vmatprep.subr.bf16.mxu0 0
    %136 = vmatpush1.bf16.msra.mxu0 0
    %137 = vmatprep.subr.bf16.mxu0 0
    %138 = vmatpush1.bf16.msra.mxu0 0
    %139 = vmatprep.subr.bf16.mxu0 0
    %140 = vmatpush1.bf16.msra.mxu0 0
    %141 = vmatprep.subr.bf16.mxu0 0
    %142 = vmatpush1.bf16.msra.mxu0 0
    %143 = vmatprep.mubr.bf16.mxu0 0
    %144 = vmatmul.mubr.bf16.gmra.mrb[0].mxu0 %v109
    %v145 = vpop.f32.mrb[0].mxu0
    %v146 = vadd.f32 0.0, %v145
    %v147 = vpop.f32.mrb[0].mxu0
    %v148 = vadd.f32 0.0, %v147
    %v149 = vpop.f32.mrb[0].mxu0
    %v150 = vadd.f32 0.0, %v149
    %v151 = vpop.f32.mrb[0].mxu0
    %v152 = vadd.f32 0.0, %v151
    %153 = vdwg.mxu0
    %v154 = vpack.c.bf16 %v150, %v146
    %v155 = vpack.c.bf16 %v152, %v148
    %v158 = vunpack.c.l.b16 %v154
    %v159 = vunpack.c.l.b16 %v155
    %v160 = vunpack.c.h.b16 %v154
    %v161 = vunpack.c.h.b16 %v155
    %v162 = vpack.c.b16 %v159, %v158
    %v163 = vpack.c.b16 %v161, %v160
    %vm166 = vcmask 1043456
    %vm167 = vcmask 523268
    %vm168 = vmor %vm167, %vm166
    %169 = vst.msk [vmem:[#allocation8] sm:$0xff] %vm168, %v162
    %170 = vst.msk [vmem:[#allocation8 + $0x8] sm:$0xff] %vm168, %v163
    // Predicated region
    $region26: #{encoder_forward.17} parent=1 // pred_check
      _
    $region27: #{encoder_forward.17} parent=1 // pred_check_branch
      %172 = sbr.rel (0) target = $region29
    $region28: #{encoder_forward.17} parent=1 // pred_region
      %s174 = ssub.s32 256, 256
      %175 = vsyncadd [#allocation4], %s174
      %s176 = sshll.u32 [#allocation8], 4
      %s177 = int_to_ptr.vmem [resolvable:$true] %s176
      %182 = dma.vmem_to_hbm [thread:$0]  %s177, 256, %s3, [#allocation4], 128, 128, 8
    $region29: #{encoder_forward.17} parent=1 // pred_fallthru
      _
    // Predicated region
    $region30: #{encoder_forward.17} parent=1 // pred_check
      _
    $region31: #{encoder_forward.17} parent=1 // pred_check_branch
      %184 = sbr.rel (0) target = $region33
    $region32: #{encoder_forward.17} parent=1 // pred_region
      %185 = dma.done [#allocation4], 256
    $region33: #{encoder_forward.17} parent=1 // pred_fallthru
      _
    %186 = vsyncpa [#allocation3], 1
    %187 = vsyncpa [#allocation6], 1
    %188 = vsyncpa [#allocation4], 1

// kernel: encoder_forward.19
$region0: #{encoder_forward.19}
  #allocation0 [shape = 'u32[]', space=smem, size = 0x4, offset = 0x4, fixed_abs, tag = 'smem constant byte address 0x4 - core index']
  #allocation1 [shape = 'u32[144,128]{1,0:T(1,128)}', space=vmem, size = 0x12000, scoped, tag = 'internal scratch']
  #allocation2 [shape = 'f32[16,32]{1,0:T(8,128)}', space=vmem, size = 0x2000, scoped, tag = 'scratch operand']
  %s0 = inlined_call_operand.hbm [shape: bf16[16,64], index: 0, kind: input, shape index: {}]
  %s1 = inlined_call_operand.hbm [shape: bf16[64,32], index: 1, kind: input, shape index: {}]
  %s2 = inlined_call_operand.hbm [shape: f32[1,32], index: 2, kind: input, shape index: {}]
  %s3 = inlined_call_operand.hbm [shape: f32[16,32], index: 3, kind: output, shape index: {}]
  %s4 = sld [smem:[#allocation0]]
  $region42: #{encoder_forward.19} parent=0
    _
  %s6 = ssub.s32 1, %s4
  %s7 = scalar_select 0, %s6, %s4
  $region1: #{encoder_forward.19} parent=0
    #allocation3 [shape = 'u8[4096]{0}', space=vmem, size = 0x1000, scoped, tag = 'input window, operand 0, single buffered']
    #allocation4 [shape = 's32[1]{0}', space=sflag, size = 0x4, scoped, tag = 'scoped memory for encoder_forward.19']
    #allocation5 [shape = 's32[1]{0}', space=sflag, size = 0x4, scoped, tag = 'scoped memory for encoder_forward.19']
    #allocation6 [shape = 'u8[16384]{0}', space=vmem, size = 0x4000, scoped, tag = 'input window, operand 1, single buffered']
    #allocation7 [shape = 's32[1]{0}', space=sflag, size = 0x4, scoped, tag = 'scoped memory for encoder_forward.19']
    #allocation8 [shape = 'u8[512]{0}', space=vmem, size = 0x400, scoped, tag = 'input window, operand 2, single buffered']
    #allocation9 [shape = 'u8[8192]{0}', space=vmem, size = 0x2000, scoped, tag = 'output window, operand 0, single buffered']
    %8 = vsyncpa [#allocation4], 0
    %9 = vsyncpa [#allocation7], 0
    %10 = vsyncpa [#allocation5], 0
    // Predicated region
    $region2: #{encoder_forward.19} parent=1 // pred_check
      _
    $region3: #{encoder_forward.19} parent=1 // pred_check_branch
      %12 = sbr.rel (0) target = $region5
    $region4: #{encoder_forward.19} parent=1 // pred_region
      %s14 = ssub.s32 128, 128
      %15 = vsyncadd [#allocation4], %s14
      %s16 = sshll.u32 [#allocation3], 4
      %s17 = int_to_ptr.vmem [resolvable:$true] %s16
      %22 = dma.hbm_to_vmem [thread:$0]  %s0, 128, %s17, [#allocation4], 64, 64, 4
    $region5: #{encoder_forward.19} parent=1 // pred_fallthru
      _
    // Predicated region
    $region6: #{encoder_forward.19} parent=1 // pred_check
      _
    $region7: #{encoder_forward.19} parent=1 // pred_check_branch
      %24 = sbr.rel (0) target = $region9
    $region8: #{encoder_forward.19} parent=1 // pred_region
      %s26 = ssub.s32 512, 512
      %27 = vsyncadd [#allocation7], %s26
      %s28 = sshll.u32 [#allocation6], 4
      %s29 = int_to_ptr.vmem [resolvable:$true] %s28
      %34 = dma.hbm_to_vmem [thread:$0]  %s1, 512, %s29, [#allocation7], 64, 64, 4
    $region9: #{encoder_forward.19} parent=1 // pred_fallthru
      _
    // Predicated region
    $region10: #{encoder_forward.19} parent=1 // pred_check
      _
    $region11: #{encoder_forward.19} parent=1 // pred_check_branch
      %36 = sbr.rel (0) target = $region13
    $region12: #{encoder_forward.19} parent=1 // pred_region
      %s38 = ssub.s32 16, 16
      %39 = vsyncadd [#allocation7], %s38
      %s41 = sshll.u32 [#allocation8], 4
      %s42 = int_to_ptr.vmem [resolvable:$true] %s41
      %44 = dma.hbm_to_vmem [thread:$0]  %s2, 16, %s42, [#allocation7]
    $region13: #{encoder_forward.19} parent=1 // pred_fallthru
      _
    // Predicated region
    $region14: #{encoder_forward.19} parent=1 // pred_check
      _
    $region15: #{encoder_forward.19} parent=1 // pred_check_branch
      %46 = sbr.rel (0) target = $region17
    $region16: #{encoder_forward.19} parent=1 // pred_region
      %47 = dma.done [#allocation4], 128
    $region17: #{encoder_forward.19} parent=1 // pred_fallthru
      _
    // Predicated region
    $region18: #{encoder_forward.19} parent=1 // pred_check
      _
    $region19: #{encoder_forward.19} parent=1 // pred_check_branch
      %49 = sbr.rel (0) target = $region21
    $region20: #{encoder_forward.19} parent=1 // pred_region
      %50 = dma.done [#allocation7], 512
    $region21: #{encoder_forward.19} parent=1 // pred_fallthru
      _
    // Predicated region
    $region22: #{encoder_forward.19} parent=1 // pred_check
      _
    $region23: #{encoder_forward.19} parent=1 // pred_check_branch
      %52 = sbr.rel (0) target = $region25
    $region24: #{encoder_forward.19} parent=1 // pred_region
      %53 = dma.done [#allocation7], 16
    $region25: #{encoder_forward.19} parent=1 // pred_fallthru
      _
    %p55 = scmp.eq.s32.totalorder 0, 0
    // Predicated region
    $region26: #{encoder_forward.19} parent=1 // pred_check
      %p56 = pneg %p55
    $region27: #{encoder_forward.19} parent=1 // pred_check_branch
      %58 = sbr.rel (%p56) target = $region29
    $region28: #{encoder_forward.19} parent=1 // pred_region
      %vm59 = vcmask 261120
      %60 = vst.msk [vmem:[#allocation2] sm:$0xff] %vm59, 0.0
      %61 = vst.msk [vmem:[#allocation2 + $0x8] sm:$0xff] %vm59, 0.0
    $region29: #{encoder_forward.19} parent=1 // pred_fallthru
      _
    %v62 = vld [vmem:[#allocation2] sm:$0xff]
    %v63 = vld [vmem:[#allocation2 + $0x8] sm:$0xff]
    %v64 = vld [vmem:[#allocation3] sm:$0xf]
    %v65 = vld [vmem:[#allocation3 + $0x4] sm:$0xf]
    %v66 = vld [vmem:[#allocation6] sm:$0xf]
    %v67 = vld [vmem:[#allocation6 + $0x4] sm:$0xf]
    %v68 = vld [vmem:[#allocation6 + $0x8] sm:$0xf]
    %v69 = vld [vmem:[#allocation6 + $0xc] sm:$0xf]
    %v70 = vld [vmem:[#allocation6 + $0x10] sm:$0xf]
    %v71 = vld [vmem:[#allocation6 + $0x14] sm:$0xf]
    %v72 = vld [vmem:[#allocation6 + $0x18] sm:$0xf]
    %v73 = vld [vmem:[#allocation6 + $0x1c] sm:$0xf]
    %v76 = vunpack.c.l.b16 %v64
    %v77 = vunpack.c.l.b16 %v65
    %v78 = vpack.c.b16 %v77, %v76
    %v87 = vunpack.c.l.b16 %v66
    %v88 = vunpack.c.l.b16 %v67
    %v89 = vunpack.c.l.b16 %v68
    %v90 = vunpack.c.l.b16 %v69
    %v91 = vunpack.c.l.b16 %v70
    %v92 = vunpack.c.l.b16 %v71
    %v93 = vunpack.c.l.b16 %v72
    %v94 = vunpack.c.l.b16 %v73
    %v95 = vpack.c.b16 %v88, %v87
    %v96 = vpack.c.b16 %v90, %v89
    %v97 = vpack.c.b16 %v92, %v91
    %v98 = vpack.c.b16 %v94, %v93
    %vm103 = vcmask 523264
    %v105 = vsel %vm103, %v78, 0
    %107 = vmatprep.subr.bf16.mxu0 0
    %108 = vmatpush1.bf16.msra.mxu0 %v95
    %109 = vmatprep.subr.bf16.mxu0 0
    %110 = vmatpush1.bf16.msra.mxu0 %v96
    %111 = vmatprep.subr.bf16.mxu0 0
    %112 = vmatpush1.bf16.msra.mxu0 %v97
    %113 = vmatprep.subr.bf16.mxu0 0
    %114 = vmatpush1.bf16.msra.mxu0 %v98
    %115 = vmatprep.subr.bf16.mxu0 0
    %116 = vmatpush1.bf16.msra.mxu0 0
    %117 = vmatprep.subr.bf16.mxu0 0
    %118 = vmatpush1.bf16.msra.mxu0 0
    %119 = vmatprep.subr.bf16.mxu0 0
    %120 = vmatpush1.bf16.msra.mxu0 0
    %121 = vmatprep.subr.bf16.mxu0 0
    %122 = vmatpush1.bf16.msra.mxu0 0
    %123 = vmatprep.subr.bf16.mxu0 0
    %124 = vmatpush1.bf16.msra.mxu0 0
    %125 = vmatprep.subr.bf16.mxu0 0
    %126 = vmatpush1.bf16.msra.mxu0 0
    %127 = vmatprep.subr.bf16.mxu0 0
    %128 = vmatpush1.bf16.msra.mxu0 0
    %129 = vmatprep.subr.bf16.mxu0 0
    %130 = vmatpush1.bf16.msra.mxu0 0
    %131 = vmatprep.subr.bf16.mxu0 0
    %132 = vmatpush1.bf16.msra.mxu0 0
    %133 = vmatprep.subr.bf16.mxu0 0
    %134 = vmatpush1.bf16.msra.mxu0 0
    %135 = vmatprep.subr.bf16.mxu0 0
    %136 = vmatpush1.bf16.msra.mxu0 0
    %137 = vmatprep.subr.bf16.mxu0 0
    %138 = vmatpush1.bf16.msra.mxu0 0
    %139 = vmatprep.mubr.bf16.mxu0 0
    %140 = vmatmul.mubr.bf16.gmra.mrb[0].mxu0 %v105
    %v141 = vpop.f32.mrb[0].mxu0
    %v142 = vadd.f32 0.0, %v141
    %v143 = vpop.f32.mrb[0].mxu0
    %v144 = vpop.f32.mrb[0].mxu0
    %v145 = vadd.f32 0.0, %v144
    %v146 = vpop.f32.mrb[0].mxu0
    %147 = vdwg.mxu0
    %v148 = vadd.f32 %v62, %v142
    %v149 = vadd.f32 %v63, %v145
    %vm150 = vcmask 261120
    %151 = vst.msk [vmem:[#allocation2] sm:$0xff] %vm150, %v148
    %152 = vst.msk [vmem:[#allocation2 + $0x8] sm:$0xff] %vm150, %v149
    // Predicated region
    $region30: #{encoder_forward.19} parent=1 // pred_check
      %p153 = pneg %p55
    $region31: #{encoder_forward.19} parent=1 // pred_check_branch
      %155 = sbr.rel (%p153) target = $region33
    $region32: #{encoder_forward.19} parent=1 // pred_region
      %v156 = vld [vmem:[#allocation2] sm:$0xff]
      %v157 = vld [vmem:[#allocation2 + $0x8] sm:$0xff]
      %v158 = vld [vmem:[#allocation8] sm:$0x1]
      %v160 = vlaneseq
      %v161 = vshrl.u32 %v160, 7
      %v162 = vsub.s32 0, %v161
      %v163 = vrot.slane %v158, %v162
      %v165 = vadd.f32 %v156, %v163
      %v166 = vadd.f32 %v157, %v163
      %167 = vst.msk [vmem:[#allocation9] sm:$0xff] %vm150, %v165
      %168 = vst.msk [vmem:[#allocation9 + $0x8] sm:$0xff] %vm150, %v166
    $region33: #{encoder_forward.19} parent=1 // pred_fallthru
      _
    // Predicated region
    $region34: #{encoder_forward.19} parent=1 // pred_check
      _
    $region35: #{encoder_forward.19} parent=1 // pred_check_branch
      %170 = sbr.rel (0) target = $region37
    $region36: #{encoder_forward.19} parent=1 // pred_region
      %s172 = ssub.s32 256, 256
      %173 = vsyncadd [#allocation5], %s172
      %s174 = sshll.u32 [#allocation9], 4
      %s175 = int_to_ptr.vmem [resolvable:$true] %s174
      %180 = dma.vmem_to_hbm [thread:$0]  %s175, 256, %s3, [#allocation5], 128, 128, 8
    $region37: #{encoder_forward.19} parent=1 // pred_fallthru
      _
    // Predicated region
    $region38: #{encoder_forward.19} parent=1 // pred_check
      _
    $region39: #{encoder_forward.19} parent=1 // pred_check_branch
      %182 = sbr.rel (0) target = $region41
    $region40: #{encoder_forward.19} parent=1 // pred_region
      %183 = dma.done [#allocation5], 256
    $region41: #{encoder_forward.19} parent=1 // pred_fallthru
      _
    %184 = vsyncpa [#allocation4], 1
    %185 = vsyncpa [#allocation7], 1
    %186 = vsyncpa [#allocation5], 1

// kernel: encoder_forward.18
$region0: #{encoder_forward.18}
  #allocation0 [shape = 'u32[]', space=smem, size = 0x4, offset = 0x4, fixed_abs, tag = 'smem constant byte address 0x4 - core index']
  #allocation1 [shape = 'u32[144,128]{1,0:T(1,128)}', space=vmem, size = 0x12000, scoped, tag = 'internal scratch']
  %s0 = inlined_call_operand.hbm [shape: bf16[2,8,192], index: 0, kind: input, shape index: {}]
  %s1 = inlined_call_operand.hbm [shape: f32[8,32], index: 1, kind: input, shape index: {}]
  %s2 = inlined_call_operand.hbm [shape: f32[8,32], index: 2, kind: input, shape index: {}]
  %s3 = inlined_call_operand.hbm [shape: bf16[2,8,64], index: 3, kind: output, shape index: {}]
  %s4 = sld [smem:[#allocation0]]
  $region57: #{encoder_forward.18} parent=0
    _
  %s6 = ssub.s32 1, %s4
  %s7 = scalar_select 0, %s6, %s4
  $region1: #{encoder_forward.18} parent=0
    #allocation2 [shape = 'u8[8192]{0}', space=vmem, size = 0x2000, scoped, tag = 'input window, operand 0']
    #allocation3 [shape = 's32[2]{0}', space=sflag, size = 0x8, scoped, tag = 'scoped memory for encoder_forward.18']
    #allocation4 [shape = 's32[2]{0}', space=sflag, size = 0x8, scoped, tag = 'scoped memory for encoder_forward.18']
    #allocation5 [shape = 'u8[4096]{0}', space=vmem, size = 0x1000, scoped, tag = 'input window, operand 1, single buffered']
    #allocation6 [shape = 's32[1]{0}', space=sflag, size = 0x4, scoped, tag = 'scoped memory for encoder_forward.18']
    #allocation7 [shape = 'u8[4096]{0}', space=vmem, size = 0x1000, scoped, tag = 'input window, operand 2, single buffered']
    #allocation8 [shape = 'u8[4096]{0}', space=vmem, size = 0x1000, scoped, tag = 'output window, operand 0']
    %8 = vsyncpa [#allocation3], 0
    %s9 = scalar_lea.sflag [#allocation3], 1
    %10 = vsyncpa %s9, 0
    %11 = vsyncpa [#allocation6], 0
    %12 = vsyncpa [#allocation4], 0
    %s13 = scalar_lea.sflag [#allocation4], 1
    %14 = vsyncpa %s13, 0
    loop: start=0, step=1, limit=4
    $region2: #{encoder_forward.18} parent=1 // loop_pre_header
      _
    $region3: #{encoder_forward.18} parent=1 // loop_header
      %s16 = sphi 0, %s20
      %p17 = scmp.ge.s32.totalorder %s16, 4
      %s26 = sphi 0, %s28
      %s29 = sphi 0, %s26
      %s30 = sphi 0, %s29
      %s46 = sphi 0, %s30
      %s50 = sphi 0, %s50
      %s52 = sphi 0, %s50
      %s53 = sphi 0, %s52
      %s67 = sphi 0, %s53
      %s71 = sphi 0, %s71
      %s73 = sphi 0, %s71
      %s74 = sphi 0, %s73
      %s88 = sphi 0, %s74
      %s94 = sphi 0, %s96
      %s97 = sphi 0, %s94
      %s98 = sphi 0, %s97
      %s114 = sphi 0, %s98
    $region4: #{encoder_forward.18} parent=1 // loop_header_branch
      %19 = sbr.rel (%p17) target = $region8
    $region5: #{encoder_forward.18} parent=1 // loop_body
      %s21 = ssub.s32 %s16, 1
      %s22 = ssub.s32 %s16, 2
      %s23 = sadd.s32 %s16, 1
      %s24 = ssub.s32 %s16, %s23
      %p25 = scmp.eq.s32.totalorder %s24, 0
      %s27 = sadd.s32 %s26, 1
      %s28 = scalar_select %p25, %s26, %s27
      %p31 = pneg %p25
      %p32 = scmp.eq.s32.totalorder %s16, 1
      %p33 = por %p31, %p32
      %p34 = scmp.ne.s32.totalorder %s26, %s29
      %p35 = scmp.eq.s32.totalorder %s16, 0
      %p36 = por %p34, %p35
      %p37 = scmp.ne.s32.totalorder %s26, %s29
      %p38 = scmp.eq.s32.totalorder %s21, 1
      %p39 = por %p37, %p38
      %p40 = scmp.ne.s32.totalorder %s29, %s30
      %p41 = scmp.eq.s32.totalorder %s21, 0
      %p42 = por %p40, %p41
      %p43 = scmp.ne.s32.totalorder %s29, %s30
      %p44 = scmp.eq.s32.totalorder %s22, 1
      %p45 = por %p43, %p44
      %p47 = scmp.ne.s32.totalorder %s30, %s46
      %p48 = scmp.eq.s32.totalorder %s22, 0
      %p49 = por %p47, %p48
      %s51 = sadd.s32 %s50, 1
      %p54 = scmp.eq.s32.totalorder %s16, 1
      %p55 = scmp.ne.s32.totalorder %s50, %s52
      %p56 = scmp.eq.s32.totalorder %s16, 0
      %p57 = por %p55, %p56
      %p58 = scmp.ne.s32.totalorder %s50, %s52
      %p59 = scmp.eq.s32.totalorder %s21, 1
      %p60 = por %p58, %p59
      %p61 = scmp.ne.s32.totalorder %s52, %s53
      %p62 = scmp.eq.s32.totalorder %s21, 0
      %p63 = por %p61, %p62
      %p64 = scmp.ne.s32.totalorder %s52, %s53
      %p65 = scmp.eq.s32.totalorder %s22, 1
      %p66 = por %p64, %p65
      %p68 = scmp.ne.s32.totalorder %s53, %s67
      %p69 = scmp.eq.s32.totalorder %s22, 0
      %p70 = por %p68, %p69
      %s72 = sadd.s32 %s71, 1
      %p75 = scmp.eq.s32.totalorder %s16, 1
      %p76 = scmp.ne.s32.totalorder %s71, %s73
      %p77 = scmp.eq.s32.totalorder %s16, 0
      %p78 = por %p76, %p77
      %p79 = scmp.ne.s32.totalorder %s71, %s73
      %p80 = scmp.eq.s32.totalorder %s21, 1
      %p81 = por %p79, %p80
      %p82 = scmp.ne.s32.totalorder %s73, %s74
      %p83 = scmp.eq.s32.totalorder %s21, 0
      %p84 = por %p82, %p83
      %p85 = scmp.ne.s32.totalorder %s73, %s74
      %p86 = scmp.eq.s32.totalorder %s22, 1
      %p87 = por %p85, %p86
      %p89 = scmp.ne.s32.totalorder %s74, %s88
      %p90 = scmp.eq.s32.totalorder %s22, 0
      %p91 = por %p89, %p90
      %s92 = ssub.s32 %s16, %s23
      %p93 = scmp.eq.s32.totalorder %s92, 0
      %s95 = sadd.s32 %s94, 1
      %s96 = scalar_select %p93, %s94, %s95
      %p99 = pneg %p93
      %p100 = scmp.eq.s32.totalorder %s16, 1
      %p101 = por %p99, %p100
      %p102 = scmp.ne.s32.totalorder %s94, %s97
      %p103 = scmp.eq.s32.totalorder %s16, 0
      %p104 = por %p102, %p103
      %p105 = scmp.ne.s32.totalorder %s94, %s97
      %p106 = scmp.eq.s32.totalorder %s21, 1
      %p107 = por %p105, %p106
      %p108 = scmp.ne.s32.totalorder %s97, %s98
      %p109 = scmp.eq.s32.totalorder %s21, 0
      %p110 = por %p108, %p109
      %p111 = scmp.ne.s32.totalorder %s97, %s98
      %p112 = scmp.eq.s32.totalorder %s22, 1
      %p113 = por %p111, %p112
      %p115 = scmp.ne.s32.totalorder %s98, %s114
      %p116 = scmp.eq.s32.totalorder %s22, 0
      %p117 = por %p115, %p116
      %p118 = scmp.le.s32.totalorder 1, %s16
      %p119 = scmp.lt.s32.totalorder %s16, 3
      %p120 = pnand %p118, %p119
      %p121 = pneg %p120
      // Predicated region
      $region9: #{encoder_forward.18} parent=5 // pred_check
        _
      $region10: #{encoder_forward.18} parent=5 // pred_check_branch
        %123 = sbr.rel (%p120) target = $region12
      $region11: #{encoder_forward.18} parent=5 // pred_region
        %s124 = ssub.s32 %s16, 1
        // Predicated region
        $region13: #{encoder_forward.18} parent=11 // pred_check
          %p125 = pneg %p63
        $region14: #{encoder_forward.18} parent=11 // pred_check_branch
          %127 = sbr.rel (%p125) target = $region16
        $region15: #{encoder_forward.18} parent=11 // pred_region
          %s129 = ssub.s32 128, 128
          %130 = vsyncadd [#allocation6], %s129
          %s132 = sshll.u32 [#allocation5], 4
          %s133 = int_to_ptr.vmem [resolvable:$true] %s132
          %135 = dma.hbm_to_vmem [thread:$0]  %s1, 128, %s133, [#allocation6]
        $region16: #{encoder_forward.18} parent=11 // pred_fallthru
          _
        // Predicated region
        $region17: #{encoder_forward.18} parent=11 // pred_check
          %p136 = pneg %p84
        $region18: #{encoder_forward.18} parent=11 // pred_check_branch
          %138 = sbr.rel (%p136) target = $region20
        $region19: #{encoder_forward.18} parent=11 // pred_region
          %s140 = ssub.s32 128, 128
          %141 = vsyncadd [#allocation6], %s140
          %s143 = sshll.u32 [#allocation7], 4
          %s144 = int_to_ptr.vmem [resolvable:$true] %s143
          %146 = dma.hbm_to_vmem [thread:$0]  %s2, 128, %s144, [#allocation6]
        $region20: #{encoder_forward.18} parent=11 // pred_fallthru
          _
      $region12: #{encoder_forward.18} parent=5 // pred_fallthru
        _
      %p147 = scmp.lt.s32.totalorder %s16, 2
      // Predicated region
      $region21: #{encoder_forward.18} parent=5 // pred_check
        %p148 = pneg %p147
      $region22: #{encoder_forward.18} parent=5 // pred_check_branch
        %150 = sbr.rel (%p148) target = $region24
      $region23: #{encoder_forward.18} parent=5 // pred_region
        // Predicated region
        $region25: #{encoder_forward.18} parent=23 // pred_check
          %p151 = pneg %p36
        $region26: #{encoder_forward.18} parent=23 // pred_check_branch
          %153 = sbr.rel (%p151) target = $region28
        $region27: #{encoder_forward.18} parent=23 // pred_region
          %s154 = sand.u32 %s26, 1
          %s155 = scalar_lea.sflag [#allocation3], %s154
          %s156 = sand.u32 %s26, 1
          %s157 = smul.addr %s156, 8
          %s158 = scalar_lea.vmem [#allocation2], %s157
          %s160 = ssub.s32 128, 128
          %161 = vsyncadd %s155, %s160
          %s162 = smul.addr %s16, 2
          %s163 = smul.addr %s162, 64
          %s164 = scalar_lea.hbm %s0, %s163
          %s166 = sshll.u32 %s158, 4
          %s167 = int_to_ptr.vmem [resolvable:$true] %s166
          %169 = dma.hbm_to_vmem [thread:$0]  %s164, 128, %s167, %s155
        $region28: #{encoder_forward.18} parent=23 // pred_fallthru
          _
      $region24: #{encoder_forward.18} parent=5 // pred_fallthru
        _
      %p170 = scmp.le.s32.totalorder 1, %s16
      %p171 = scmp.lt.s32.totalorder %s16, 3
      %p172 = pnand %p170, %p171
      %p173 = pneg %p172
      // Predicated region
      $region29: #{encoder_forward.18} parent=5 // pred_check
        _
      $region30: #{encoder_forward.18} parent=5 // pred_check_branch
        %175 = sbr.rel (%p172) target = $region32
      $region31: #{encoder_forward.18} parent=5 // pred_region
        %s176 = ssub.s32 %s16, 1
        %s177 = sand.u32 %s29, 1
        %s178 = scalar_lea.sflag [#allocation3], %s177
        %s179 = sand.u32 %s29, 1
        %s180 = smul.addr %s179, 8
        %s181 = scalar_lea.vmem [#allocation2], %s180
        // Predicated region
        $region33: #{encoder_forward.18} parent=31 // pred_check
          %p182 = pneg %p42
        $region34: #{encoder_forward.18} parent=31 // pred_check_branch
          %184 = sbr.rel (%p182) target = $region36
        $region35: #{encoder_forward.18} parent=31 // pred_region
          %185 = dma.done %s178, 128
        $region36: #{encoder_forward.18} parent=31 // pred_fallthru
          _
        // Predicated region
        $region37: #{encoder_forward.18} parent=31 // pred_check
          %p186 = pneg %p63
        $region38: #{encoder_forward.18} parent=31 // pred_check_branch
          %188 = sbr.rel (%p186) target = $region40
        $region39: #{encoder_forward.18} parent=31 // pred_region
          %189 = dma.done [#allocation6], 128
        $region40: #{encoder_forward.18} parent=31 // pred_fallthru
          _
        // Predicated region
        $region41: #{encoder_forward.18} parent=31 // pred_check
          %p190 = pneg %p84
        $region42: #{encoder_forward.18} parent=31 // pred_check_branch
          %192 = sbr.rel (%p190) target = $region44
        $region43: #{encoder_forward.18} parent=31 // pred_region
          %193 = dma.done [#allocation6], 128
        $region44: #{encoder_forward.18} parent=31 // pred_fallthru
          _
        %s194 = sand.u32 %s29, 1
        %s195 = scalar_lea.sflag [#allocation3], %s194
        %s196 = sand.u32 %s29, 1
        %s197 = smul.addr %s196, 8
        %s198 = scalar_lea.vmem [#allocation2], %s197
        %p199 = pneg %p42
        %p200 = pneg %p39
        %p201 = pneg %p63
        %p202 = pneg %p60
        %p203 = pneg %p84
        %p204 = pneg %p81
        %p205 = pneg %p110
        %p206 = pneg %p107
        %s207 = sand.u32 %s97, 1
        %s208 = scalar_lea.sflag [#allocation4], %s207
        %s209 = sand.u32 %s97, 1
        %s210 = smul.addr %s209, 4
        %s211 = scalar_lea.vmem [#allocation8], %s210
        %v213 = vld [vmem:[%s181] sm:$0xff]
        %v214 = vld [vmem:[#allocation5] sm:$0xff]
        %v215 = vld [vmem:[#allocation7] sm:$0xff]
        %v216 = vsub.bf16 0, %v213
        %v218 = vunpack.c.l.b16 %v216
        %v219 = vpack.c.b16 %v218, %v218
        %220 = vrot.lane.b32.xlu0 %v219, 112
        %v221 = vpop.permute.xlu0 %220
        %v223 = vunpack.c.l.b16 %v213
        %v224 = vpack.c.b16 %v223, %v223
        %225 = vrot.lane.b32.xlu0 %v224, 16
        %v226 = vpop.permute.xlu0 %225
        %vm227 = vcmask 130048
        %v230 = vsel %vm227, %v221, %v226
        %v232 = vunpack.c.l.bf16 %v213
        %v233 = vmul.f32 %v232, %v214
        %v234 = vunpack.c.l.bf16 %v230
        %v235 = vmul.f32 %v234, %v215
        %v236 = vadd.f32 %v233, %v235
        %v237 = vpack.c.bf16 %v236, %v236
        %238 = vrot.lane.b32.xlu0 %v219, 48
        %v239 = vpop.permute.xlu0 %238
        %240 = vrot.lane.b32.xlu0 %v224, 80
        %v241 = vpop.permute.xlu0 %240
        %v244 = vsel %vm227, %v239, %v241
        %247 = vrot.lane.b32.xlu0 %v214, 64
        %v248 = vpop.permute.xlu0 %247
        %v250 = vmul.f32 %v232, %v248
        %v251 = vunpack.c.l.bf16 %v244
        %v252 = vmul.f32 %v251, %v215
        %254 = vrot.lane.b32.xlu0 %v252, 64
        %v255 = vpop.permute.xlu0 %254
        %v257 = vadd.f32 %v250, %v255
        %v258 = vpack.c.bf16 %v257, %v257
        %260 = vrot.lane.b32.xlu0 %v258, 64
        %v261 = vpop.permute.xlu0 %260
        %vm262 = vcmask 261120
        %v264 = vsel %vm262, %v237, 0
        %v267 = vsel %vm262, %v261, 0
        %269 = vmatprep.subr.bf16.mxu0 0
        %270 = vmatpush1.bf16.xpose.msra.mxu0 %v267
        %271 = vmatprep.subr.bf16.mxu0 0
        %272 = vmatpush1.bf16.xpose.msra.mxu0 0
        %273 = vmatprep.subr.bf16.mxu0 0
        %274 = vmatpush1.bf16.xpose.msra.mxu0 0
        %275 = vmatprep.subr.bf16.mxu0 0
        %276 = vmatpush1.bf16.xpose.msra.mxu0 0
        %277 = vmatprep.subr.bf16.mxu0 0
        %278 = vmatpush1.bf16.xpose.msra.mxu0 0
        %279 = vmatprep.subr.bf16.mxu0 0
        %280 = vmatpush1.bf16.xpose.msra.mxu0 0
        %281 = vmatprep.subr.bf16.mxu0 0
        %282 = vmatpush1.bf16.xpose.msra.mxu0 0
        %283 = vmatprep.subr.bf16.mxu0 0
        %284 = vmatpush1.bf16.xpose.msra.mxu0 0
        %285 = vmatprep.subr.bf16.mxu0 0
        %286 = vmatpush1.bf16.xpose.msra.mxu0 0
        %287 = vmatprep.subr.bf16.mxu0 0
        %288 = vmatpush1.bf16.xpose.msra.mxu0 0
        %289 = vmatprep.subr.bf16.mxu0 0
        %290 = vmatpush1.bf16.xpose.msra.mxu0 0
        %291 = vmatprep.subr.bf16.mxu0 0
        %292 = vmatpush1.bf16.xpose.msra.mxu0 0
        %293 = vmatprep.subr.bf16.mxu0 0
        %294 = vmatpush1.bf16.xpose.msra.mxu0 0
        %295 = vmatprep.subr.bf16.mxu0 0
        %296 = vmatpush1.bf16.xpose.msra.mxu0 0
        %297 = vmatprep.subr.bf16.mxu0 0
        %298 = vmatpush1.bf16.xpose.msra.mxu0 0
        %299 = vmatprep.subr.bf16.mxu0 0
        %300 = vmatpush1.bf16.xpose.msra.mxu0 0
        %301 = vmatprep.mubr.bf16.mxu0 0
        %302 = vmatmul.mubr.bf16.gmra.mrb[0].mxu0 %v264
        %v303 = vpop.f32.mrb[0].mxu0
        %v304 = vadd.f32 0.0, %v303
        %v305 = vpop.f32.mrb[0].mxu0
        %v306 = vpop.f32.mrb[0].mxu0
        %v307 = vpop.f32.mrb[0].mxu0
        %308 = vdwg.mxu0
        %vm309 = vcmask 64512
        %v310 = vsel %vm309, %v304, -inf
        %311 = vmax.xlane.f32.xlu0 %v310
        %v312 = vpop.xlane.xlu0 %311
        %v313 = vsub.f32 %v304, %v312
        %v314 = vmul.f32 %v313, 1.442695
        %v315 = vpow.pop %v314
        %v316 = vsel %vm309, %v315, 0.0
        %317 = vadd.xlane.f32.xlu0 %v316
        %v318 = vpop.xlane.xlu0 %317
        %v319 = vpack.c.bf16 %v315, %v315
        %v320 = vunpack.c.h.b16 %v213
        %v321 = vpack.c.b16 %v320, %v320
        %v323 = vsel %vm309, %v319, 0
        %vm325 = vcmask 1043456
        %v327 = vsel %vm325, %v321, 0
        %329 = vmatprep.subr.bf16.mxu0 0
        %330 = vmatpush1.bf16.msra.mxu0 %v327
        %331 = vmatprep.subr.bf16.mxu0 0
        %332 = vmatpush1.bf16.msra.mxu0 0
        %333 = vmatprep.subr.bf16.mxu0 0
        %334 = vmatpush1.bf16.msra.mxu0 0
        %335 = vmatprep.subr.bf16.mxu0 0
        %336 = vmatpush1.bf16.msra.mxu0 0
        %337 = vmatprep.subr.bf16.mxu0 0
        %338 = vmatpush1.bf16.msra.mxu0 0
        %339 = vmatprep.subr.bf16.mxu0 0
        %340 = vmatpush1.bf16.msra.mxu0 0
        %341 = vmatprep.subr.bf16.mxu0 0
        %342 = vmatpush1.bf16.msra.mxu0 0
        %343 = vmatprep.subr.bf16.mxu0 0
        %344 = vmatpush1.bf16.msra.mxu0 0
        %345 = vmatprep.subr.bf16.mxu0 0
        %346 = vmatpush1.bf16.msra.mxu0 0
        %347 = vmatprep.subr.bf16.mxu0 0
        %348 = vmatpush1.bf16.msra.mxu0 0
        %349 = vmatprep.subr.bf16.mxu0 0
        %350 = vmatpush1.bf16.msra.mxu0 0
        %351 = vmatprep.subr.bf16.mxu0 0
        %352 = vmatpush1.bf16.msra.mxu0 0
        %353 = vmatprep.subr.bf16.mxu0 0
        %354 = vmatpush1.bf16.msra.mxu0 0
        %355 = vmatprep.subr.bf16.mxu0 0
        %356 = vmatpush1.bf16.msra.mxu0 0
        %357 = vmatprep.subr.bf16.mxu0 0
        %358 = vmatpush1.bf16.msra.mxu0 0
        %359 = vmatprep.subr.bf16.mxu0 0
        %360 = vmatpush1.bf16.msra.mxu0 0
        %361 = vmatprep.mubr.bf16.mxu0 0
        %362 = vmatmul.mubr.bf16.gmra.mrb[0].mxu0 %v323
        %v363 = vpop.f32.mrb[0].mxu0
        %v364 = vadd.f32 0.0, %v363
        %v365 = vpop.f32.mrb[0].mxu0
        %v366 = vpop.f32.mrb[0].mxu0
        %v367 = vpop.f32.mrb[0].mxu0
        %368 = vdwg.mxu0
        %v369 = vrcp.pop %v318
        %v370 = vmul.f32 %v364, %v369
        %371 = vrot.lane.b32.xlu0 %v219, 80
        %v372 = vpop.permute.xlu0 %371
        %373 = vrot.lane.b32.xlu0 %v224, 112
        %v374 = vpop.permute.xlu0 %373
        %v377 = vsel %vm227, %v372, %v374
        %379 = vrot.lane.b32.xlu0 %v214, 32
        %v380 = vpop.permute.xlu0 %379
        %v382 = vmul.f32 %v232, %v380
        %v383 = vunpack.c.l.bf16 %v377
        %v384 = vmul.f32 %v383, %v215
        %386 = vrot.lane.b32.xlu0 %v384, 32
        %v387 = vpop.permute.xlu0 %386
        %v389 = vadd.f32 %v382, %v387
        %v390 = vpack.c.bf16 %v389, %v389
        %391 = vrot.lane.b32.xlu0 %v219, 16
        %v392 = vpop.permute.xlu0 %391
        %393 = vrot.lane.b32.xlu0 %v224, 48
        %v394 = vpop.permute.xlu0 %393
        %v397 = vsel %vm227, %v392, %v394
        %399 = vrot.lane.b32.xlu0 %v214, 96
        %v400 = vpop.permute.xlu0 %399
        %v402 = vmul.f32 %v232, %v400
        %v403 = vunpack.c.l.bf16 %v397
        %v404 = vmul.f32 %v403, %v215
        %406 = vrot.lane.b32.xlu0 %v404, 96
        %v407 = vpop.permute.xlu0 %406
        %v409 = vadd.f32 %v402, %v407
        %v410 = vpack.c.bf16 %v409, %v409
        %412 = vrot.lane.b32.xlu0 %v390, 96
        %v413 = vpop.permute.xlu0 %412
        %415 = vrot.lane.b32.xlu0 %v410, 32
        %v416 = vpop.permute.xlu0 %415
        %v418 = vsel %vm262, %v413, 0
        %v421 = vsel %vm262, %v416, 0
        %423 = vmatprep.subr.bf16.mxu0 0
        %424 = vmatpush1.bf16.xpose.msra.mxu0 %v421
        %425 = vmatprep.subr.bf16.mxu0 0
        %426 = vmatpush1.bf16.xpose.msra.mxu0 0
        %427 = vmatprep.subr.bf16.mxu0 0
        %428 = vmatpush1.bf16.xpose.msra.mxu0 0
        %429 = vmatprep.subr.bf16.mxu0 0
        %430 = vmatpush1.bf16.xpose.msra.mxu0 0
        %431 = vmatprep.subr.bf16.mxu0 0
        %432 = vmatpush1.bf16.xpose.msra.mxu0 0
        %433 = vmatprep.subr.bf16.mxu0 0
        %434 = vmatpush1.bf16.xpose.msra.mxu0 0
        %435 = vmatprep.subr.bf16.mxu0 0
        %436 = vmatpush1.bf16.xpose.msra.mxu0 0
        %437 = vmatprep.subr.bf16.mxu0 0
        %438 = vmatpush1.bf16.xpose.msra.mxu0 0
        %439 = vmatprep.subr.bf16.mxu0 0
        %440 = vmatpush1.bf16.xpose.msra.mxu0 0
        %441 = vmatprep.subr.bf16.mxu0 0
        %442 = vmatpush1.bf16.xpose.msra.mxu0 0
        %443 = vmatprep.subr.bf16.mxu0 0
        %444 = vmatpush1.bf16.xpose.msra.mxu0 0
        %445 = vmatprep.subr.bf16.mxu0 0
        %446 = vmatpush1.bf16.xpose.msra.mxu0 0
        %447 = vmatprep.subr.bf16.mxu0 0
        %448 = vmatpush1.bf16.xpose.msra.mxu0 0
        %449 = vmatprep.subr.bf16.mxu0 0
        %450 = vmatpush1.bf16.xpose.msra.mxu0 0
        %451 = vmatprep.subr.bf16.mxu0 0
        %452 = vmatpush1.bf16.xpose.msra.mxu0 0
        %453 = vmatprep.subr.bf16.mxu0 0
        %454 = vmatpush1.bf16.xpose.msra.mxu0 0
        %455 = vmatprep.mubr.bf16.mxu0 0
        %456 = vmatmul.mubr.bf16.gmra.mrb[0].mxu0 %v418
        %v457 = vpop.f32.mrb[0].mxu0
        %v458 = vadd.f32 0.0, %v457
        %v459 = vpop.f32.mrb[0].mxu0
        %v460 = vpop.f32.mrb[0].mxu0
        %v461 = vpop.f32.mrb[0].mxu0
        %462 = vdwg.mxu0
        %v463 = vsel %vm309, %v458, -inf
        %464 = vmax.xlane.f32.xlu0 %v463
        %v465 = vpop.xlane.xlu0 %464
        %v466 = vsub.f32 %v458, %v465
        %v467 = vmul.f32 %v466, 1.442695
        %v468 = vpow.pop %v467
        %v469 = vsel %vm309, %v468, 0.0
        %470 = vadd.xlane.f32.xlu0 %v469
        %v471 = vpop.xlane.xlu0 %470
        %v472 = vpack.c.bf16 %v468, %v468
        %473 = vrot.lane.b32.xlu0 %v321, 96
        %v474 = vpop.permute.xlu0 %473
        %v476 = vsel %vm309, %v472, 0
        %v479 = vsel %vm325, %v474, 0
        %481 = vmatprep.subr.bf16.mxu0 0
        %482 = vmatpush1.bf16.msra.mxu0 %v479
        %483 = vmatprep.subr.bf16.mxu0 0
        %484 = vmatpush1.bf16.msra.mxu0 0
        %485 = vmatprep.subr.bf16.mxu0 0
        %486 = vmatpush1.bf16.msra.mxu0 0
        %487 = vmatprep.subr.bf16.mxu0 0
        %488 = vmatpush1.bf16.msra.mxu0 0
        %489 = vmatprep.subr.bf16.mxu0 0
        %490 = vmatpush1.bf16.msra.mxu0 0
        %491 = vmatprep.subr.bf16.mxu0 0
        %492 = vmatpush1.bf16.msra.mxu0 0
        %493 = vmatprep.subr.bf16.mxu0 0
        %494 = vmatpush1.bf16.msra.mxu0 0
        %495 = vmatprep.subr.bf16.mxu0 0
        %496 = vmatpush1.bf16.msra.mxu0 0
        %497 = vmatprep.subr.bf16.mxu0 0
        %498 = vmatpush1.bf16.msra.mxu0 0
        %499 = vmatprep.subr.bf16.mxu0 0
        %500 = vmatpush1.bf16.msra.mxu0 0
        %501 = vmatprep.subr.bf16.mxu0 0
        %502 = vmatpush1.bf16.msra.mxu0 0
        %503 = vmatprep.subr.bf16.mxu0 0
        %504 = vmatpush1.bf16.msra.mxu0 0
        %505 = vmatprep.subr.bf16.mxu0 0
        %506 = vmatpush1.bf16.msra.mxu0 0
        %507 = vmatprep.subr.bf16.mxu0 0
        %508 = vmatpush1.bf16.msra.mxu0 0
        %509 = vmatprep.subr.bf16.mxu0 0
        %510 = vmatpush1.bf16.msra.mxu0 0
        %511 = vmatprep.subr.bf16.mxu0 0
        %512 = vmatpush1.bf16.msra.mxu0 0
        %513 = vmatprep.mubr.bf16.mxu0 0
        %514 = vmatmul.mubr.bf16.gmra.mrb[0].mxu0 %v476
        %v515 = vpop.f32.mrb[0].mxu0
        %v516 = vadd.f32 0.0, %v515
        %v517 = vpop.f32.mrb[0].mxu0
        %v518 = vpop.f32.mrb[0].mxu0
        %v519 = vpop.f32.mrb[0].mxu0
        %520 = vdwg.mxu0
        %v521 = vrcp.pop %v471
        %v522 = vmul.f32 %v516, %v521
        %524 = vrot.lane.b32.xlu0 %v522, 32
        %v525 = vpop.permute.xlu0 %524
        %v527 = vsel %vm262, %v370, %v525
        %v528 = vpack.c.bf16 %v527, %v527
        %vm529 = vcmask 519168
        %530 = vst.msk [vmem:[%s211] sm:$0xf] %vm529, %v528
        %s531 = sand.u32 %s97, 1
        %s532 = scalar_lea.sflag [#allocation4], %s531
        %s533 = sand.u32 %s97, 1
        %s534 = smul.addr %s533, 4
        %s535 = scalar_lea.vmem [#allocation8], %s534
        // Predicated region
        $region45: #{encoder_forward.18} parent=31 // pred_check
          %p536 = pneg %p107
        $region46: #{encoder_forward.18} parent=31 // pred_check_branch
          %538 = sbr.rel (%p536) target = $region48
        $region47: #{encoder_forward.18} parent=31 // pred_region
          %s540 = ssub.s32 64, 64
          %541 = vsyncadd %s532, %s540
          %s542 = smul.addr %s21, 64
          %s543 = scalar_lea.hbm %s3, %s542
          %s545 = sshll.u32 %s535, 4
          %s546 = int_to_ptr.vmem [resolvable:$true] %s545
          %548 = dma.vmem_to_hbm [thread:$0]  %s546, 64, %s543, %s532
        $region48: #{encoder_forward.18} parent=31 // pred_fallthru
          _
      $region32: #{encoder_forward.18} parent=5 // pred_fallthru
        _
      %p549 = scmp.le.s32.totalorder 2, %s16
      // Predicated region
      $region49: #{encoder_forward.18} parent=5 // pred_check
        %p550 = pneg %p549
      $region50: #{encoder_forward.18} parent=5 // pred_check_branch
        %552 = sbr.rel (%p550) target = $region52
      $region51: #{encoder_forward.18} parent=5 // pred_region
        %s553 = ssub.s32 %s16, 2
        // Predicated region
        $region53: #{encoder_forward.18} parent=51 // pred_check
          %p554 = pneg %p113
        $region54: #{encoder_forward.18} parent=51 // pred_check_branch
          %556 = sbr.rel (%p554) target = $region56
        $region55: #{encoder_forward.18} parent=51 // pred_region
          %s557 = sand.u32 %s98, 1
          %s558 = scalar_lea.sflag [#allocation4], %s557
          %s559 = sand.u32 %s98, 1
          %s560 = smul.addr %s559, 4
          %s561 = scalar_lea.vmem [#allocation8], %s560
          %562 = dma.done %s558, 64
        $region56: #{encoder_forward.18} parent=51 // pred_fallthru
          _
      $region52: #{encoder_forward.18} parent=5 // pred_fallthru
        _
    $region6: #{encoder_forward.18} parent=1 // loop_footer
      %s20 = sadd.s32 1, %s16
    $region7: #{encoder_forward.18} parent=1 // loop_footer_branch
      %15 = sbr.rel target = $region3
    $region8: #{encoder_forward.18} parent=1 // loop_exit
      _
    %563 = vsyncpa [#allocation3], 1
    %s564 = scalar_lea.sflag [#allocation3], 1
    %565 = vsyncpa %s564, 1
    %566 = vsyncpa [#allocation6], 1
    %567 = vsyncpa [#allocation4], 1
    %s568 = scalar_lea.sflag [#allocation4], 1
    %569 = vsyncpa %s568, 1

// kernel: encoder_forward.21
$region0: #{encoder_forward.21}
  #allocation0 [shape = 'u32[]', space=smem, size = 0x4, offset = 0x4, fixed_abs, tag = 'smem constant byte address 0x4 - core index']
  #allocation1 [shape = 'u32[144,128]{1,0:T(1,128)}', space=vmem, size = 0x12000, scoped, tag = 'internal scratch']
  #allocation2 [shape = 'f32[32,128]{1,0:T(8,128)}', space=vmem, size = 0x4000, scoped, tag = 'scratch operand']
  %s0 = inlined_call_operand.hbm [shape: bf16[32,32], index: 0, kind: input, shape index: {}]
  %s1 = inlined_call_operand.hbm [shape: bf16[32,128], index: 1, kind: input, shape index: {}]
  %s2 = inlined_call_operand.hbm [shape: f32[1,128], index: 2, kind: input, shape index: {}]
  %s3 = inlined_call_operand.hbm [shape: bf16[32,128], index: 3, kind: output, shape index: {}]
  %s4 = sld [smem:[#allocation0]]
  $region42: #{encoder_forward.21} parent=0
    _
  %s6 = ssub.s32 1, %s4
  %s7 = scalar_select 0, %s6, %s4
  $region1: #{encoder_forward.21} parent=0
    #allocation3 [shape = 'u8[8192]{0}', space=vmem, size = 0x2000, scoped, tag = 'input window, operand 0, single buffered']
    #allocation4 [shape = 's32[1]{0}', space=sflag, size = 0x4, scoped, tag = 'scoped memory for encoder_forward.21']
    #allocation5 [shape = 's32[1]{0}', space=sflag, size = 0x4, scoped, tag = 'scoped memory for encoder_forward.21']
    #allocation6 [shape = 'u8[8192]{0}', space=vmem, size = 0x2000, scoped, tag = 'input window, operand 1, single buffered']
    #allocation7 [shape = 's32[1]{0}', space=sflag, size = 0x4, scoped, tag = 'scoped memory for encoder_forward.21']
    #allocation8 [shape = 'u8[512]{0}', space=vmem, size = 0x400, scoped, tag = 'input window, operand 2, single buffered']
    #allocation9 [shape = 'u8[8192]{0}', space=vmem, size = 0x2000, scoped, tag = 'output window, operand 0, single buffered']
    %8 = vsyncpa [#allocation4], 0
    %9 = vsyncpa [#allocation7], 0
    %10 = vsyncpa [#allocation5], 0
    // Predicated region
    $region2: #{encoder_forward.21} parent=1 // pred_check
      _
    $region3: #{encoder_forward.21} parent=1 // pred_check_branch
      %12 = sbr.rel (0) target = $region5
    $region4: #{encoder_forward.21} parent=1 // pred_region
      %s14 = ssub.s32 256, 256
      %15 = vsyncadd [#allocation4], %s14
      %s16 = sshll.u32 [#allocation3], 4
      %s17 = int_to_ptr.vmem [resolvable:$true] %s16
      %22 = dma.hbm_to_vmem [thread:$0]  %s0, 256, %s17, [#allocation4], 64, 64, 4
    $region5: #{encoder_forward.21} parent=1 // pred_fallthru
      _
    // Predicated region
    $region6: #{encoder_forward.21} parent=1 // pred_check
      _
    $region7: #{encoder_forward.21} parent=1 // pred_check_branch
      %24 = sbr.rel (0) target = $region9
    $region8: #{encoder_forward.21} parent=1 // pred_region
      %s26 = ssub.s32 256, 256
      %27 = vsyncadd [#allocation7], %s26
      %s28 = sshll.u32 [#allocation6], 4
      %s29 = int_to_ptr.vmem [resolvable:$true] %s28
      %34 = dma.hbm_to_vmem [thread:$0]  %s1, 256, %s29, [#allocation7], 64, 64, 4
    $region9: #{encoder_forward.21} parent=1 // pred_fallthru
      _
    // Predicated region
    $region10: #{encoder_forward.21} parent=1 // pred_check
      _
    $region11: #{encoder_forward.21} parent=1 // pred_check_branch
      %36 = sbr.rel (0) target = $region13
    $region12: #{encoder_forward.21} parent=1 // pred_region
      %s38 = ssub.s32 16, 16
      %39 = vsyncadd [#allocation7], %s38
      %s41 = sshll.u32 [#allocation8], 4
      %s42 = int_to_ptr.vmem [resolvable:$true] %s41
      %44 = dma.hbm_to_vmem [thread:$0]  %s2, 16, %s42, [#allocation7]
    $region13: #{encoder_forward.21} parent=1 // pred_fallthru
      _
    // Predicated region
    $region14: #{encoder_forward.21} parent=1 // pred_check
      _
    $region15: #{encoder_forward.21} parent=1 // pred_check_branch
      %46 = sbr.rel (0) target = $region17
    $region16: #{encoder_forward.21} parent=1 // pred_region
      %47 = dma.done [#allocation4], 256
    $region17: #{encoder_forward.21} parent=1 // pred_fallthru
      _
    // Predicated region
    $region18: #{encoder_forward.21} parent=1 // pred_check
      _
    $region19: #{encoder_forward.21} parent=1 // pred_check_branch
      %49 = sbr.rel (0) target = $region21
    $region20: #{encoder_forward.21} parent=1 // pred_region
      %50 = dma.done [#allocation7], 256
    $region21: #{encoder_forward.21} parent=1 // pred_fallthru
      _
    // Predicated region
    $region22: #{encoder_forward.21} parent=1 // pred_check
      _
    $region23: #{encoder_forward.21} parent=1 // pred_check_branch
      %52 = sbr.rel (0) target = $region25
    $region24: #{encoder_forward.21} parent=1 // pred_region
      %53 = dma.done [#allocation7], 16
    $region25: #{encoder_forward.21} parent=1 // pred_fallthru
      _
    %p55 = scmp.eq.s32.totalorder 0, 0
    // Predicated region
    $region26: #{encoder_forward.21} parent=1 // pred_check
      %p56 = pneg %p55
    $region27: #{encoder_forward.21} parent=1 // pred_check_branch
      %58 = sbr.rel (%p56) target = $region29
    $region28: #{encoder_forward.21} parent=1 // pred_region
      %59 = vst [vmem:[#allocation2] sm:$0xff] 0.0
      %60 = vst [vmem:[#allocation2 + $0x8] sm:$0xff] 0.0
      %61 = vst [vmem:[#allocation2 + $0x10] sm:$0xff] 0.0
      %62 = vst [vmem:[#allocation2 + $0x18] sm:$0xff] 0.0
    $region29: #{encoder_forward.21} parent=1 // pred_fallthru
      _
    %v63 = vld [vmem:[#allocation2] sm:$0xff]
    %v64 = vld [vmem:[#allocation2 + $0x8] sm:$0xff]
    %v65 = vld [vmem:[#allocation2 + $0x10] sm:$0xff]
    %v66 = vld [vmem:[#allocation2 + $0x18] sm:$0xff]
    %v67 = vld [vmem:[#allocation3] sm:$0xf]
    %v68 = vld [vmem:[#allocation3 + $0x4] sm:$0xf]
    %v69 = vld [vmem:[#allocation3 + $0x8] sm:$0xf]
    %v70 = vld [vmem:[#allocation3 + $0xc] sm:$0xf]
    %v71 = vld [vmem:[#allocation6] sm:$0xf]
    %v72 = vld [vmem:[#allocation6 + $0x4] sm:$0xf]
    %v73 = vld [vmem:[#allocation6 + $0x8] sm:$0xf]
    %v74 = vld [vmem:[#allocation6 + $0xc] sm:$0xf]
    %v79 = vunpack.c.l.b16 %v67
    %v80 = vunpack.c.l.b16 %v68
    %v81 = vunpack.c.l.b16 %v69
    %v82 = vunpack.c.l.b16 %v70
    %v83 = vpack.c.b16 %v80, %v79
    %v84 = vpack.c.b16 %v82, %v81
    %v89 = vunpack.c.l.b16 %v71
    %v90 = vunpack.c.l.b16 %v72
    %v91 = vunpack.c.l.b16 %v73
    %v92 = vunpack.c.l.b16 %v74
    %v93 = vpack.c.b16 %v90, %v89
    %v94 = vpack.c.b16 %v92, %v91
    %vm97 = vcmask 261120
    %v99 = vsel %vm97, %v83, 0
    %v102 = vsel %vm97, %v84, 0
    %104 = vmatprep.subr.bf16.mxu0 0
    %105 = vmatpush1.bf16.msra.mxu0 %v93
    %106 = vmatprep.subr.bf16.mxu0 0
    %107 = vmatpush1.bf16.msra.mxu0 %v94
    %108 = vmatprep.subr.bf16.mxu0 0
    %109 = vmatpush1.bf16.msra.mxu0 0
    %110 = vmatprep.subr.bf16.mxu0 0
    %111 = vmatpush1.bf16.msra.mxu0 0
    %112 = vmatprep.subr.bf16.mxu0 0
    %113 = vmatpush1.bf16.msra.mxu0 0
    %114 = vmatprep.subr.bf16.mxu0 0
    %115 = vmatpush1.bf16.msra.mxu0 0
    %116 = vmatprep.subr.bf16.mxu0 0
    %117 = vmatpush1.bf16.msra.mxu0 0
    %118 = vmatprep.subr.bf16.mxu0 0
    %119 = vmatpush1.bf16.msra.mxu0 0
    %120 = vmatprep.subr.bf16.mxu0 0
    %121 = vmatpush1.bf16.msra.mxu0 0
    %122 = vmatprep.subr.bf16.mxu0 0
    %123 = vmatpush1.bf16.msra.mxu0 0
    %124 = vmatprep.subr.bf16.mxu0 0
    %125 = vmatpush1.bf16.msra.mxu0 0
    %126 = vmatprep.subr.bf16.mxu0 0
    %127 = vmatpush1.bf16.msra.mxu0 0
    %128 = vmatprep.subr.bf16.mxu0 0
    %129 = vmatpush1.bf16.msra.mxu0 0
    %130 = vmatprep.subr.bf16.mxu0 0
    %131 = vmatpush1.bf16.msra.mxu0 0
    %132 = vmatprep.subr.bf16.mxu0 0
    %133 = vmatpush1.bf16.msra.mxu0 0
    %134 = vmatprep.subr.bf16.mxu0 0
    %135 = vmatpush1.bf16.msra.mxu0 0
    %136 = vmatprep.mubr.bf16.mxu0 0
    %137 = vmatmul.mubr.bf16.gmra.mrb[0].mxu0 %v99
    %v138 = vpop.f32.mrb[0].mxu0
    %v139 = vadd.f32 0.0, %v138
    %v140 = vpop.f32.mrb[0].mxu0
    %v141 = vpop.f32.mrb[0].mxu0
    %v142 = vadd.f32 0.0, %v141
    %v143 = vpop.f32.mrb[0].mxu0
    %144 = vmatprep.mubr.bf16.mxu0 0
    %145 = vmatmul.mubr.bf16.gmra.mrb[0].mxu0 %v102
    %v146 = vpop.f32.mrb[0].mxu0
    %v147 = vadd.f32 0.0, %v146
    %v148 = vpop.f32.mrb[0].mxu0
    %v149 = vpop.f32.mrb[0].mxu0
    %v150 = vadd.f32 0.0, %v149
    %v151 = vpop.f32.mrb[0].mxu0
    %152 = vdwg.mxu0
    %v153 = vadd.f32 %v63, %v139
    %v154 = vadd.f32 %v64, %v142
    %v155 = vadd.f32 %v65, %v147
    %v156 = vadd.f32 %v66, %v150
    %157 = vst [vmem:[#allocation2] sm:$0xff] %v153
    %158 = vst [vmem:[#allocation2 + $0x8] sm:$0xff] %v154
    %159 = vst [vmem:[#allocation2 + $0x10] sm:$0xff] %v155
    %160 = vst [vmem:[#allocation2 + $0x18] sm:$0xff] %v156
    // Predicated region
    $region30: #{encoder_forward.21} parent=1 // pred_check
      %p161 = pneg %p55
    $region31: #{encoder_forward.21} parent=1 // pred_check_branch
      %163 = sbr.rel (%p161) target = $region33
    $region32: #{encoder_forward.21} parent=1 // pred_region
      %v164 = vld [vmem:[#allocation2] sm:$0xff]
      %v165 = vld [vmem:[#allocation2 + $0x8] sm:$0xff]
      %v166 = vld [vmem:[#allocation2 + $0x10] sm:$0xff]
      %v167 = vld [vmem:[#allocation2 + $0x18] sm:$0xff]
      %v168 = vld [vmem:[#allocation8] sm:$0x1]
      %v170 = vlaneseq
      %v171 = vshrl.u32 %v170, 7
      %v172 = vsub.s32 0, %v171
      %v173 = vrot.slane %v168, %v172
      %v175 = vadd.f32 %v164, %v173
      %v176 = vadd.f32 %v165, %v173
      %v177 = vadd.f32 %v166, %v173
      %v178 = vadd.f32 %v167, %v173
      %v179 = vpack.c.bf16 %v176, %v175
      %v180 = vpack.c.bf16 %v178, %v177
      %v183 = vunpack.c.l.b16 %v179
      %v184 = vunpack.c.h.b16 %v179
      %v185 = vunpack.c.l.b16 %v180
      %v186 = vunpack.c.h.b16 %v180
      %v187 = vpack.c.b16 %v183, %v183
      %v188 = vpack.c.b16 %v184, %v184
      %v189 = vpack.c.b16 %v185, %v185
      %v190 = vpack.c.b16 %v186, %v186
      %195 = vst [vmem:[#allocation9] sm:$0xf] %v187
      %196 = vst [vmem:[#allocation9 + $0x4] sm:$0xf] %v188
      %197 = vst [vmem:[#allocation9 + $0x8] sm:$0xf] %v189
      %198 = vst [vmem:[#allocation9 + $0xc] sm:$0xf] %v190
    $region33: #{encoder_forward.21} parent=1 // pred_fallthru
      _
    // Predicated region
    $region34: #{encoder_forward.21} parent=1 // pred_check
      _
    $region35: #{encoder_forward.21} parent=1 // pred_check_branch
      %200 = sbr.rel (0) target = $region37
    $region36: #{encoder_forward.21} parent=1 // pred_region
      %s202 = ssub.s32 256, 256
      %203 = vsyncadd [#allocation5], %s202
      %s204 = sshll.u32 [#allocation9], 4
      %s205 = int_to_ptr.vmem [resolvable:$true] %s204
      %210 = dma.vmem_to_hbm [thread:$0]  %s205, 256, %s3, [#allocation5], 64, 64, 4
    $region37: #{encoder_forward.21} parent=1 // pred_fallthru
      _
    // Predicated region
    $region38: #{encoder_forward.21} parent=1 // pred_check
      _
    $region39: #{encoder_forward.21} parent=1 // pred_check_branch
      %212 = sbr.rel (0) target = $region41
    $region40: #{encoder_forward.21} parent=1 // pred_region
      %213 = dma.done [#allocation5], 256
    $region41: #{encoder_forward.21} parent=1 // pred_fallthru
      _
    %214 = vsyncpa [#allocation4], 1
    %215 = vsyncpa [#allocation7], 1
    %216 = vsyncpa [#allocation5], 1

// kernel: encoder_forward.24
$region0: #{encoder_forward.24}
  #allocation0 [shape = 'u32[]', space=smem, size = 0x4, offset = 0x4, fixed_abs, tag = 'smem constant byte address 0x4 - core index']
  #allocation1 [shape = 'u32[144,128]{1,0:T(1,128)}', space=vmem, size = 0x12000, scoped, tag = 'internal scratch']
  %s0 = inlined_call_operand.hbm [shape: f32[16,32], index: 0, kind: input, shape index: {}]
  %s1 = inlined_call_operand.hbm [shape: f32[1,32], index: 1, kind: input, shape index: {}]
  %s2 = inlined_call_operand.hbm [shape: bf16[32,128], index: 2, kind: input, shape index: {}]
  %s3 = inlined_call_operand.hbm [shape: f32[1,128], index: 3, kind: input, shape index: {}]
  %s4 = inlined_call_operand.hbm [shape: bf16[128,32], index: 4, kind: input, shape index: {}]
  %s5 = inlined_call_operand.hbm [shape: f32[1,32], index: 5, kind: input, shape index: {}]
  %s6 = inlined_call_operand.hbm [shape: f32[16,32], index: 6, kind: output, shape index: {}]
  %s7 = sld [smem:[#allocation0]]
  $region58: #{encoder_forward.24} parent=0
    _
  %s9 = ssub.s32 1, %s7
  %s10 = scalar_select 0, %s9, %s7
  $region1: #{encoder_forward.24} parent=0
    #allocation2 [shape = 'u8[8192]{0}', space=vmem, size = 0x2000, scoped, tag = 'input window, operand 0, single buffered']
    #allocation3 [shape = 's32[1]{0}', space=sflag, size = 0x4, scoped, tag = 'scoped memory for encoder_forward.24']
    #allocation4 [shape = 's32[1]{0}', space=sflag, size = 0x4, scoped, tag = 'scoped memory for encoder_forward.24']
    #allocation5 [shape = 'u8[512]{0}', space=vmem, size = 0x400, scoped, tag = 'input window, operand 1, single buffered']
    #allocation6 [shape = 's32[1]{0}', space=sflag, size = 0x4, scoped, tag = 'scoped memory for encoder_forward.24']
    #allocation7 [shape = 'u8[8192]{0}', space=vmem, size = 0x2000, scoped, tag = 'input window, operand 2, single buffered']
    #allocation8 [shape = 'u8[512]{0}', space=vmem, size = 0x400, scoped, tag = 'input window, operand 3, single buffered']
    #allocation9 [shape = 's32[1]{0}', space=sflag, size = 0x4, scoped, tag = 'scoped memory for encoder_forward.24']
    #allocation10 [shape = 'u8[32768]{0}', space=vmem, size = 0x8000, scoped, tag = 'input window, operand 4, single buffered']
    #allocation11 [shape = 'u8[512]{0}', space=vmem, size = 0x400, scoped, tag = 'input window, operand 5, single buffered']
    #allocation12 [shape = 's32[1]{0}', space=sflag, size = 0x4, scoped, tag = 'scoped memory for encoder_forward.24']
    #allocation13 [shape = 'u8[8192]{0}', space=vmem, size = 0x2000, scoped, tag = 'output window, operand 0, single buffered']
    %11 = vsyncpa [#allocation3], 0
    %12 = vsyncpa [#allocation6], 0
    %13 = vsyncpa [#allocation9], 0
    %14 = vsyncpa [#allocation12], 0
    %15 = vsyncpa [#allocation4], 0
    // Predicated region
    $region2: #{encoder_forward.24} parent=1 // pred_check
      _
    $region3: #{encoder_forward.24} parent=1 // pred_check_branch
      %17 = sbr.rel (0) target = $region5
    $region4: #{encoder_forward.24} parent=1 // pred_region
      %s19 = ssub.s32 256, 256
      %20 = vsyncadd [#allocation3], %s19
      %s21 = sshll.u32 [#allocation2], 4
      %s22 = int_to_ptr.vmem [resolvable:$true] %s21
      %27 = dma.hbm_to_vmem [thread:$0]  %s0, 256, %s22, [#allocation3], 128, 128, 8
    $region5: #{encoder_forward.24} parent=1 // pred_fallthru
      _
    // Predicated region
    $region6: #{encoder_forward.24} parent=1 // pred_check
      _
    $region7: #{encoder_forward.24} parent=1 // pred_check_branch
      %29 = sbr.rel (0) target = $region9
    $region8: #{encoder_forward.24} parent=1 // pred_region
      %s31 = ssub.s32 16, 16
      %32 = vsyncadd [#allocation6], %s31
      %s34 = sshll.u32 [#allocation5], 4
      %s35 = int_to_ptr.vmem [resolvable:$true] %s34
      %37 = dma.hbm_to_vmem [thread:$0]  %s1, 16, %s35, [#allocation6]
    $region9: #{encoder_forward.24} parent=1 // pred_fallthru
      _
    // Predicated region
    $region10: #{encoder_forward.24} parent=1 // pred_check
      _
    $region11: #{encoder_forward.24} parent=1 // pred_check_branch
      %39 = sbr.rel (0) target = $region13
    $region12: #{encoder_forward.24} parent=1 // pred_region
      %s41 = ssub.s32 256, 256
      %42 = vsyncadd [#allocation6], %s41
      %s43 = sshll.u32 [#allocation7], 4
      %s44 = int_to_ptr.vmem [resolvable:$true] %s43
      %49 = dma.hbm_to_vmem [thread:$0]  %s2, 256, %s44, [#allocation6], 64, 64, 4
    $region13: #{encoder_forward.24} parent=1 // pred_fallthru
      _
    // Predicated region
    $region14: #{encoder_forward.24} parent=1 // pred_check
      _
    $region15: #{encoder_forward.24} parent=1 // pred_check_branch
      %51 = sbr.rel (0) target = $region17
    $region16: #{encoder_forward.24} parent=1 // pred_region
      %s53 = ssub.s32 16, 16
      %54 = vsyncadd [#allocation9], %s53
      %s56 = sshll.u32 [#allocation8], 4
      %s57 = int_to_ptr.vmem [resolvable:$true] %s56
      %59 = dma.hbm_to_vmem [thread:$0]  %s3, 16, %s57, [#allocation9]
    $region17: #{encoder_forward.24} parent=1 // pred_fallthru
      _
    // Predicated region
    $region18: #{encoder_forward.24} parent=1 // pred_check
      _
    $region19: #{encoder_forward.24} parent=1 // pred_check_branch
      %61 = sbr.rel (0) target = $region21
    $region20: #{encoder_forward.24} parent=1 // pred_region
      %s63 = ssub.s32 1024, 1024
      %64 = vsyncadd [#allocation9], %s63
      %s65 = sshll.u32 [#allocation10], 4
      %s66 = int_to_ptr.vmem [resolvable:$true] %s65
      %71 = dma.hbm_to_vmem [thread:$0]  %s4, 1024, %s66, [#allocation9], 64, 64, 4
    $region21: #{encoder_forward.24} parent=1 // pred_fallthru
      _
    // Predicated region
    $region22: #{encoder_forward.24} parent=1 // pred_check
      _
    $region23: #{encoder_forward.24} parent=1 // pred_check_branch
      %73 = sbr.rel (0) target = $region25
    $region24: #{encoder_forward.24} parent=1 // pred_region
      %s75 = ssub.s32 16, 16
      %76 = vsyncadd [#allocation12], %s75
      %s78 = sshll.u32 [#allocation11], 4
      %s79 = int_to_ptr.vmem [resolvable:$true] %s78
      %81 = dma.hbm_to_vmem [thread:$0]  %s5, 16, %s79, [#allocation12]
    $region25: #{encoder_forward.24} parent=1 // pred_fallthru
      _
    // Predicated region
    $region26: #{encoder_forward.24} parent=1 // pred_check
      _
    $region27: #{encoder_forward.24} parent=1 // pred_check_branch
      %83 = sbr.rel (0) target = $region29
    $region28: #{encoder_forward.24} parent=1 // pred_region
      %84 = dma.done [#allocation3], 256
    $region29: #{encoder_forward.24} parent=1 // pred_fallthru
      _
    // Predicated region
    $region30: #{encoder_forward.24} parent=1 // pred_check
      _
    $region31: #{encoder_forward.24} parent=1 // pred_check_branch
      %86 = sbr.rel (0) target = $region33
    $region32: #{encoder_forward.24} parent=1 // pred_region
      %87 = dma.done [#allocation6], 16
    $region33: #{encoder_forward.24} parent=1 // pred_fallthru
      _
    // Predicated region
    $region34: #{encoder_forward.24} parent=1 // pred_check
      _
    $region35: #{encoder_forward.24} parent=1 // pred_check_branch
      %89 = sbr.rel (0) target = $region37
    $region36: #{encoder_forward.24} parent=1 // pred_region
      %90 = dma.done [#allocation6], 256
    $region37: #{encoder_forward.24} parent=1 // pred_fallthru
      _
    // Predicated region
    $region38: #{encoder_forward.24} parent=1 // pred_check
      _
    $region39: #{encoder_forward.24} parent=1 // pred_check_branch
      %92 = sbr.rel (0) target = $region41
    $region40: #{encoder_forward.24} parent=1 // pred_region
      %93 = dma.done [#allocation9], 16
    $region41: #{encoder_forward.24} parent=1 // pred_fallthru
      _
    // Predicated region
    $region42: #{encoder_forward.24} parent=1 // pred_check
      _
    $region43: #{encoder_forward.24} parent=1 // pred_check_branch
      %95 = sbr.rel (0) target = $region45
    $region44: #{encoder_forward.24} parent=1 // pred_region
      %96 = dma.done [#allocation9], 1024
    $region45: #{encoder_forward.24} parent=1 // pred_fallthru
      _
    // Predicated region
    $region46: #{encoder_forward.24} parent=1 // pred_check
      _
    $region47: #{encoder_forward.24} parent=1 // pred_check_branch
      %98 = sbr.rel (0) target = $region49
    $region48: #{encoder_forward.24} parent=1 // pred_region
      %99 = dma.done [#allocation12], 16
    $region49: #{encoder_forward.24} parent=1 // pred_fallthru
      _
    %v101 = vld [vmem:[#allocation2] sm:$0xff]
    %v102 = vld [vmem:[#allocation2 + $0x8] sm:$0xff]
    %v103 = vmul.f32 %v101, %v101
    %v104 = vmul.f32 %v102, %v102
    %vm105 = vcmask 261120
    %v106 = vsel %vm105, %v103, 0.0
    %107 = vadd.xlane.f32.xlu0 %v106
    %v108 = vpop.xlane.xlu0 %107
    %v109 = vsel %vm105, %v104, 0.0
    %110 = vadd.xlane.f32.xlu0 %v109
    %v111 = vpop.xlane.xlu0 %110
    %v112 = vmul.f32 %v108, 0.03125
    %v113 = vmul.f32 %v111, 0.03125
    %v114 = vmax.f32 %v112, 1e-16
    %v115 = vmax.f32 %v113, 1e-16
    %v116 = vrsqrt.pop %v114
    %v117 = vrsqrt.pop %v115
    %v118 = vmul.f32 %v101, %v116
    %v119 = vmul.f32 %v102, %v117
    %v120 = vld [vmem:[#allocation5] sm:$0x1]
    %v122 = vlaneseq
    %v123 = vshrl.u32 %v122, 7
    %v124 = vsub.s32 0, %v123
    %v125 = vrot.slane %v120, %v124
    %v127 = vmul.f32 %v118, %v125
    %v128 = vmul.f32 %v119, %v125
    %v129 = vpack.c.bf16 %v128, %v127
    %v130 = vld [vmem:[#allocation7] sm:$0xf]
    %v131 = vld [vmem:[#allocation7 + $0x4] sm:$0xf]
    %v132 = vld [vmem:[#allocation7 + $0x8] sm:$0xf]
    %v133 = vld [vmem:[#allocation7 + $0xc] sm:$0xf]
    %v134 = vld [vmem:[#allocation8] sm:$0x1]
    %v136 = vlaneseq
    %v137 = vshrl.u32 %v136, 7
    %v138 = vsub.s32 0, %v137
    %v139 = vrot.slane %v134, %v138
    %v145 = vunpack.c.l.b16 %v130
    %v146 = vunpack.c.l.b16 %v131
    %v147 = vunpack.c.l.b16 %v132
    %v148 = vunpack.c.l.b16 %v133
    %v149 = vpack.c.b16 %v146, %v145
    %v150 = vpack.c.b16 %v148, %v147
    %v154 = vsel %vm105, %v129, 0
    %156 = vmatprep.subr.bf16.mxu0 0
    %157 = vmatpush1.bf16.msra.mxu0 %v149
    %158 = vmatprep.subr.bf16.mxu0 0
    %159 = vmatpush1.bf16.msra.mxu0 %v150
    %160 = vmatprep.subr.bf16.mxu0 0
    %161 = vmatpush1.bf16.msra.mxu0 0
    %162 = vmatprep.subr.bf16.mxu0 0
    %163 = vmatpush1.bf16.msra.mxu0 0
    %164 = vmatprep.subr.bf16.mxu0 0
    %165 = vmatpush1.bf16.msra.mxu0 0
    %166 = vmatprep.subr.bf16.mxu0 0
    %167 = vmatpush1.bf16.msra.mxu0 0
    %168 = vmatprep.subr.bf16.mxu0 0
    %169 = vmatpush1.bf16.msra.mxu0 0
    %170 = vmatprep.subr.bf16.mxu0 0
    %171 = vmatpush1.bf16.msra.mxu0 0
    %172 = vmatprep.subr.bf16.mxu0 0
    %173 = vmatpush1.bf16.msra.mxu0 0
    %174 = vmatprep.subr.bf16.mxu0 0
    %175 = vmatpush1.bf16.msra.mxu0 0
    %176 = vmatprep.subr.bf16.mxu0 0
    %177 = vmatpush1.bf16.msra.mxu0 0
    %178 = vmatprep.subr.bf16.mxu0 0
    %179 = vmatpush1.bf16.msra.mxu0 0
    %180 = vmatprep.subr.bf16.mxu0 0
    %181 = vmatpush1.bf16.msra.mxu0 0
    %182 = vmatprep.subr.bf16.mxu0 0
    %183 = vmatpush1.bf16.msra.mxu0 0
    %184 = vmatprep.subr.bf16.mxu0 0
    %185 = vmatpush1.bf16.msra.mxu0 0
    %186 = vmatprep.subr.bf16.mxu0 0
    %187 = vmatpush1.bf16.msra.mxu0 0
    %188 = vmatprep.mubr.bf16.mxu0 0
    %189 = vmatmul.mubr.bf16.gmra.mrb[0].mxu0 %v154
    %v190 = vpop.f32.mrb[0].mxu0
    %v191 = vadd.f32 %v139, %v190
    %v192 = vpop.f32.mrb[0].mxu0
    %v193 = vpop.f32.mrb[0].mxu0
    %v194 = vadd.f32 %v139, %v193
    %v195 = vpop.f32.mrb[0].mxu0
    %196 = vdwg.mxu0
    %v197 = vmul.f32 %v191, 0.5
    %v198 = vmul.f32 %v194, 0.5
    %v199 = vmul.f32 %v191, %v191
    %v200 = vmul.f32 %v194, %v194
    %v201 = vmul.f32 %v199, %v191
    %v202 = vmul.f32 %v200, %v194
    %v203 = vmul.f32 %v201, 0.044715
    %v204 = vmul.f32 %v202, 0.044715
    %v205 = vadd.f32 %v191, %v203
    %v206 = vadd.f32 %v194, %v204
    %v207 = vmul.f32 %v205, 0.7978846
    %v208 = vmul.f32 %v206, 0.7978846
    %v209 = vtanh.pop %v207
    %v210 = vtanh.pop %v208
    %v211 = vadd.f32 %v209, 1.0
    %v212 = vadd.f32 %v210, 1.0
    %v213 = vmul.f32 %v197, %v211
    %v214 = vmul.f32 %v198, %v212
    %v215 = vpack.c.bf16 %v214, %v213
    %v216 = vld [vmem:[#allocation10] sm:$0xf]
    %v217 = vld [vmem:[#allocation10 + $0x4] sm:$0xf]
    %v218 = vld [vmem:[#allocation10 + $0x8] sm:$0xf]
    %v219 = vld [vmem:[#allocation10 + $0xc] sm:$0xf]
    %v220 = vld [vmem:[#allocation10 + $0x10] sm:$0xf]
    %v221 = vld [vmem:[#allocation10 + $0x14] sm:$0xf]
    %v222 = vld [vmem:[#allocation10 + $0x18] sm:$0xf]
    %v223 = vld [vmem:[#allocation10 + $0x1c] sm:$0xf]
    %v224 = vld [vmem:[#allocation10 + $0x20] sm:$0xf]
    %v225 = vld [vmem:[#allocation10 + $0x24] sm:$0xf]
    %v226 = vld [vmem:[#allocation10 + $0x28] sm:$0xf]
    %v227 = vld [vmem:[#allocation10 + $0x2c] sm:$0xf]
    %v228 = vld [vmem:[#allocation10 + $0x30] sm:$0xf]
    %v229 = vld [vmem:[#allocation10 + $0x34] sm:$0xf]
    %v230 = vld [vmem:[#allocation10 + $0x38] sm:$0xf]
    %v231 = vld [vmem:[#allocation10 + $0x3c] sm:$0xf]
    %v232 = vld [vmem:[#allocation11] sm:$0x1]
    %v234 = vlaneseq
    %v235 = vshrl.u32 %v234, 7
    %v236 = vsub.s32 0, %v235
    %v237 = vrot.slane %v232, %v236
    %v255 = vunpack.c.l.b16 %v216
    %v256 = vunpack.c.l.b16 %v217
    %v257 = vunpack.c.l.b16 %v218
    %v258 = vunpack.c.l.b16 %v219
    %v259 = vunpack.c.l.b16 %v220
    %v260 = vunpack.c.l.b16 %v221
    %v261 = vunpack.c.l.b16 %v222
    %v262 = vunpack.c.l.b16 %v223
    %v263 = vunpack.c.l.b16 %v224
    %v264 = vunpack.c.l.b16 %v225
    %v265 = vunpack.c.l.b16 %v226
    %v266 = vunpack.c.l.b16 %v227
    %v267 = vunpack.c.l.b16 %v228
    %v268 = vunpack.c.l.b16 %v229
    %v269 = vunpack.c.l.b16 %v230
    %v270 = vunpack.c.l.b16 %v231
    %v271 = vpack.c.b16 %v256, %v255
    %v272 = vpack.c.b16 %v258, %v257
    %v273 = vpack.c.b16 %v260, %v259
    %v274 = vpack.c.b16 %v262, %v261
    %v275 = vpack.c.b16 %v264, %v263
    %v276 = vpack.c.b16 %v266, %v265
    %v277 = vpack.c.b16 %v268, %v267
    %v278 = vpack.c.b16 %v270, %v269
    %287 = vmatprep.subr.bf16.mxu0 0
    %288 = vmatpush1.bf16.msra.mxu0 %v271
    %289 = vmatprep.subr.bf16.mxu0 0
    %290 = vmatpush1.bf16.msra.mxu0 %v272
    %291 = vmatprep.subr.bf16.mxu0 0
    %292 = vmatpush1.bf16.msra.mxu0 %v273
    %293 = vmatprep.subr.bf16.mxu0 0
    %294 = vmatpush1.bf16.msra.mxu0 %v274
    %295 = vmatprep.subr.bf16.mxu0 0
    %296 = vmatpush1.bf16.msra.mxu0 %v275
    %297 = vmatprep.subr.bf16.mxu0 0
    %298 = vmatpush1.bf16.msra.mxu0 %v276
    %299 = vmatprep.subr.bf16.mxu0 0
    %300 = vmatpush1.bf16.msra.mxu0 %v277
    %301 = vmatprep.subr.bf16.mxu0 0
    %302 = vmatpush1.bf16.msra.mxu0 %v278
    %303 = vmatprep.subr.bf16.mxu0 0
    %304 = vmatpush1.bf16.msra.mxu0 0
    %305 = vmatprep.subr.bf16.mxu0 0
    %306 = vmatpush1.bf16.msra.mxu0 0
    %307 = vmatprep.subr.bf16.mxu0 0
    %308 = vmatpush1.bf16.msra.mxu0 0
    %309 = vmatprep.subr.bf16.mxu0 0
    %310 = vmatpush1.bf16.msra.mxu0 0
    %311 = vmatprep.subr.bf16.mxu0 0
    %312 = vmatpush1.bf16.msra.mxu0 0
    %313 = vmatprep.subr.bf16.mxu0 0
    %314 = vmatpush1.bf16.msra.mxu0 0
    %315 = vmatprep.subr.bf16.mxu0 0
    %316 = vmatpush1.bf16.msra.mxu0 0
    %317 = vmatprep.subr.bf16.mxu0 0
    %318 = vmatpush1.bf16.msra.mxu0 0
    %319 = vmatprep.mubr.bf16.mxu0 0
    %320 = vmatmul.mubr.bf16.gmra.mrb[0].mxu0 %v215
    %v321 = vpop.f32.mrb[0].mxu0
    %v322 = vadd.f32 %v237, %v321
    %v323 = vpop.f32.mrb[0].mxu0
    %v324 = vpop.f32.mrb[0].mxu0
    %v325 = vadd.f32 %v237, %v324
    %v326 = vpop.f32.mrb[0].mxu0
    %327 = vdwg.mxu0
    %328 = vst.msk [vmem:[#allocation13] sm:$0xff] %vm105, %v322
    %329 = vst.msk [vmem:[#allocation13 + $0x8] sm:$0xff] %vm105, %v325
    // Predicated region
    $region50: #{encoder_forward.24} parent=1 // pred_check
      _
    $region51: #{encoder_forward.24} parent=1 // pred_check_branch
      %331 = sbr.rel (0) target = $region53
    $region52: #{encoder_forward.24} parent=1 // pred_region
      %s333 = ssub.s32 256, 256
      %334 = vsyncadd [#allocation4], %s333
      %s335 = sshll.u32 [#allocation13], 4
      %s336 = int_to_ptr.vmem [resolvable:$true] %s335
      %341 = dma.vmem_to_hbm [thread:$0]  %s336, 256, %s6, [#allocation4], 128, 128, 8
    $region53: #{encoder_forward.24} parent=1 // pred_fallthru
      _
    // Predicated region
    $region54: #{encoder_forward.24} parent=1 // pred_check
      _
    $region55: #{encoder_forward.24} parent=1 // pred_check_branch
      %343 = sbr.rel (0) target = $region57
    $region56: #{encoder_forward.24} parent=1 // pred_region
      %344 = dma.done [#allocation4], 256
    $region57: #{encoder_forward.24} parent=1 // pred_fallthru
      _
    %345 = vsyncpa [#allocation3], 1
    %346 = vsyncpa [#allocation6], 1
    %347 = vsyncpa [#allocation9], 1
    %348 = vsyncpa [#allocation12], 1
    %349 = vsyncpa [#allocation4], 1

// kernel: encoder_forward.22
$region0: #{encoder_forward.22}
  #allocation0 [shape = 'u32[]', space=smem, size = 0x4, offset = 0x4, fixed_abs, tag = 'smem constant byte address 0x4 - core index']
  #allocation1 [shape = 'u32[144,128]{1,0:T(1,128)}', space=vmem, size = 0x12000, scoped, tag = 'internal scratch']
  %s0 = inlined_call_operand.hbm [shape: bf16[2,8,64], index: 0, kind: input, shape index: {}]
  %s1 = inlined_call_operand.hbm [shape: bf16[2,16,128], index: 1, kind: input, shape index: {}]
  %s2 = inlined_call_operand.hbm [shape: f32[8,32], index: 2, kind: input, shape index: {}]
  %s3 = inlined_call_operand.hbm [shape: f32[8,32], index: 3, kind: input, shape index: {}]
  %s4 = inlined_call_operand.hbm [shape: f32[16,32], index: 4, kind: input, shape index: {}]
  %s5 = inlined_call_operand.hbm [shape: f32[16,32], index: 5, kind: input, shape index: {}]
  %s6 = inlined_call_operand.hbm [shape: bf16[2,8,64], index: 6, kind: output, shape index: {}]
  %s7 = sld [smem:[#allocation0]]
  $region81: #{encoder_forward.22} parent=0
    _
  %s9 = ssub.s32 1, %s7
  %s10 = scalar_select 0, %s9, %s7
  $region1: #{encoder_forward.22} parent=0
    #allocation2 [shape = 'u8[4096]{0}', space=vmem, size = 0x1000, scoped, tag = 'input window, operand 0']
    #allocation3 [shape = 's32[2]{0}', space=sflag, size = 0x8, scoped, tag = 'scoped memory for encoder_forward.22']
    #allocation4 [shape = 's32[2]{0}', space=sflag, size = 0x8, scoped, tag = 'scoped memory for encoder_forward.22']
    #allocation5 [shape = 'u8[8192]{0}', space=vmem, size = 0x2000, scoped, tag = 'input window, operand 1']
    #allocation6 [shape = 's32[2]{0}', space=sflag, size = 0x8, scoped, tag = 'scoped memory for encoder_forward.22']
    #allocation7 [shape = 'u8[4096]{0}', space=vmem, size = 0x1000, scoped, tag = 'input window, operand 2, single buffered']
    #allocation8 [shape = 'u8[4096]{0}', space=vmem, size = 0x1000, scoped, tag = 'input window, operand 3, single buffered']
    #allocation9 [shape = 's32[1]{0}', space=sflag, size = 0x4, scoped, tag = 'scoped memory for encoder_forward.22']
    #allocation10 [shape = 'u8[8192]{0}', space=vmem, size = 0x2000, scoped, tag = 'input window, operand 4, single buffered']
    #allocation11 [shape = 'u8[8192]{0}', space=vmem, size = 0x2000, scoped, tag = 'input window, operand 5, single buffered']
    #allocation12 [shape = 's32[1]{0}', space=sflag, size = 0x4, scoped, tag = 'scoped memory for encoder_forward.22']
    #allocation13 [shape = 'u8[4096]{0}', space=vmem, size = 0x1000, scoped, tag = 'output window, operand 0']
    %11 = vsyncpa [#allocation3], 0
    %s12 = scalar_lea.sflag [#allocation3], 1
    %13 = vsyncpa %s12, 0
    %14 = vsyncpa [#allocation6], 0
    %s15 = scalar_lea.sflag [#allocation6], 1
    %16 = vsyncpa %s15, 0
    %17 = vsyncpa [#allocation9], 0
    %18 = vsyncpa [#allocation12], 0
    %19 = vsyncpa [#allocation4], 0
    %s20 = scalar_lea.sflag [#allocation4], 1
    %21 = vsyncpa %s20, 0
    loop: start=0, step=1, limit=4
    $region2: #{encoder_forward.22} parent=1 // loop_pre_header
      _
    $region3: #{encoder_forward.22} parent=1 // loop_header
      %s23 = sphi 0, %s27
      %p24 = scmp.ge.s32.totalorder %s23, 4
      %s33 = sphi 0, %s35
      %s36 = sphi 0, %s33
      %s37 = sphi 0, %s36
      %s53 = sphi 0, %s37
      %s59 = sphi 0, %s61
      %s62 = sphi 0, %s59
      %s63 = sphi 0, %s62
      %s79 = sphi 0, %s63
      %s83 = sphi 0, %s83
      %s85 = sphi 0, %s83
      %s86 = sphi 0, %s85
      %s100 = sphi 0, %s86
      %s104 = sphi 0, %s104
      %s106 = sphi 0, %s104
      %s107 = sphi 0, %s106
      %s121 = sphi 0, %s107
      %s125 = sphi 0, %s125
      %s127 = sphi 0, %s125
      %s128 = sphi 0, %s127
      %s142 = sphi 0, %s128
      %s146 = sphi 0, %s146
      %s148 = sphi 0, %s146
      %s149 = sphi 0, %s148
      %s163 = sphi 0, %s149
      %s169 = sphi 0, %s171
      %s172 = sphi 0, %s169
      %s173 = sphi 0, %s172
      %s189 = sphi 0, %s173
    $region4: #{encoder_forward.22} parent=1 // loop_header_branch
      %26 = sbr.rel (%p24) target = $region8
    $region5: #{encoder_forward.22} parent=1 // loop_body
      %s28 = ssub.s32 %s23, 1
      %s29 = ssub.s32 %s23, 2
      %s30 = sadd.s32 %s23, 1
      %s31 = ssub.s32 %s23, %s30
      %p32 = scmp.eq.s32.totalorder %s31, 0
      %s34 = sadd.s32 %s33, 1
      %s35 = scalar_select %p32, %s33, %s34
      %p38 = pneg %p32
      %p39 = scmp.eq.s32.totalorder %s23, 1
      %p40 = por %p38, %p39
      %p41 = scmp.ne.s32.totalorder %s33, %s36
      %p42 = scmp.eq.s32.totalorder %s23, 0
      %p43 = por %p41, %p42
      %p44 = scmp.ne.s32.totalorder %s33, %s36
      %p45 = scmp.eq.s32.totalorder %s28, 1
      %p46 = por %p44, %p45
      %p47 = scmp.ne.s32.totalorder %s36, %s37
      %p48 = scmp.eq.s32.totalorder %s28, 0
      %p49 = por %p47, %p48
      %p50 = scmp.ne.s32.totalorder %s36, %s37
      %p51 = scmp.eq.s32.totalorder %s29, 1
      %p52 = por %p50, %p51
      %p54 = scmp.ne.s32.totalorder %s37, %s53
      %p55 = scmp.eq.s32.totalorder %s29, 0
      %p56 = por %p54, %p55
      %s57 = ssub.s32 %s23, %s30
      %p58 = scmp.eq.s32.totalorder %s57, 0
      %s60 = sadd.s32 %s59, 1
      %s61 = scalar_select %p58, %s59, %s60
      %p64 = pneg %p58
      %p65 = scmp.eq.s32.totalorder %s23, 1
      %p66 = por %p64, %p65
      %p67 = scmp.ne.s32.totalorder %s59, %s62
      %p68 = scmp.eq.s32.totalorder %s23, 0
      %p69 = por %p67, %p68
      %p70 = scmp.ne.s32.totalorder %s59, %s62
      %p71 = scmp.eq.s32.totalorder %s28, 1
      %p72 = por %p70, %p71
      %p73 = scmp.ne.s32.totalorder %s62, %s63
      %p74 = scmp.eq.s32.totalorder %s28, 0
      %p75 = por %p73, %p74
      %p76 = scmp.ne.s32.totalorder %s62, %s63
      %p77 = scmp.eq.s32.totalorder %s29, 1
      %p78 = por %p76, %p77
      %p80 = scmp.ne.s32.totalorder %s63, %s79
      %p81 = scmp.eq.s32.totalorder %s29, 0
      %p82 = por %p80, %p81
      %s84 = sadd.s32 %s83, 1
      %p87 = scmp.eq.s32.totalorder %s23, 1
      %p88 = scmp.ne.s32.totalorder %s83, %s85
      %p89 = scmp.eq.s32.totalorder %s23, 0
      %p90 = por %p88, %p89
      %p91 = scmp.ne.s32.totalorder %s83, %s85
      %p92 = scmp.eq.s32.totalorder %s28, 1
      %p93 = por %p91, %p92
      %p94 = scmp.ne.s32.totalorder %s85, %s86
      %p95 = scmp.eq.s32.totalorder %s28, 0
      %p96 = por %p94, %p95
      %p97 = scmp.ne.s32.totalorder %s85, %s86
      %p98 = scmp.eq.s32.totalorder %s29, 1
      %p99 = por %p97, %p98
      %p101 = scmp.ne.s32.totalorder %s86, %s100
      %p102 = scmp.eq.s32.totalorder %s29, 0
      %p103 = por %p101, %p102
      %s105 = sadd.s32 %s104, 1
      %p108 = scmp.eq.s32.totalorder %s23, 1
      %p109 = scmp.ne.s32.totalorder %s104, %s106
      %p110 = scmp.eq.s32.totalorder %s23, 0
      %p111 = por %p109, %p110
      %p112 = scmp.ne.s32.totalorder %s104, %s106
      %p113 = scmp.eq.s32.totalorder %s28, 1
      %p114 = por %p112, %p113
      %p115 = scmp.ne.s32.totalorder %s106, %s107
      %p116 = scmp.eq.s32.totalorder %s28, 0
      %p117 = por %p115, %p116
      %p118 = scmp.ne.s32.totalorder %s106, %s107
      %p119 = scmp.eq.s32.totalorder %s29, 1
      %p120 = por %p118, %p119
      %p122 = scmp.ne.s32.totalorder %s107, %s121
      %p123 = scmp.eq.s32.totalorder %s29, 0
      %p124 = por %p122, %p123
      %s126 = sadd.s32 %s125, 1
      %p129 = scmp.eq.s32.totalorder %s23, 1
      %p130 = scmp.ne.s32.totalorder %s125, %s127
      %p131 = scmp.eq.s32.totalorder %s23, 0
      %p132 = por %p130, %p131
      %p133 = scmp.ne.s32.totalorder %s125, %s127
      %p134 = scmp.eq.s32.totalorder %s28, 1
      %p135 = por %p133, %p134
      %p136 = scmp.ne.s32.totalorder %s127, %s128
      %p137 = scmp.eq.s32.totalorder %s28, 0
      %p138 = por %p136, %p137
      %p139 = scmp.ne.s32.totalorder %s127, %s128
      %p140 = scmp.eq.s32.totalorder %s29, 1
      %p141 = por %p139, %p140
      %p143 = scmp.ne.s32.totalorder %s128, %s142
      %p144 = scmp.eq.s32.totalorder %s29, 0
      %p145 = por %p143, %p144
      %s147 = sadd.s32 %s146, 1
      %p150 = scmp.eq.s32.totalorder %s23, 1
      %p151 = scmp.ne.s32.totalorder %s146, %s148
      %p152 = scmp.eq.s32.totalorder %s23, 0
      %p153 = por %p151, %p152
      %p154 = scmp.ne.s32.totalorder %s146, %s148
      %p155 = scmp.eq.s32.totalorder %s28, 1
      %p156 = por %p154, %p155
      %p157 = scmp.ne.s32.totalorder %s148, %s149
      %p158 = scmp.eq.s32.totalorder %s28, 0
      %p159 = por %p157, %p158
      %p160 = scmp.ne.s32.totalorder %s148, %s149
      %p161 = scmp.eq.s32.totalorder %s29, 1
      %p162 = por %p160, %p161
      %p164 = scmp.ne.s32.totalorder %s149, %s163
      %p165 = scmp.eq.s32.totalorder %s29, 0
      %p166 = por %p164, %p165
      %s167 = ssub.s32 %s23, %s30
      %p168 = scmp.eq.s32.totalorder %s167, 0
      %s170 = sadd.s32 %s169, 1
      %s171 = scalar_select %p168, %s169, %s170
      %p174 = pneg %p168
      %p175 = scmp.eq.s32.totalorder %s23, 1
      %p176 = por %p174, %p175
      %p177 = scmp.ne.s32.totalorder %s169, %s172
      %p178 = scmp.eq.s32.totalorder %s23, 0
      %p179 = por %p177, %p178
      %p180 = scmp.ne.s32.totalorder %s169, %s172
      %p181 = scmp.eq.s32.totalorder %s28, 1
      %p182 = por %p180, %p181
      %p183 = scmp.ne.s32.totalorder %s172, %s173
      %p184 = scmp.eq.s32.totalorder %s28, 0
      %p185 = por %p183, %p184
      %p186 = scmp.ne.s32.totalorder %s172, %s173
      %p187 = scmp.eq.s32.totalorder %s29, 1
      %p188 = por %p186, %p187
      %p190 = scmp.ne.s32.totalorder %s173, %s189
      %p191 = scmp.eq.s32.totalorder %s29, 0
      %p192 = por %p190, %p191
      %p193 = scmp.le.s32.totalorder 1, %s23
      %p194 = scmp.lt.s32.totalorder %s23, 3
      %p195 = pnand %p193, %p194
      %p196 = pneg %p195
      // Predicated region
      $region9: #{encoder_forward.22} parent=5 // pred_check
        _
      $region10: #{encoder_forward.22} parent=5 // pred_check_branch
        %198 = sbr.rel (%p195) target = $region12
      $region11: #{encoder_forward.22} parent=5 // pred_region
        %s199 = ssub.s32 %s23, 1
        // Predicated region
        $region13: #{encoder_forward.22} parent=11 // pred_check
          %p200 = pneg %p96
        $region14: #{encoder_forward.22} parent=11 // pred_check_branch
          %202 = sbr.rel (%p200) target = $region16
        $region15: #{encoder_forward.22} parent=11 // pred_region
          %s204 = ssub.s32 128, 128
          %205 = vsyncadd [#allocation6], %s204
          %s207 = sshll.u32 [#allocation7], 4
          %s208 = int_to_ptr.vmem [resolvable:$true] %s207
          %210 = dma.hbm_to_vmem [thread:$0]  %s2, 128, %s208, [#allocation6]
        $region16: #{encoder_forward.22} parent=11 // pred_fallthru
          _
        // Predicated region
        $region17: #{encoder_forward.22} parent=11 // pred_check
          %p211 = pneg %p117
        $region18: #{encoder_forward.22} parent=11 // pred_check_branch
          %213 = sbr.rel (%p211) target = $region20
        $region19: #{encoder_forward.22} parent=11 // pred_region
          %s215 = ssub.s32 128, 128
          %216 = vsyncadd [#allocation9], %s215
          %s218 = sshll.u32 [#allocation8], 4
          %s219 = int_to_ptr.vmem [resolvable:$true] %s218
          %221 = dma.hbm_to_vmem [thread:$0]  %s3, 128, %s219, [#allocation9]
        $region20: #{encoder_forward.22} parent=11 // pred_fallthru
          _
        // Predicated region
        $region21: #{encoder_forward.22} parent=11 // pred_check
          %p222 = pneg %p138
        $region22: #{encoder_forward.22} parent=11 // pred_check_branch
          %224 = sbr.rel (%p222) target = $region24
        $region23: #{encoder_forward.22} parent=11 // pred_region
          %s226 = ssub.s32 256, 256
          %227 = vsyncadd [#allocation9], %s226
          %s228 = sshll.u32 [#allocation10], 4
          %s229 = int_to_ptr.vmem [resolvable:$true] %s228
          %234 = dma.hbm_to_vmem [thread:$0]  %s4, 256, %s229, [#allocation9], 128, 128, 8
        $region24: #{encoder_forward.22} parent=11 // pred_fallthru
          _
        // Predicated region
        $region25: #{encoder_forward.22} parent=11 // pred_check
          %p235 = pneg %p159
        $region26: #{encoder_forward.22} parent=11 // pred_check_branch
          %237 = sbr.rel (%p235) target = $region28
        $region27: #{encoder_forward.22} parent=11 // pred_region
          %s239 = ssub.s32 256, 256
          %240 = vsyncadd [#allocation12], %s239
          %s241 = sshll.u32 [#allocation11], 4
          %s242 = int_to_ptr.vmem [resolvable:$true] %s241
          %247 = dma.hbm_to_vmem [thread:$0]  %s5, 256, %s242, [#allocation12], 128, 128, 8
        $region28: #{encoder_forward.22} parent=11 // pred_fallthru
          _
      $region12: #{encoder_forward.22} parent=5 // pred_fallthru
        _
      %p248 = scmp.lt.s32.totalorder %s23, 2
      // Predicated region
      $region29: #{encoder_forward.22} parent=5 // pred_check
        %p249 = pneg %p248
      $region30: #{encoder_forward.22} parent=5 // pred_check_branch
        %251 = sbr.rel (%p249) target = $region32
      $region31: #{encoder_forward.22} parent=5 // pred_region
        // Predicated region
        $region33: #{encoder_forward.22} parent=31 // pred_check
          %p252 = pneg %p43
        $region34: #{encoder_forward.22} parent=31 // pred_check_branch
          %254 = sbr.rel (%p252) target = $region36
        $region35: #{encoder_forward.22} parent=31 // pred_region
          %s255 = sand.u32 %s33, 1
          %s256 = scalar_lea.sflag [#allocation3], %s255
          %s257 = sand.u32 %s33, 1
          %s258 = smul.addr %s257, 4
          %s259 = scalar_lea.vmem [#allocation2], %s258
          %s261 = ssub.s32 64, 64
          %262 = vsyncadd %s256, %s261
          %s263 = smul.addr %s23, 64
          %s264 = scalar_lea.hbm %s0, %s263
          %s266 = sshll.u32 %s259, 4
          %s267 = int_to_ptr.vmem [resolvable:$true] %s266
          %269 = dma.hbm_to_vmem [thread:$0]  %s264, 64, %s267, %s256
        $region36: #{encoder_forward.22} parent=31 // pred_fallthru
          _
        // Predicated region
        $region37: #{encoder_forward.22} parent=31 // pred_check
          %p270 = pneg %p69
        $region38: #{encoder_forward.22} parent=31 // pred_check_branch
          %272 = sbr.rel (%p270) target = $region40
        $region39: #{encoder_forward.22} parent=31 // pred_region
          %s273 = sand.u32 %s23, 1
          %s274 = scalar_lea.sflag [#allocation6], %s273
          %s275 = sand.u32 %s59, 1
          %s276 = smul.addr %s275, 8
          %s277 = scalar_lea.vmem [#allocation5], %s276
          %s279 = ssub.s32 128, 128
          %280 = vsyncadd %s274, %s279
          %s281 = smul.addr %s23, 2
          %s282 = smul.addr %s281, 64
          %s283 = scalar_lea.hbm %s1, %s282
          %s284 = sshll.u32 %s277, 4
          %s285 = int_to_ptr.vmem [resolvable:$true] %s284
          %290 = dma.hbm_to_vmem [thread:$0]  %s283, 128, %s285, %s274, 64, 64, 4
        $region40: #{encoder_forward.22} parent=31 // pred_fallthru
          _
      $region32: #{encoder_forward.22} parent=5 // pred_fallthru
        _
      %p291 = scmp.le.s32.totalorder 1, %s23
      %p292 = scmp.lt.s32.totalorder %s23, 3
      %p293 = pnand %p291, %p292
      %p294 = pneg %p293
      // Predicated region
      $region41: #{encoder_forward.22} parent=5 // pred_check
        _
      $region42: #{encoder_forward.22} parent=5 // pred_check_branch
        %296 = sbr.rel (%p293) target = $region44
      $region43: #{encoder_forward.22} parent=5 // pred_region
        %s297 = ssub.s32 %s23, 1
        %s298 = sand.u32 %s36, 1
        %s299 = scalar_lea.sflag [#allocation3], %s298
        %s300 = sand.u32 %s36, 1
        %s301 = smul.addr %s300, 4
        %s302 = scalar_lea.vmem [#allocation2], %s301
        // Predicated region
        $region45: #{encoder_forward.22} parent=43 // pred_check
          %p303 = pneg %p49
        $region46: #{encoder_forward.22} parent=43 // pred_check_branch
          %305 = sbr.rel (%p303) target = $region48
        $region47: #{encoder_forward.22} parent=43 // pred_region
          %306 = dma.done %s299, 64
        $region48: #{encoder_forward.22} parent=43 // pred_fallthru
          _
        %s307 = sand.u32 %s28, 1
        %s308 = scalar_lea.sflag [#allocation6], %s307
        %s309 = sand.u32 %s62, 1
        %s310 = smul.addr %s309, 8
        %s311 = scalar_lea.vmem [#allocation5], %s310
        // Predicated region
        $region49: #{encoder_forward.22} parent=43 // pred_check
          %p312 = pneg %p75
        $region50: #{encoder_forward.22} parent=43 // pred_check_branch
          %314 = sbr.rel (%p312) target = $region52
        $region51: #{encoder_forward.22} parent=43 // pred_region
          %315 = dma.done %s308, 128
        $region52: #{encoder_forward.22} parent=43 // pred_fallthru
          _
        // Predicated region
        $region53: #{encoder_forward.22} parent=43 // pred_check
          %p316 = pneg %p96
        $region54: #{encoder_forward.22} parent=43 // pred_check_branch
          %318 = sbr.rel (%p316) target = $region56
        $region55: #{encoder_forward.22} parent=43 // pred_region
          %319 = dma.done [#allocation6], 128
        $region56: #{encoder_forward.22} parent=43 // pred_fallthru
          _
        // Predicated region
        $region57: #{encoder_forward.22} parent=43 // pred_check
          %p320 = pneg %p117
        $region58: #{encoder_forward.22} parent=43 // pred_check_branch
          %322 = sbr.rel (%p320) target = $region60
        $region59: #{encoder_forward.22} parent=43 // pred_region
          %323 = dma.done [#allocation9], 128
        $region60: #{encoder_forward.22} parent=43 // pred_fallthru
          _
        // Predicated region
        $region61: #{encoder_forward.22} parent=43 // pred_check
          %p324 = pneg %p138
        $region62: #{encoder_forward.22} parent=43 // pred_check_branch
          %326 = sbr.rel (%p324) target = $region64
        $region63: #{encoder_forward.22} parent=43 // pred_region
          %327 = dma.done [#allocation9], 256
        $region64: #{encoder_forward.22} parent=43 // pred_fallthru
          _
        // Predicated region
        $region65: #{encoder_forward.22} parent=43 // pred_check
          %p328 = pneg %p159
        $region66: #{encoder_forward.22} parent=43 // pred_check_branch
          %330 = sbr.rel (%p328) target = $region68
        $region67: #{encoder_forward.22} parent=43 // pred_region
          %331 = dma.done [#allocation12], 256
        $region68: #{encoder_forward.22} parent=43 // pred_fallthru
          _
        %s332 = sand.u32 %s36, 1
        %s333 = scalar_lea.sflag [#allocation3], %s332
        %s334 = sand.u32 %s36, 1
        %s335 = smul.addr %s334, 4
        %s336 = scalar_lea.vmem [#allocation2], %s335
        %p337 = pneg %p49
        %p338 = pneg %p46
        %s339 = sand.u32 %s28, 1
        %s340 = scalar_lea.sflag [#allocation6], %s339
        %s341 = sand.u32 %s62, 1
        %s342 = smul.addr %s341, 8
        %s343 = scalar_lea.vmem [#allocation5], %s342
        %p344 = pneg %p75
        %p345 = pneg %p72
        %p346 = pneg %p96
        %p347 = pneg %p93
        %p348 = pneg %p117
        %p349 = pneg %p114
        %p350 = pneg %p138
        %p351 = pneg %p135
        %p352 = pneg %p159
        %p353 = pneg %p156
        %p354 = pneg %p185
        %p355 = pneg %p182
        %s356 = sand.u32 %s172, 1
        %s357 = scalar_lea.sflag [#allocation4], %s356
        %s358 = sand.u32 %s172, 1
        %s359 = smul.addr %s358, 4
        %s360 = scalar_lea.vmem [#allocation13], %s359
        %v362 = vld [vmem:[%s302] sm:$0xf]
        %v363 = vld [vmem:[%s311] sm:$0xf]
        %v364 = vld [vmem:[%s311 + $0x4] sm:$0xf]
        %v365 = vld [vmem:[#allocation7] sm:$0xff]
        %v366 = vld [vmem:[#allocation8] sm:$0xff]
        %v367 = vld [vmem:[#allocation10] sm:$0xff]
        %v368 = vld [vmem:[#allocation10 + $0x8] sm:$0xff]
        %v369 = vld [vmem:[#allocation11] sm:$0xff]
        %v370 = vld [vmem:[#allocation11 + $0x8] sm:$0xff]
        %v371 = vsub.bf16 0, %v362
        %v373 = vunpack.c.l.b16 %v371
        %v374 = vpack.c.b16 %v373, %v373
        %375 = vrot.lane.b32.xlu0 %v374, 112
        %v376 = vpop.permute.xlu0 %375
        %v378 = vunpack.c.l.b16 %v362
        %v379 = vpack.c.b16 %v378, %v378
        %380 = vrot.lane.b32.xlu0 %v379, 16
        %v381 = vpop.permute.xlu0 %380
        %vm382 = vcmask 130048
        %v385 = vsel %vm382, %v376, %v381
        %v387 = vunpack.c.l.bf16 %v362
        %v388 = vmul.f32 %v387, %v365
        %v389 = vunpack.c.l.bf16 %v385
        %v390 = vmul.f32 %v389, %v366
        %v391 = vadd.f32 %v388, %v390
        %v392 = vpack.c.bf16 %v391, %v391
        %v393 = vsub.bf16 0, %v363
        %v394 = vsub.bf16 0, %v364
        %v397 = vunpack.c.l.b16 %v393
        %v398 = vunpack.c.l.b16 %v394
        %v399 = vpack.c.b16 %v398, %v397
        %400 = vrot.lane.b32.xlu0 %v399, 112
        %v401 = vpop.permute.xlu0 %400
        %v404 = vunpack.c.l.b16 %v363
        %v405 = vunpack.c.l.b16 %v364
        %v406 = vpack.c.b16 %v405, %v404
        %407 = vrot.lane.b32.xlu0 %v406, 16
        %v408 = vpop.permute.xlu0 %407
        %v411 = vsel %vm382, %v401, %v408
        %v413 = vunpack.c.l.bf16 %v363
        %v414 = vunpack.c.l.bf16 %v364
        %v415 = vmul.f32 %v413, %v367
        %v416 = vmul.f32 %v414, %v368
        %v417 = vunpack.c.l.bf16 %v411
        %v418 = vunpack.c.h.bf16 %v411
        %v419 = vmul.f32 %v417, %v369
        %v420 = vmul.f32 %v418, %v370
        %v421 = vadd.f32 %v415, %v419
        %v422 = vadd.f32 %v416, %v420
        %v423 = vpack.c.bf16 %v422, %v421
        %vm424 = vcmask 261120
        %v426 = vsel %vm424, %v392, 0
        %v429 = vsel %vm424, %v423, 0
        %431 = vmatprep.subr.bf16.mxu0 0
        %432 = vmatpush1.bf16.xpose.msra.mxu0 %v429
        %433 = vmatprep.subr.bf16.mxu0 0
        %434 = vmatpush1.bf16.xpose.msra.mxu0 0
        %435 = vmatprep.subr.bf16.mxu0 0
        %436 = vmatpush1.bf16.xpose.msra.mxu0 0
        %437 = vmatprep.subr.bf16.mxu0 0
        %438 = vmatpush1.bf16.xpose.msra.mxu0 0
        %439 = vmatprep.subr.bf16.mxu0 0
        %440 = vmatpush1.bf16.xpose.msra.mxu0 0
        %441 = vmatprep.subr.bf16.mxu0 0
        %442 = vmatpush1.bf16.xpose.msra.mxu0 0
        %443 = vmatprep.subr.bf16.mxu0 0
        %444 = vmatpush1.bf16.xpose.msra.mxu0 0
        %445 = vmatprep.subr.bf16.mxu0 0
        %446 = vmatpush1.bf16.xpose.msra.mxu0 0
        %447 = vmatprep.subr.bf16.mxu0 0
        %448 = vmatpush1.bf16.xpose.msra.mxu0 0
        %449 = vmatprep.subr.bf16.mxu0 0
        %450 = vmatpush1.bf16.xpose.msra.mxu0 0
        %451 = vmatprep.subr.bf16.mxu0 0
        %452 = vmatpush1.bf16.xpose.msra.mxu0 0
        %453 = vmatprep.subr.bf16.mxu0 0
        %454 = vmatpush1.bf16.xpose.msra.mxu0 0
        %455 = vmatprep.subr.bf16.mxu0 0
        %456 = vmatpush1.bf16.xpose.msra.mxu0 0
        %457 = vmatprep.subr.bf16.mxu0 0
        %458 = vmatpush1.bf16.xpose.msra.mxu0 0
        %459 = vmatprep.subr.bf16.mxu0 0
        %460 = vmatpush1.bf16.xpose.msra.mxu0 0
        %461 = vmatprep.subr.bf16.mxu0 0
        %462 = vmatpush1.bf16.xpose.msra.mxu0 0
        %463 = vmatprep.mubr.bf16.mxu0 0
        %464 = vmatmul.mubr.bf16.gmra.mrb[0].mxu0 %v426
        %v465 = vpop.f32.mrb[0].mxu0
        %v466 = vadd.f32 0.0, %v465
        %v467 = vpop.f32.mrb[0].mxu0
        %v468 = vpop.f32.mrb[0].mxu0
        %v469 = vpop.f32.mrb[0].mxu0
        %470 = vdwg.mxu0
        %v471 = vsel %vm382, %v466, -inf
        %472 = vmax.xlane.f32.xlu0 %v471
        %v473 = vpop.xlane.xlu0 %472
        %v474 = vsub.f32 %v466, %v473
        %v475 = vmul.f32 %v474, 1.442695
        %v476 = vpow.pop %v475
        %v477 = vsel %vm382, %v476, 0.0
        %478 = vadd.xlane.f32.xlu0 %v477
        %v479 = vpop.xlane.xlu0 %478
        %v480 = vpack.c.bf16 %v476, %v476
        %481 = vrot.lane.b32.xlu0 %v406, 64
        %v482 = vpop.permute.xlu0 %481
        %v485 = vsel %vm382, %v480, 0
        %487 = vmatprep.subr.bf16.mxu0 0
        %488 = vmatpush1.bf16.msra.mxu0 %v482
        %489 = vmatprep.subr.bf16.mxu0 0
        %490 = vmatpush1.bf16.msra.mxu0 0
        %491 = vmatprep.subr.bf16.mxu0 0
        %492 = vmatpush1.bf16.msra.mxu0 0
        %493 = vmatprep.subr.bf16.mxu0 0
        %494 = vmatpush1.bf16.msra.mxu0 0
        %495 = vmatprep.subr.bf16.mxu0 0
        %496 = vmatpush1.bf16.msra.mxu0 0
        %497 = vmatprep.subr.bf16.mxu0 0
        %498 = vmatpush1.bf16.msra.mxu0 0
        %499 = vmatprep.subr.bf16.mxu0 0
        %500 = vmatpush1.bf16.msra.mxu0 0
        %501 = vmatprep.subr.bf16.mxu0 0
        %502 = vmatpush1.bf16.msra.mxu0 0
        %503 = vmatprep.subr.bf16.mxu0 0
        %504 = vmatpush1.bf16.msra.mxu0 0
        %505 = vmatprep.subr.bf16.mxu0 0
        %506 = vmatpush1.bf16.msra.mxu0 0
        %507 = vmatprep.subr.bf16.mxu0 0
        %508 = vmatpush1.bf16.msra.mxu0 0
        %509 = vmatprep.subr.bf16.mxu0 0
        %510 = vmatpush1.bf16.msra.mxu0 0
        %511 = vmatprep.subr.bf16.mxu0 0
        %512 = vmatpush1.bf16.msra.mxu0 0
        %513 = vmatprep.subr.bf16.mxu0 0
        %514 = vmatpush1.bf16.msra.mxu0 0
        %515 = vmatprep.subr.bf16.mxu0 0
        %516 = vmatpush1.bf16.msra.mxu0 0
        %517 = vmatprep.subr.bf16.mxu0 0
        %518 = vmatpush1.bf16.msra.mxu0 0
        %519 = vmatprep.mubr.bf16.mxu0 0
        %520 = vmatmul.mubr.bf16.gmra.mrb[0].mxu0 %v485
        %v521 = vpop.f32.mrb[0].mxu0
        %v522 = vadd.f32 0.0, %v521
        %v523 = vpop.f32.mrb[0].mxu0
        %v524 = vpop.f32.mrb[0].mxu0
        %v525 = vpop.f32.mrb[0].mxu0
        %526 = vdwg.mxu0
        %v527 = vrcp.pop %v479
        %v528 = vmul.f32 %v522, %v527
        %529 = vrot.lane.b32.xlu0 %v374, 80
        %v530 = vpop.permute.xlu0 %529
        %531 = vrot.lane.b32.xlu0 %v379, 112
        %v532 = vpop.permute.xlu0 %531
        %v535 = vsel %vm382, %v530, %v532
        %538 = vrot.lane.b32.xlu0 %v365, 32
        %v539 = vpop.permute.xlu0 %538
        %v541 = vmul.f32 %v387, %v539
        %v542 = vunpack.c.l.bf16 %v535
        %v543 = vmul.f32 %v542, %v366
        %545 = vrot.lane.b32.xlu0 %v543, 32
        %v546 = vpop.permute.xlu0 %545
        %v548 = vadd.f32 %v541, %v546
        %v549 = vpack.c.bf16 %v548, %v548
        %550 = vrot.lane.b32.xlu0 %v399, 80
        %v551 = vpop.permute.xlu0 %550
        %552 = vrot.lane.b32.xlu0 %v406, 112
        %v553 = vpop.permute.xlu0 %552
        %v556 = vsel %vm382, %v551, %v553
        %560 = vrot.lane.b32.xlu0 %v367, 32
        %v561 = vpop.permute.xlu0 %560
        %562 = vrot.lane.b32.xlu0 %v368, 32
        %v563 = vpop.permute.xlu0 %562
        %v566 = vmul.f32 %v413, %v561
        %v567 = vmul.f32 %v414, %v563
        %v568 = vunpack.c.l.bf16 %v556
        %v569 = vunpack.c.h.bf16 %v556
        %v570 = vmul.f32 %v568, %v369
        %v571 = vmul.f32 %v569, %v370
        %574 = vrot.lane.b32.xlu0 %v570, 32
        %v575 = vpop.permute.xlu0 %574
        %576 = vrot.lane.b32.xlu0 %v571, 32
        %v577 = vpop.permute.xlu0 %576
        %v580 = vadd.f32 %v566, %v575
        %v581 = vadd.f32 %v567, %v577
        %v582 = vpack.c.bf16 %v581, %v580
        %584 = vrot.lane.b32.xlu0 %v549, 96
        %v585 = vpop.permute.xlu0 %584
        %587 = vrot.lane.b32.xlu0 %v582, 96
        %v588 = vpop.permute.xlu0 %587
        %v590 = vsel %vm424, %v585, 0
        %v593 = vsel %vm424, %v588, 0
        %595 = vmatprep.subr.bf16.mxu0 0
        %596 = vmatpush1.bf16.xpose.msra.mxu0 %v593
        %597 = vmatprep.subr.bf16.mxu0 0
        %598 = vmatpush1.bf16.xpose.msra.mxu0 0
        %599 = vmatprep.subr.bf16.mxu0 0
        %600 = vmatpush1.bf16.xpose.msra.mxu0 0
        %601 = vmatprep.subr.bf16.mxu0 0
        %602 = vmatpush1.bf16.xpose.msra.mxu0 0
        %603 = vmatprep.subr.bf16.mxu0 0
        %604 = vmatpush1.bf16.xpose.msra.mxu0 0
        %605 = vmatprep.subr.bf16.mxu0 0
        %606 = vmatpush1.bf16.xpose.msra.mxu0 0
        %607 = vmatprep.subr.bf16.mxu0 0
        %608 = vmatpush1.bf16.xpose.msra.mxu0 0
        %609 = vmatprep.subr.bf16.mxu0 0
        %610 = vmatpush1.bf16.xpose.msra.mxu0 0
        %611 = vmatprep.subr.bf16.mxu0 0
        %612 = vmatpush1.bf16.xpose.msra.mxu0 0
        %613 = vmatprep.subr.bf16.mxu0 0
        %614 = vmatpush1.bf16.xpose.msra.mxu0 0
        %615 = vmatprep.subr.bf16.mxu0 0
        %616 = vmatpush1.bf16.xpose.msra.mxu0 0
        %617 = vmatprep.subr.bf16.mxu0 0
        %618 = vmatpush1.bf16.xpose.msra.mxu0 0
        %619 = vmatprep.subr.bf16.mxu0 0
        %620 = vmatpush1.bf16.xpose.msra.mxu0 0
        %621 = vmatprep.subr.bf16.mxu0 0
        %622 = vmatpush1.bf16.xpose.msra.mxu0 0
        %623 = vmatprep.subr.bf16.mxu0 0
        %624 = vmatpush1.bf16.xpose.msra.mxu0 0
        %625 = vmatprep.subr.bf16.mxu0 0
        %626 = vmatpush1.bf16.xpose.msra.mxu0 0
        %627 = vmatprep.mubr.bf16.mxu0 0
        %628 = vmatmul.mubr.bf16.gmra.mrb[0].mxu0 %v590
        %v629 = vpop.f32.mrb[0].mxu0
        %v630 = vadd.f32 0.0, %v629
        %v631 = vpop.f32.mrb[0].mxu0
        %v632 = vpop.f32.mrb[0].mxu0
        %v633 = vpop.f32.mrb[0].mxu0
        %634 = vdwg.mxu0
        %v635 = vsel %vm382, %v630, -inf
        %636 = vmax.xlane.f32.xlu0 %v635
        %v637 = vpop.xlane.xlu0 %636
        %v638 = vsub.f32 %v630, %v637
        %v639 = vmul.f32 %v638, 1.442695
        %v640 = vpow.pop %v639
        %v641 = vsel %vm382, %v640, 0.0
        %642 = vadd.xlane.f32.xlu0 %v641
        %v643 = vpop.xlane.xlu0 %642
        %v644 = vpack.c.bf16 %v640, %v640
        %645 = vrot.lane.b32.xlu0 %v406, 32
        %v646 = vpop.permute.xlu0 %645
        %v649 = vsel %vm382, %v644, 0
        %651 = vmatprep.subr.bf16.mxu0 0
        %652 = vmatpush1.bf16.msra.mxu0 %v646
        %653 = vmatprep.subr.bf16.mxu0 0
        %654 = vmatpush1.bf16.msra.mxu0 0
        %655 = vmatprep.subr.bf16.mxu0 0
        %656 = vmatpush1.bf16.msra.mxu0 0
        %657 = vmatprep.subr.bf16.mxu0 0
        %658 = vmatpush1.bf16.msra.mxu0 0
        %659 = vmatprep.subr.bf16.mxu0 0
        %660 = vmatpush1.bf16.msra.mxu0 0
        %661 = vmatprep.subr.bf16.mxu0 0
        %662 = vmatpush1.bf16.msra.mxu0 0
        %663 = vmatprep.subr.bf16.mxu0 0
        %664 = vmatpush1.bf16.msra.mxu0 0
        %665 = vmatprep.subr.bf16.mxu0 0
        %666 = vmatpush1.bf16.msra.mxu0 0
        %667 = vmatprep.subr.bf16.mxu0 0
        %668 = vmatpush1.bf16.msra.mxu0 0
        %669 = vmatprep.subr.bf16.mxu0 0
        %670 = vmatpush1.bf16.msra.mxu0 0
        %671 = vmatprep.subr.bf16.mxu0 0
        %672 = vmatpush1.bf16.msra.mxu0 0
        %673 = vmatprep.subr.bf16.mxu0 0
        %674 = vmatpush1.bf16.msra.mxu0 0
        %675 = vmatprep.subr.bf16.mxu0 0
        %676 = vmatpush1.bf16.msra.mxu0 0
        %677 = vmatprep.subr.bf16.mxu0 0
        %678 = vmatpush1.bf16.msra.mxu0 0
        %679 = vmatprep.subr.bf16.mxu0 0
        %680 = vmatpush1.bf16.msra.mxu0 0
        %681 = vmatprep.subr.bf16.mxu0 0
        %682 = vmatpush1.bf16.msra.mxu0 0
        %683 = vmatprep.mubr.bf16.mxu0 0
        %684 = vmatmul.mubr.bf16.gmra.mrb[0].mxu0 %v649
        %v685 = vpop.f32.mrb[0].mxu0
        %v686 = vadd.f32 0.0, %v685
        %v687 = vpop.f32.mrb[0].mxu0
        %v688 = vpop.f32.mrb[0].mxu0
        %v689 = vpop.f32.mrb[0].mxu0
        %690 = vdwg.mxu0
        %v691 = vrcp.pop %v643
        %v692 = vmul.f32 %v686, %v691
        %694 = vrot.lane.b32.xlu0 %v692, 32
        %v695 = vpop.permute.xlu0 %694
        %v697 = vsel %vm424, %v528, %v695
        %v698 = vpack.c.bf16 %v697, %v697
        %vm699 = vcmask 519168
        %700 = vst.msk [vmem:[%s360] sm:$0xf] %vm699, %v698
        %s701 = sand.u32 %s172, 1
        %s702 = scalar_lea.sflag [#allocation4], %s701
        %s703 = sand.u32 %s172, 1
        %s704 = smul.addr %s703, 4
        %s705 = scalar_lea.vmem [#allocation13], %s704
        // Predicated region
        $region69: #{encoder_forward.22} parent=43 // pred_check
          %p706 = pneg %p182
        $region70: #{encoder_forward.22} parent=43 // pred_check_branch
          %708 = sbr.rel (%p706) target = $region72
        $region71: #{encoder_forward.22} parent=43 // pred_region
          %s710 = ssub.s32 64, 64
          %711 = vsyncadd %s702, %s710
          %s712 = smul.addr %s28, 64
          %s713 = scalar_lea.hbm %s6, %s712
          %s715 = sshll.u32 %s705, 4
          %s716 = int_to_ptr.vmem [resolvable:$true] %s715
          %718 = dma.vmem_to_hbm [thread:$0]  %s716, 64, %s713, %s702
        $region72: #{encoder_forward.22} parent=43 // pred_fallthru
          _
      $region44: #{encoder_forward.22} parent=5 // pred_fallthru
        _
      %p719 = scmp.le.s32.totalorder 2, %s23
      // Predicated region
      $region73: #{encoder_forward.22} parent=5 // pred_check
        %p720 = pneg %p719
      $region74: #{encoder_forward.22} parent=5 // pred_check_branch
        %722 = sbr.rel (%p720) target = $region76
      $region75: #{encoder_forward.22} parent=5 // pred_region
        %s723 = ssub.s32 %s23, 2
        // Predicated region
        $region77: #{encoder_forward.22} parent=75 // pred_check
          %p724 = pneg %p188
        $region78: #{encoder_forward.22} parent=75 // pred_check_branch
          %726 = sbr.rel (%p724) target = $region80
        $region79: #{encoder_forward.22} parent=75 // pred_region
          %s727 = sand.u32 %s173, 1
          %s728 = scalar_lea.sflag [#allocation4], %s727
          %s729 = sand.u32 %s173, 1
          %s730 = smul.addr %s729, 4
          %s731 = scalar_lea.vmem [#allocation13], %s730
          %732 = dma.done %s728, 64
        $region80: #{encoder_forward.22} parent=75 // pred_fallthru
          _
      $region76: #{encoder_forward.22} parent=5 // pred_fallthru
        _
    $region6: #{encoder_forward.22} parent=1 // loop_footer
      %s27 = sadd.s32 1, %s23
    $region7: #{encoder_forward.22} parent=1 // loop_footer_branch
      %22 = sbr.rel target = $region3
    $region8: #{encoder_forward.22} parent=1 // loop_exit
      _
    %733 = vsyncpa [#allocation3], 1
    %s734 = scalar_lea.sflag [#allocation3], 1
    %735 = vsyncpa %s734, 1
    %736 = vsyncpa [#allocation6], 1
    %s737 = scalar_lea.sflag [#allocation6], 1
    %738 = vsyncpa %s737, 1
    %739 = vsyncpa [#allocation9], 1
    %740 = vsyncpa [#allocation12], 1
    %741 = vsyncpa [#allocation4], 1
    %s742 = scalar_lea.sflag [#allocation4], 1
    %743 = vsyncpa %s742, 1

// kernel: encoder_forward.33
$region0: #{encoder_forward.33}
  #allocation0 [shape = 'u32[]', space=smem, size = 0x4, offset = 0x4, fixed_abs, tag = 'smem constant byte address 0x4 - core index']
  #allocation1 [shape = 'u32[144,128]{1,0:T(1,128)}', space=vmem, size = 0x12000, scoped, tag = 'internal scratch']
  %s0 = inlined_call_operand.vmem [shape: f32[16,32], index: 0, kind: input, shape index: {}]
  %s1 = inlined_call_operand.vmem [shape: f32[1,32], index: 1, kind: input, shape index: {}]
  %s2 = inlined_call_operand.hbm [shape: f32[16,32], index: 2, kind: output, shape index: {}]
  %s3 = sld [smem:[#allocation0]]
  $region18: #{encoder_forward.33} parent=0
    _
  %s5 = ssub.s32 1, %s3
  %s6 = scalar_select 0, %s5, %s3
  $region1: #{encoder_forward.33} parent=0
    #allocation2 [shape = 'u8[8192]{0}', space=vmem, size = 0x2000, scoped, tag = 'output window, operand 0, single buffered']
    #allocation3 [shape = 's32[1]{0}', space=sflag, size = 0x4, scoped, tag = 'scoped memory for encoder_forward.33']
    %7 = vsyncpa [#allocation3], 0
    // Predicated region
    $region2: #{encoder_forward.33} parent=1 // pred_check
      _
    $region3: #{encoder_forward.33} parent=1 // pred_check_branch
      %9 = sbr.rel (0) target = $region5
    $region4: #{encoder_forward.33} parent=1 // pred_region
      _
    $region5: #{encoder_forward.33} parent=1 // pred_fallthru
      _
    // Predicated region
    $region6: #{encoder_forward.33} parent=1 // pred_check
      _
    $region7: #{encoder_forward.33} parent=1 // pred_check_branch
      %11 = sbr.rel (0) target = $region9
    $region8: #{encoder_forward.33} parent=1 // pred_region
      _
    $region9: #{encoder_forward.33} parent=1 // pred_fallthru
      _
    %v12 = vld [vmem:[%s0] sm:$0xff]
    %v13 = vld [vmem:[%s0 + $0x8] sm:$0xff]
    %v14 = vmul.f32 %v12, %v12
    %v15 = vmul.f32 %v13, %v13
    %vm16 = vcmask 261120
    %v17 = vsel %vm16, %v14, 0.0
    %18 = vadd.xlane.f32.xlu0 %v17
    %v19 = vpop.xlane.xlu0 %18
    %v20 = vsel %vm16, %v15, 0.0
    %21 = vadd.xlane.f32.xlu0 %v20
    %v22 = vpop.xlane.xlu0 %21
    %v23 = vmul.f32 %v19, 0.03125
    %v24 = vmul.f32 %v22, 0.03125
    %v25 = vmax.f32 %v23, 1e-16
    %v26 = vmax.f32 %v24, 1e-16
    %v27 = vrsqrt.pop %v25
    %v28 = vrsqrt.pop %v26
    %v29 = vmul.f32 %v12, %v27
    %v30 = vmul.f32 %v13, %v28
    %v31 = vld [vmem:[%s1] sm:$0x1]
    %v33 = vlaneseq
    %v34 = vshrl.u32 %v33, 7
    %v35 = vsub.s32 0, %v34
    %v36 = vrot.slane %v31, %v35
    %v38 = vmul.f32 %v29, %v36
    %v39 = vmul.f32 %v30, %v36
    %40 = vst.msk [vmem:[#allocation2] sm:$0xff] %vm16, %v38
    %41 = vst.msk [vmem:[#allocation2 + $0x8] sm:$0xff] %vm16, %v39
    // Predicated region
    $region10: #{encoder_forward.33} parent=1 // pred_check
      _
    $region11: #{encoder_forward.33} parent=1 // pred_check_branch
      %43 = sbr.rel (0) target = $region13
    $region12: #{encoder_forward.33} parent=1 // pred_region
      %s45 = ssub.s32 256, 256
      %46 = vsyncadd [#allocation3], %s45
      %s47 = sshll.u32 [#allocation2], 4
      %s48 = int_to_ptr.vmem [resolvable:$true] %s47
      %53 = dma.vmem_to_hbm [thread:$0]  %s48, 256, %s2, [#allocation3], 128, 128, 8
    $region13: #{encoder_forward.33} parent=1 // pred_fallthru
      _
    // Predicated region
    $region14: #{encoder_forward.33} parent=1 // pred_check
      _
    $region15: #{encoder_forward.33} parent=1 // pred_check_branch
      %55 = sbr.rel (0) target = $region17
    $region16: #{encoder_forward.33} parent=1 // pred_region
      %56 = dma.done [#allocation3], 256
    $region17: #{encoder_forward.33} parent=1 // pred_fallthru
      _
    %57 = vsyncpa [#allocation3], 1

</llo_original>
